<compile_context>
chip_gen: v6e
topology: v6e:2x2x1
jax: 0.10.0
libtpu: 0.0.40
codegen_flags: <defaults>
</compile_context>

<pallas_src>
import jax
import jax.numpy as jnp
from jax.experimental import pallas as pl
from jax.experimental.pallas import tpu as pltpu


D_IN, H1, H2, H3, D_OUT = 12, 1024, 512, 64, 14
H3_PAD, D_OUT_PAD = 128, 128          # lane padding for dense vregs / unmasked vst
BN_EPS = 1e-5
VMEM_LIMIT_BYTES = 48 * 1024 * 1024   # fits v7x's 64 MiB; ample on v5e/v6e

_WEIGHT_BYTES = (2 * (D_IN * H1 + H1 * H2 + H2 * H3_PAD + H3_PAD * D_OUT_PAD)
                 + 4 * (H1 + H2 + H3_PAD + D_OUT_PAD))
_FLOPS_PER_ROW = 2 * (D_IN * H1 + H1 * H2 + H2 * H3_PAD + H3_PAD * D_OUT_PAD)


def _round_up(n, m):
    return ((n + m - 1) // m) * m


def _cdiv(a, b):
    return -(-a // b)


# ---------------------------------------------------------------------------
# Kernel: fused 4-layer MLP on one batch tile.
# ---------------------------------------------------------------------------
def _mlp_kernel(x_ref,
                w1_ref, b1_ref,
                w2_ref, b2_ref,
                w3_ref, b3_ref,
                w4_ref, b4_ref,
                o_ref):
    # fc1 (+ folded bn1); dropout1 = identity in eval
    x = x_ref[...].astype(jnp.bfloat16)                              # (TB, 12)
    h = jnp.dot(x, w1_ref[...],
                preferred_element_type=jnp.float32) + b1_ref[...]    # (TB, 1024) f32

    # fc2; dropout2 = identity
    h = jnp.dot(h.astype(jnp.bfloat16), w2_ref[...],
                preferred_element_type=jnp.float32) + b2_ref[...]    # (TB, 512) f32

    # relu(fc3); dropout2 = identity
    h = jnp.dot(h.astype(jnp.bfloat16), w3_ref[...],
                preferred_element_type=jnp.float32) + b3_ref[...]    # (TB, 128) f32
    h = jnp.maximum(h, 0.0)

    # fc4 (+ folded bn2); dropout3 = identity
    o_ref[...] = jnp.dot(h.astype(jnp.bfloat16), w4_ref[...],
                         preferred_element_type=jnp.float32) + b4_ref[...]  # (TB, 128)


# ---------------------------------------------------------------------------
# One-time parameter packing: transpose, fold BN, cast to bf16, lane-pad.
# ---------------------------------------------------------------------------
def pack_params(p):
    def bn_fold(g, b, m, v):
        s = g / jnp.sqrt(v + BN_EPS)
        t = b - m * s
        return s, t

    s1, t1 = bn_fold(p["bn1_g"], p["bn1_b"], p["bn1_m"], p["bn1_v"])
    s2, t2 = bn_fold(p["bn2_g"], p["bn2_b"], p["bn2_m"], p["bn2_v"])

    # fc1 + bn1:  (x @ W1.T + b1) * s1 + t1  ==  x @ (W1.T * s1) + (b1*s1 + t1)
    w1 = (p["w1"].T * s1[None, :]).astype(jnp.bfloat16)               # (12, 1024)
    b1 = (p["b1"] * s1 + t1).reshape(1, -1).astype(jnp.float32)       # (1, 1024)

    w2 = p["w2"].T.astype(jnp.bfloat16)                               # (1024, 512)
    b2 = p["b2"].reshape(1, -1).astype(jnp.float32)                   # (1, 512)

    # fc3, output lanes padded 64 -> 128 (zeros; ReLU(0)=0 keeps them inert)
    w3 = jnp.zeros((H2, H3_PAD), jnp.float32)
    w3 = w3.at[:, :H3].set(p["w3"].T).astype(jnp.bfloat16)            # (512, 128)
    b3 = jnp.zeros((1, H3_PAD), jnp.float32).at[0, :H3].set(p["b3"])  # (1, 128)

    # bn2 + fc4:  (h*s2 + t2) @ W4.T + b4  ==  h @ (s2[:,None]*W4.T) + (t2@W4.T + b4)
    w4f = p["w4"].T * s2[:, None]                                     # (64, 14)
    b4f = t2 @ p["w4"].T + p["b4"]                                    # (14,)
    w4 = jnp.zeros((H3_PAD, D_OUT_PAD), jnp.float32)
    w4 = w4.at[:H3, :D_OUT].set(w4f).astype(jnp.bfloat16)             # (128, 128)
    b4 = jnp.zeros((1, D_OUT_PAD), jnp.float32).at[0, :D_OUT].set(b4f)

    return dict(w1=w1, b1=b1, w2=w2, b2=b2, w3=w3, b3=b3, w4=w4, b4=b4)


# ---------------------------------------------------------------------------
# Tiling policy + pallas_call builder.
# ---------------------------------------------------------------------------
def _choose_batch_tile(B_pad, batch_tile):
    """Largest tile <= batch_tile, but force >= 2 grid steps for biggish batches
    so the second TensorCore gets work on v7x and the pipeline has > 1 step."""
    if B_pad > batch_tile:
        return batch_tile
    if B_pad > 512:
        return min(batch_tile, _round_up(_cdiv(B_pad, 2), 256))
    return B_pad


def _weight_spec(shape, single_buffer):
    index_map = lambda i: (0,) * len(shape)
    if single_buffer:
        # grid-invariant operand: one buffer is enough, saves VMEM
        return pl.BlockSpec(shape, index_map, pipeline_mode=pl.Buffered(1))
    return pl.BlockSpec(shape, index_map)


def _pallas_forward(x_pad, packed, TB, single_buffer):
    B_pad = x_pad.shape[0]
    grid = _cdiv(B_pad, TB)

    in_specs = [
        pl.BlockSpec((TB, D_IN), lambda i: (i, 0)),                      # x tile
        _weight_spec((D_IN, H1), single_buffer),
        _weight_spec((1, H1), single_buffer),
        _weight_spec((H1, H2), single_buffer),
        _weight_spec((1, H2), single_buffer),
        _weight_spec((H2, H3_PAD), single_buffer),
        _weight_spec((1, H3_PAD), single_buffer),
        _weight_spec((H3_PAD, D_OUT_PAD), single_buffer),
        _weight_spec((1, D_OUT_PAD), single_buffer),
    ]

    cost = pl.CostEstimate(
        flops=_FLOPS_PER_ROW * B_pad,
        transcendentals=0,
        bytes_accessed=B_pad * 4 * (D_IN + D_OUT_PAD) + _WEIGHT_BYTES,
    )

    return pl.pallas_call(
        _mlp_kernel,
        out_shape=jax.ShapeDtypeStruct((B_pad, D_OUT_PAD), jnp.float32),
        grid_spec=pltpu.PrefetchScalarGridSpec(
            num_scalar_prefetch=0,
            grid=(grid,),
            in_specs=in_specs,
            out_specs=pl.BlockSpec((TB, D_OUT_PAD), lambda i: (i, 0)),
        ),
        compiler_params=pltpu.CompilerParams(
            dimension_semantics=("parallel",),
            vmem_limit_bytes=VMEM_LIMIT_BYTES,
        ),
        cost_estimate=cost,
    )(x_pad,
      packed["w1"], packed["b1"],
      packed["w2"], packed["b2"],
      packed["w3"], packed["b3"],
      packed["w4"], packed["b4"])


_single_buffer_weights_ok = None   # feature-probe cache for pl.Buffered(1)


def linear_network_forward(x, packed, *, batch_tile=2048, return_padded=False):
    """x: (B, 12) f32, packed: pack_params() output.

    Returns (B, 14) f32; with return_padded=True returns the raw padded
    (B_pad, 128) kernel output (valid region [:B, :14]) so a downstream
    consumer can slice at the point of use instead of paying an extra HBM pass.
    """
    global _single_buffer_weights_ok
    assert batch_tile > 0 and batch_tile % 8 == 0
    B = x.shape[0]

    # Pad only to the 8-row sublane multiple (usually a no-op).  The last grid
    # block may be ragged; Pallas clamps the out-of-bounds writeback.
    B_pad = _round_up(max(B, 8), 8)
    if B_pad != B:
        x = jnp.pad(x, ((0, B_pad - B), (0, 0)))

    TB = _choose_batch_tile(B_pad, batch_tile)

    sb = True if _single_buffer_weights_ok is None else _single_buffer_weights_ok
    try:
        out = _pallas_forward(x, packed, TB, sb)
        _single_buffer_weights_ok = sb
    except Exception:
        if not sb:
            raise
        # pl.Buffered(1) not supported by this jax build; fall back once.
        _single_buffer_weights_ok = False
        out = _pallas_forward(x, packed, TB, False)

    if return_padded:
        return out
    return out[:B, :D_OUT]


# ---------------------------------------------------------------------------
# Deterministic synthetic parameters (PyTorch-like shapes) + references.
# ---------------------------------------------------------------------------
def init_params(key):
    ks = jax.random.split(key, 12)

    def linear(kw, kb, fan_in, fan_out):
        bound = 1.0 / jnp.sqrt(fan_in)
        w = jax.random.uniform(kw, (fan_out, fan_in), jnp.float32, -bound, bound)
        b = jax.random.uniform(kb, (fan_out,), jnp.float32, -bound, bound)
        return w, b

    w1, b1 = linear(ks[0], ks[1], D_IN, H1)
    w2, b2 = linear(ks[2], ks[3], H1, H2)
    w3, b3 = linear(ks[4], ks[5], H2, H3)
    w4, b4 = linear(ks[6], ks[7], H3, D_OUT)

    bn1_g = 1.0 + 0.1 * jax.random.normal(ks[8], (H1,), jnp.float32)
    bn1_b = 0.1 * jax.random.normal(ks[9], (H1,), jnp.float32)
    bn1_m = 0.05 * jax.random.normal(ks[10], (H1,), jnp.float32)
    bn1_v = jnp.abs(1.0 + 0.1 * jax.random.normal(ks[11], (H1,), jnp.float32))

    k2 = jax.random.split(ks[11], 4)
    bn2_g = 1.0 + 0.1 * jax.random.normal(k2[0], (H3,), jnp.float32)
    bn2_b = 0.1 * jax.random.normal(k2[1], (H3,), jnp.float32)
    bn2_m = 0.05 * jax.random.normal(k2[2], (H3,), jnp.float32)
    bn2_v = jnp.abs(1.0 + 0.1 * jax.random.normal(k2[3], (H3,), jnp.float32))

    return dict(w1=w1, b1=b1, w2=w2, b2=b2, w3=w3, b3=b3, w4=w4, b4=b4,
                bn1_g=bn1_g, bn1_b=bn1_b, bn1_m=bn1_m, bn1_v=bn1_v,
                bn2_g=bn2_g, bn2_b=bn2_b, bn2_m=bn2_m, bn2_v=bn2_v)


def reference_forward_f32(x, p):
    """PyTorch eval-mode forward semantics, full f32."""
    def bn(h, g, b, m, v):
        return (h - m) / jnp.sqrt(v + BN_EPS) * g + b
    h = x @ p["w1"].T + p["b1"]
    h = bn(h, p["bn1_g"], p["bn1_b"], p["bn1_m"], p["bn1_v"])
    h = h @ p["w2"].T + p["b2"]
    h = jnp.maximum(h @ p["w3"].T + p["b3"], 0.0)
    h = bn(h, p["bn2_g"], p["bn2_b"], p["bn2_m"], p["bn2_v"])
    return h @ p["w4"].T + p["b4"]


def reference_forward_packed(x, packed):
    """Precision-matched reference: same folded/bf16 weights, f32 accumulate."""
    def mm(a, w):
        return jnp.dot(a.astype(jnp.bfloat16), w,
                       preferred_element_type=jnp.float32)
    h = mm(x, packed["w1"]) + packed["b1"]
    h = mm(h, packed["w2"]) + packed["b2"]
    h = jnp.maximum(mm(h, packed["w3"]) + packed["b3"], 0.0)
    return (mm(h, packed["w4"]) + packed["b4"])[:, :D_OUT]


if __name__ == "__main__":
    key = jax.random.PRNGKey(0)
    k_param, k_x1, k_x2, k_x3 = jax.random.split(key, 4)
    params = init_params(k_param)
    packed = jax.tree_util.tree_map(jnp.asarray, pack_params(params))  # one-time prep

    # --- small test (B = 8, single tile) ---
    B = 8
    x = jax.random.normal(k_x1, (B, D_IN), jnp.float32)
    out = jax.block_until_ready(linear_network_forward(x, packed))
    assert out.shape == (B, D_OUT)

    ref_matched = reference_forward_packed(x, packed)
    ref_f32 = reference_forward_f32(x, params)
    assert jnp.allclose(out, ref_matched, atol=1e-3, rtol=1e-3), (
        f"matched-precision max err {jnp.max(jnp.abs(out - ref_matched))}")
    assert jnp.allclose(out, ref_f32, atol=3e-2, rtol=3e-2), (
        f"f32-reference max err {jnp.max(jnp.abs(out - ref_f32))}")

    # --- ragged multi-step grid (B = 300, tile 128 -> 3 steps, last ragged) ---
    B2 = 300
    x2 = jax.random.normal(k_x2, (B2, D_IN), jnp.float32)
    out2 = jax.block_until_ready(
        linear_network_forward(x2, packed, batch_tile=128))
    assert out2.shape == (B2, D_OUT)
    ref2 = reference_forward_packed(x2, packed)
    assert jnp.allclose(out2, ref2, atol=1e-3, rtol=1e-3), (
        f"ragged-batch max err {jnp.max(jnp.abs(out2 - ref2))}")

    # --- auto 2-way split (B = 600, default tile -> 2 grid steps, last ragged) ---
    B3 = 600
    x3 = jax.random.normal(k_x3, (B3, D_IN), jnp.float32)
    out3 = jax.block_until_ready(linear_network_forward(x3, packed))
    assert out3.shape == (B3, D_OUT)
    ref3 = reference_forward_packed(x3, packed)
    assert jnp.allclose(out3, ref3, atol=1e-3, rtol=1e-3), (
        f"split-batch max err {jnp.max(jnp.abs(out3 - ref3))}")

    # --- padded-output path (no wrapper slice) ---
    out3_pad = jax.block_until_ready(
        linear_network_forward(x3, packed, return_padded=True))
    assert out3_pad.shape[1] == D_OUT_PAD
    assert jnp.allclose(out3_pad[:B3, :D_OUT], ref3, atol=1e-3, rtol=1e-3)

    # TODO(synk): train-mode Dropout / BatchNorm batch statistics are not
    # implemented; kernel matches model.eval() inference semantics.
    print("KERNEL_OK")
</pallas_src>

<mosaic_0001>
module attributes {stable_mosaic.version = 11 : i64} {
  func.func @_mlp_kernel(%arg0: i32, %arg1: memref<8x12xf32, #tpu.memory_space<vmem>>, %arg2: memref<12x1024xbf16, #tpu.memory_space<vmem>>, %arg3: memref<1x1024xf32, #tpu.memory_space<vmem>>, %arg4: memref<1024x512xbf16, #tpu.memory_space<vmem>>, %arg5: memref<1x512xf32, #tpu.memory_space<vmem>>, %arg6: memref<512x128xbf16, #tpu.memory_space<vmem>>, %arg7: memref<1x128xf32, #tpu.memory_space<vmem>>, %arg8: memref<128x128xbf16, #tpu.memory_space<vmem>>, %arg9: memref<1x128xf32, #tpu.memory_space<vmem>>, %arg10: memref<8x128xf32, #tpu.memory_space<vmem>>) attributes {dimension_semantics = [#tpu.dimension_semantics<parallel>], iteration_bounds = array<i64: 1>, scalar_prefetch = 0 : i64, scratch_operands = 0 : i64, tpu.core_type = #tpu.core_type<tc>, window_params = [{transform_indices = @transform_0, window_bounds = array<i64: 8, 12>}, {pipeline_mode = #tpu.pipeline_mode<synchronous>, transform_indices = @transform_1, window_bounds = array<i64: 12, 1024>}, {pipeline_mode = #tpu.pipeline_mode<synchronous>, transform_indices = @transform_2, window_bounds = array<i64: 1, 1024>}, {pipeline_mode = #tpu.pipeline_mode<synchronous>, transform_indices = @transform_3, window_bounds = array<i64: 1024, 512>}, {pipeline_mode = #tpu.pipeline_mode<synchronous>, transform_indices = @transform_4, window_bounds = array<i64: 1, 512>}, {pipeline_mode = #tpu.pipeline_mode<synchronous>, transform_indices = @transform_5, window_bounds = array<i64: 512, 128>}, {pipeline_mode = #tpu.pipeline_mode<synchronous>, transform_indices = @transform_6, window_bounds = array<i64: 1, 128>}, {pipeline_mode = #tpu.pipeline_mode<synchronous>, transform_indices = @transform_7, window_bounds = array<i64: 128, 128>}, {pipeline_mode = #tpu.pipeline_mode<synchronous>, transform_indices = @transform_8, window_bounds = array<i64: 1, 128>}, {transform_indices = @transform_9, window_bounds = array<i64: 8, 128>}]} {
    %c0 = arith.constant 0 : index
    %c0_0 = arith.constant 0 : index
    %0 = vector.load %arg1[%c0, %c0_0] : memref<8x12xf32, #tpu.memory_space<vmem>>, vector<8x12xf32>
    %1 = arith.truncf %0 : vector<8x12xf32> to vector<8x12xbf16>
    %c0_1 = arith.constant 0 : index
    %c0_2 = arith.constant 0 : index
    %2 = vector.load %arg2[%c0_1, %c0_2] : memref<12x1024xbf16, #tpu.memory_space<vmem>>, vector<12x1024xbf16>
    %cst = arith.constant dense<0.000000e+00> : vector<8x1024xf32>
    %3 = tpu.matmul %1, %2, %cst {dimension_numbers = #tpu.dot_dimension_numbers<[1], [0], [0], [1], [0, 0, 1, 1], [], []>} : vector<8x12xbf16>, vector<12x1024xbf16>, vector<8x1024xf32> -> vector<8x1024xf32>
    %c0_3 = arith.constant 0 : index
    %c0_4 = arith.constant 0 : index
    %4 = vector.load %arg3[%c0_3, %c0_4] : memref<1x1024xf32, #tpu.memory_space<vmem>>, vector<1x1024xf32>
    %5 = vector.broadcast %4 : vector<1x1024xf32> to vector<8x1024xf32>
    %6 = arith.addf %3, %5 : vector<8x1024xf32>
    %7 = arith.truncf %6 : vector<8x1024xf32> to vector<8x1024xbf16>
    %c0_5 = arith.constant 0 : index
    %c0_6 = arith.constant 0 : index
    %8 = vector.load %arg4[%c0_5, %c0_6] : memref<1024x512xbf16, #tpu.memory_space<vmem>>, vector<1024x512xbf16>
    %cst_7 = arith.constant dense<0.000000e+00> : vector<8x512xf32>
    %9 = tpu.matmul %7, %8, %cst_7 {dimension_numbers = #tpu.dot_dimension_numbers<[1], [0], [0], [1], [0, 0, 1, 1], [], []>} : vector<8x1024xbf16>, vector<1024x512xbf16>, vector<8x512xf32> -> vector<8x512xf32>
    %c0_8 = arith.constant 0 : index
    %c0_9 = arith.constant 0 : index
    %10 = vector.load %arg5[%c0_8, %c0_9] : memref<1x512xf32, #tpu.memory_space<vmem>>, vector<1x512xf32>
    %11 = vector.broadcast %10 : vector<1x512xf32> to vector<8x512xf32>
    %12 = arith.addf %9, %11 : vector<8x512xf32>
    %13 = arith.truncf %12 : vector<8x512xf32> to vector<8x512xbf16>
    %c0_10 = arith.constant 0 : index
    %c0_11 = arith.constant 0 : index
    %14 = vector.load %arg6[%c0_10, %c0_11] : memref<512x128xbf16, #tpu.memory_space<vmem>>, vector<512x128xbf16>
    %cst_12 = arith.constant dense<0.000000e+00> : vector<8x128xf32>
    %15 = tpu.matmul %13, %14, %cst_12 {dimension_numbers = #tpu.dot_dimension_numbers<[1], [0], [0], [1], [0, 0, 1, 1], [], []>} : vector<8x512xbf16>, vector<512x128xbf16>, vector<8x128xf32> -> vector<8x128xf32>
    %c0_13 = arith.constant 0 : index
    %c0_14 = arith.constant 0 : index
    %16 = vector.load %arg7[%c0_13, %c0_14] : memref<1x128xf32, #tpu.memory_space<vmem>>, vector<1x128xf32>
    %17 = vector.broadcast %16 : vector<1x128xf32> to vector<8x128xf32>
    %18 = arith.addf %15, %17 : vector<8x128xf32>
    %cst_15 = arith.constant 0.000000e+00 : f32
    %19 = vector.broadcast %cst_15 : f32 to vector<8x128xf32>
    %20 = arith.maximumf %18, %19 : vector<8x128xf32>
    %21 = arith.truncf %20 : vector<8x128xf32> to vector<8x128xbf16>
    %c0_16 = arith.constant 0 : index
    %c0_17 = arith.constant 0 : index
    %22 = vector.load %arg8[%c0_16, %c0_17] : memref<128x128xbf16, #tpu.memory_space<vmem>>, vector<128x128xbf16>
    %cst_18 = arith.constant dense<0.000000e+00> : vector<8x128xf32>
    %23 = tpu.matmul %21, %22, %cst_18 {dimension_numbers = #tpu.dot_dimension_numbers<[1], [0], [0], [1], [0, 0, 1, 1], [], []>} : vector<8x128xbf16>, vector<128x128xbf16>, vector<8x128xf32> -> vector<8x128xf32>
    %c0_19 = arith.constant 0 : index
    %c0_20 = arith.constant 0 : index
    %24 = vector.load %arg9[%c0_19, %c0_20] : memref<1x128xf32, #tpu.memory_space<vmem>>, vector<1x128xf32>
    %25 = vector.broadcast %24 : vector<1x128xf32> to vector<8x128xf32>
    %26 = arith.addf %23, %25 : vector<8x128xf32>
    %c0_21 = arith.constant 0 : index
    %c0_22 = arith.constant 0 : index
    %27 = vector.load %arg10[%c0_21, %c0_22] : memref<8x128xf32, #tpu.memory_space<vmem>>, vector<8x128xf32>
    tpu.vector_store %arg10[%c0_21, %c0_22], %26 {strides = array<i32>} : memref<8x128xf32, #tpu.memory_space<vmem>>, vector<8x128xf32>,
    return
  }
  func.func @transform_0(%arg0: i32) -> (i32, i32) {
    %c0_i32 = arith.constant 0 : i32
    %c0_i32_0 = arith.constant 0 : i32
    return %arg0, %c0_i32 : i32, i32
  }
  func.func @transform_1(%arg0: i32) -> (i32, i32) {
    %c0_i32 = arith.constant 0 : i32
    %c0_i32_0 = arith.constant 0 : i32
    %c0_i32_1 = arith.constant 0 : i32
    return %c0_i32, %c0_i32_0 : i32, i32
  }
  func.func @transform_2(%arg0: i32) -> (i32, i32) {
    %c0_i32 = arith.constant 0 : i32
    %c0_i32_0 = arith.constant 0 : i32
    %c0_i32_1 = arith.constant 0 : i32
    return %c0_i32, %c0_i32_0 : i32, i32
  }
  func.func @transform_3(%arg0: i32) -> (i32, i32) {
    %c0_i32 = arith.constant 0 : i32
    %c0_i32_0 = arith.constant 0 : i32
    %c0_i32_1 = arith.constant 0 : i32
    return %c0_i32, %c0_i32_0 : i32, i32
  }
  func.func @transform_4(%arg0: i32) -> (i32, i32) {
    %c0_i32 = arith.constant 0 : i32
    %c0_i32_0 = arith.constant 0 : i32
    %c0_i32_1 = arith.constant 0 : i32
    return %c0_i32, %c0_i32_0 : i32, i32
  }
  func.func @transform_5(%arg0: i32) -> (i32, i32) {
    %c0_i32 = arith.constant 0 : i32
    %c0_i32_0 = arith.constant 0 : i32
    %c0_i32_1 = arith.constant 0 : i32
    return %c0_i32, %c0_i32_0 : i32, i32
  }
  func.func @transform_6(%arg0: i32) -> (i32, i32) {
    %c0_i32 = arith.constant 0 : i32
    %c0_i32_0 = arith.constant 0 : i32
    %c0_i32_1 = arith.constant 0 : i32
    return %c0_i32, %c0_i32_0 : i32, i32
  }
  func.func @transform_7(%arg0: i32) -> (i32, i32) {
    %c0_i32 = arith.constant 0 : i32
    %c0_i32_0 = arith.constant 0 : i32
    %c0_i32_1 = arith.constant 0 : i32
    return %c0_i32, %c0_i32_0 : i32, i32
  }
  func.func @transform_8(%arg0: i32) -> (i32, i32) {
    %c0_i32 = arith.constant 0 : i32
    %c0_i32_0 = arith.constant 0 : i32
    %c0_i32_1 = arith.constant 0 : i32
    return %c0_i32, %c0_i32_0 : i32, i32
  }
  func.func @transform_9(%arg0: i32) -> (i32, i32) {
    %c0_i32 = arith.constant 0 : i32
    %c0_i32_0 = arith.constant 0 : i32
    return %arg0, %c0_i32 : i32, i32
  }
}

module attributes {stable_mosaic.version = 11 : i64} {
  func.func @_mlp_kernel(%arg0: i32, %arg1: memref<8x12xf32, #tpu.memory_space<vmem>>, %arg2: memref<12x1024xbf16, #tpu.memory_space<vmem>>, %arg3: memref<1x1024xf32, #tpu.memory_space<vmem>>, %arg4: memref<1024x512xbf16, #tpu.memory_space<vmem>>, %arg5: memref<1x512xf32, #tpu.memory_space<vmem>>, %arg6: memref<512x128xbf16, #tpu.memory_space<vmem>>, %arg7: memref<1x128xf32, #tpu.memory_space<vmem>>, %arg8: memref<128x128xbf16, #tpu.memory_space<vmem>>, %arg9: memref<1x128xf32, #tpu.memory_space<vmem>>, %arg10: memref<8x128xf32, #tpu.memory_space<vmem>>) attributes {dimension_semantics = [#tpu.dimension_semantics<parallel>], iteration_bounds = array<i64: 1>, scalar_prefetch = 0 : i64, scratch_operands = 0 : i64, tpu.core_type = #tpu.core_type<tc>, window_params = [{transform_indices = @transform_0, window_bounds = array<i64: 8, 12>}, {pipeline_mode = #tpu.pipeline_mode<synchronous>, transform_indices = @transform_1, window_bounds = array<i64: 12, 1024>}, {pipeline_mode = #tpu.pipeline_mode<synchronous>, transform_indices = @transform_2, window_bounds = array<i64: 1, 1024>}, {pipeline_mode = #tpu.pipeline_mode<synchronous>, transform_indices = @transform_3, window_bounds = array<i64: 1024, 512>}, {pipeline_mode = #tpu.pipeline_mode<synchronous>, transform_indices = @transform_4, window_bounds = array<i64: 1, 512>}, {pipeline_mode = #tpu.pipeline_mode<synchronous>, transform_indices = @transform_5, window_bounds = array<i64: 512, 128>}, {pipeline_mode = #tpu.pipeline_mode<synchronous>, transform_indices = @transform_6, window_bounds = array<i64: 1, 128>}, {pipeline_mode = #tpu.pipeline_mode<synchronous>, transform_indices = @transform_7, window_bounds = array<i64: 128, 128>}, {pipeline_mode = #tpu.pipeline_mode<synchronous>, transform_indices = @transform_8, window_bounds = array<i64: 1, 128>}, {transform_indices = @transform_9, window_bounds = array<i64: 8, 128>}]} {
    %c0 = arith.constant 0 : index
    %c0_0 = arith.constant 0 : index
    %0 = vector.load %arg1[%c0, %c0_0] : memref<8x12xf32, #tpu.memory_space<vmem>>, vector<8x12xf32>
    %1 = arith.truncf %0 : vector<8x12xf32> to vector<8x12xbf16>
    %c0_1 = arith.constant 0 : index
    %c0_2 = arith.constant 0 : index
    %2 = vector.load %arg2[%c0_1, %c0_2] : memref<12x1024xbf16, #tpu.memory_space<vmem>>, vector<12x1024xbf16>
    %cst = arith.constant dense<0.000000e+00> : vector<8x1024xf32>
    %3 = tpu.matmul %1, %2, %cst {dimension_numbers = #tpu.dot_dimension_numbers<[1], [0], [0], [1], [0, 0, 1, 1], [], []>} : vector<8x12xbf16>, vector<12x1024xbf16>, vector<8x1024xf32> -> vector<8x1024xf32>
    %c0_3 = arith.constant 0 : index
    %c0_4 = arith.constant 0 : index
    %4 = vector.load %arg3[%c0_3, %c0_4] : memref<1x1024xf32, #tpu.memory_space<vmem>>, vector<1x1024xf32>
    %5 = vector.broadcast %4 : vector<1x1024xf32> to vector<8x1024xf32>
    %6 = arith.addf %3, %5 : vector<8x1024xf32>
    %7 = arith.truncf %6 : vector<8x1024xf32> to vector<8x1024xbf16>
    %c0_5 = arith.constant 0 : index
    %c0_6 = arith.constant 0 : index
    %8 = vector.load %arg4[%c0_5, %c0_6] : memref<1024x512xbf16, #tpu.memory_space<vmem>>, vector<1024x512xbf16>
    %cst_7 = arith.constant dense<0.000000e+00> : vector<8x512xf32>
    %9 = tpu.matmul %7, %8, %cst_7 {dimension_numbers = #tpu.dot_dimension_numbers<[1], [0], [0], [1], [0, 0, 1, 1], [], []>} : vector<8x1024xbf16>, vector<1024x512xbf16>, vector<8x512xf32> -> vector<8x512xf32>
    %c0_8 = arith.constant 0 : index
    %c0_9 = arith.constant 0 : index
    %10 = vector.load %arg5[%c0_8, %c0_9] : memref<1x512xf32, #tpu.memory_space<vmem>>, vector<1x512xf32>
    %11 = vector.broadcast %10 : vector<1x512xf32> to vector<8x512xf32>
    %12 = arith.addf %9, %11 : vector<8x512xf32>
    %13 = arith.truncf %12 : vector<8x512xf32> to vector<8x512xbf16>
    %c0_10 = arith.constant 0 : index
    %c0_11 = arith.constant 0 : index
    %14 = vector.load %arg6[%c0_10, %c0_11] : memref<512x128xbf16, #tpu.memory_space<vmem>>, vector<512x128xbf16>
    %cst_12 = arith.constant dense<0.000000e+00> : vector<8x128xf32>
    %15 = tpu.matmul %13, %14, %cst_12 {dimension_numbers = #tpu.dot_dimension_numbers<[1], [0], [0], [1], [0, 0, 1, 1], [], []>} : vector<8x512xbf16>, vector<512x128xbf16>, vector<8x128xf32> -> vector<8x128xf32>
    %c0_13 = arith.constant 0 : index
    %c0_14 = arith.constant 0 : index
    %16 = vector.load %arg7[%c0_13, %c0_14] : memref<1x128xf32, #tpu.memory_space<vmem>>, vector<1x128xf32>
    %17 = vector.broadcast %16 : vector<1x128xf32> to vector<8x128xf32>
    %18 = arith.addf %15, %17 : vector<8x128xf32>
    %cst_15 = arith.constant 0.000000e+00 : f32
    %19 = vector.broadcast %cst_15 : f32 to vector<8x128xf32>
    %20 = arith.maximumf %18, %19 : vector<8x128xf32>
    %21 = arith.truncf %20 : vector<8x128xf32> to vector<8x128xbf16>
    %c0_16 = arith.constant 0 : index
    %c0_17 = arith.constant 0 : index
    %22 = vector.load %arg8[%c0_16, %c0_17] : memref<128x128xbf16, #tpu.memory_space<vmem>>, vector<128x128xbf16>
    %cst_18 = arith.constant dense<0.000000e+00> : vector<8x128xf32>
    %23 = tpu.matmul %21, %22, %cst_18 {dimension_numbers = #tpu.dot_dimension_numbers<[1], [0], [0], [1], [0, 0, 1, 1], [], []>} : vector<8x128xbf16>, vector<128x128xbf16>, vector<8x128xf32> -> vector<8x128xf32>
    %c0_19 = arith.constant 0 : index
    %c0_20 = arith.constant 0 : index
    %24 = vector.load %arg9[%c0_19, %c0_20] : memref<1x128xf32, #tpu.memory_space<vmem>>, vector<1x128xf32>
    %25 = vector.broadcast %24 : vector<1x128xf32> to vector<8x128xf32>
    %26 = arith.addf %23, %25 : vector<8x128xf32>
    %c0_21 = arith.constant 0 : index
    %c0_22 = arith.constant 0 : index
    %27 = vector.load %arg10[%c0_21, %c0_22] : memref<8x128xf32, #tpu.memory_space<vmem>>, vector<8x128xf32>
    tpu.vector_store %arg10[%c0_21, %c0_22], %26 {strides = array<i32>} : memref<8x128xf32, #tpu.memory_space<vmem>>, vector<8x128xf32>,
    return
  }
  func.func @transform_0(%arg0: i32) -> (i32, i32) {
    %c0_i32 = arith.constant 0 : i32
    %c0_i32_0 = arith.constant 0 : i32
    return %arg0, %c0_i32 : i32, i32
  }
  func.func @transform_1(%arg0: i32) -> (i32, i32) {
    %c0_i32 = arith.constant 0 : i32
    %c0_i32_0 = arith.constant 0 : i32
    %c0_i32_1 = arith.constant 0 : i32
    return %c0_i32, %c0_i32_0 : i32, i32
  }
  func.func @transform_2(%arg0: i32) -> (i32, i32) {
    %c0_i32 = arith.constant 0 : i32
    %c0_i32_0 = arith.constant 0 : i32
    %c0_i32_1 = arith.constant 0 : i32
    return %c0_i32, %c0_i32_0 : i32, i32
  }
  func.func @transform_3(%arg0: i32) -> (i32, i32) {
    %c0_i32 = arith.constant 0 : i32
    %c0_i32_0 = arith.constant 0 : i32
    %c0_i32_1 = arith.constant 0 : i32
    return %c0_i32, %c0_i32_0 : i32, i32
  }
  func.func @transform_4(%arg0: i32) -> (i32, i32) {
    %c0_i32 = arith.constant 0 : i32
    %c0_i32_0 = arith.constant 0 : i32
    %c0_i32_1 = arith.constant 0 : i32
    return %c0_i32, %c0_i32_0 : i32, i32
  }
  func.func @transform_5(%arg0: i32) -> (i32, i32) {
    %c0_i32 = arith.constant 0 : i32
    %c0_i32_0 = arith.constant 0 : i32
    %c0_i32_1 = arith.constant 0 : i32
    return %c0_i32, %c0_i32_0 : i32, i32
  }
  func.func @transform_6(%arg0: i32) -> (i32, i32) {
    %c0_i32 = arith.constant 0 : i32
    %c0_i32_0 = arith.constant 0 : i32
    %c0_i32_1 = arith.constant 0 : i32
    return %c0_i32, %c0_i32_0 : i32, i32
  }
  func.func @transform_7(%arg0: i32) -> (i32, i32) {
    %c0_i32 = arith.constant 0 : i32
    %c0_i32_0 = arith.constant 0 : i32
    %c0_i32_1 = arith.constant 0 : i32
    return %c0_i32, %c0_i32_0 : i32, i32
  }
  func.func @transform_8(%arg0: i32) -> (i32, i32) {
    %c0_i32 = arith.constant 0 : i32
    %c0_i32_0 = arith.constant 0 : i32
    %c0_i32_1 = arith.constant 0 : i32
    return %c0_i32, %c0_i32_0 : i32, i32
  }
  func.func @transform_9(%arg0: i32) -> (i32, i32) {
    %c0_i32 = arith.constant 0 : i32
    %c0_i32_0 = arith.constant 0 : i32
    return %arg0, %c0_i32 : i32, i32
  }
}

</mosaic_0001>

<llo_original>
// kernel: tpu_custom_call.1
$region0: #{tpu_custom_call.1}
  #allocation0 [shape = 'u32[]', space=smem, size = 0x4, offset = 0x4, fixed_abs, tag = 'smem constant byte address 0x4 - core index']
  #allocation1 [shape = 'u32[144,128]{1,0:T(1,128)}', space=vmem, size = 0x12000, scoped, tag = 'internal scratch']
  %s0 = inlined_call_operand.hbm [shape: f32[8,12], index: 0, kind: input, shape index: {}]
  %s1 = inlined_call_operand.hbm [shape: bf16[12,1024], index: 1, kind: input, shape index: {}]
  %s2 = inlined_call_operand.hbm [shape: f32[1,1024], index: 2, kind: input, shape index: {}]
  %s3 = inlined_call_operand.hbm [shape: bf16[1024,512], index: 3, kind: input, shape index: {}]
  %s4 = inlined_call_operand.vmem [shape: f32[1,512], index: 4, kind: input, shape index: {}]
  %s5 = inlined_call_operand.hbm [shape: bf16[512,128], index: 5, kind: input, shape index: {}]
  %s6 = inlined_call_operand.vmem [shape: f32[1,128], index: 6, kind: input, shape index: {}]
  %s7 = inlined_call_operand.hbm [shape: bf16[128,128], index: 7, kind: input, shape index: {}]
  %s8 = inlined_call_operand.vmem [shape: f32[1,128], index: 8, kind: input, shape index: {}]
  %s9 = inlined_call_operand.hbm [shape: f32[8,128], index: 9, kind: output, shape index: {}]
  %s10 = sld [smem:[#allocation0]]
  $region70: #{tpu_custom_call.1} parent=0
    _
  %s12 = ssub.s32 1, %s10
  %s13 = scalar_select 0, %s12, %s10
  $region1: #{tpu_custom_call.1} parent=0
    #allocation2 [shape = 'u8[4096]{0}', space=vmem, size = 0x1000, scoped, tag = 'input window, operand 0, single buffered']
    #allocation3 [shape = 's32[1]{0}', space=sflag, size = 0x4, scoped, tag = 'scoped memory for tpu_custom_call.1']
    #allocation4 [shape = 's32[1]{0}', space=sflag, size = 0x4, scoped, tag = 'scoped memory for tpu_custom_call.1']
    #allocation5 [shape = 'u8[32768]{0}', space=vmem, size = 0x8000, scoped, tag = 'input window, operand 1, single buffered']
    #allocation6 [shape = 's32[1]{0}', space=sflag, size = 0x4, scoped, tag = 'scoped memory for tpu_custom_call.1']
    #allocation7 [shape = 'u8[4096]{0}', space=vmem, size = 0x1000, scoped, tag = 'input window, operand 2, single buffered']
    #allocation8 [shape = 'u8[1048576]{0}', space=vmem, size = 0x100000, scoped, tag = 'input window, operand 3, single buffered']
    #allocation9 [shape = 's32[1]{0}', space=sflag, size = 0x4, scoped, tag = 'scoped memory for tpu_custom_call.1']
    #allocation10 [shape = 'u8[131072]{0}', space=vmem, size = 0x20000, scoped, tag = 'input window, operand 5, single buffered']
    #allocation11 [shape = 'u8[32768]{0}', space=vmem, size = 0x8000, scoped, tag = 'input window, operand 7, single buffered']
    #allocation12 [shape = 's32[1]{0}', space=sflag, size = 0x4, scoped, tag = 'scoped memory for tpu_custom_call.1']
    #allocation13 [shape = 'u8[4096]{0}', space=vmem, size = 0x1000, scoped, tag = 'output window, operand 0, single buffered']
    %14 = vsyncpa [#allocation3], 0
    %15 = vsyncpa [#allocation6], 0
    %16 = vsyncpa [#allocation9], 0
    %17 = vsyncpa [#allocation12], 0
    %18 = vsyncpa [#allocation4], 0
    // Predicated region
    $region2: #{tpu_custom_call.1} parent=1 // pred_check
      _
    $region3: #{tpu_custom_call.1} parent=1 // pred_check_branch
      %20 = sbr.rel (0) target = $region5
    $region4: #{tpu_custom_call.1} parent=1 // pred_region
      %s22 = ssub.s32 128, 128
      %23 = vsyncadd [#allocation3], %s22
      %s25 = sshll.u32 [#allocation2], 4
      %s26 = int_to_ptr.vmem [resolvable:$true] %s25
      %28 = dma.hbm_to_vmem [thread:$0]  %s0, 128, %s26, [#allocation3]
    $region5: #{tpu_custom_call.1} parent=1 // pred_fallthru
      _
    // Predicated region
    $region6: #{tpu_custom_call.1} parent=1 // pred_check
      _
    $region7: #{tpu_custom_call.1} parent=1 // pred_check_branch
      %30 = sbr.rel (0) target = $region9
    $region8: #{tpu_custom_call.1} parent=1 // pred_region
      %s32 = ssub.s32 1024, 1024
      %33 = vsyncadd [#allocation6], %s32
      %s34 = sshll.u32 [#allocation5], 4
      %s35 = int_to_ptr.vmem [resolvable:$true] %s34
      %40 = dma.hbm_to_vmem [thread:$0]  %s1, 1024, %s35, [#allocation6], 512, 512, 32
    $region9: #{tpu_custom_call.1} parent=1 // pred_fallthru
      _
    // Predicated region
    $region10: #{tpu_custom_call.1} parent=1 // pred_check
      _
    $region11: #{tpu_custom_call.1} parent=1 // pred_check_branch
      %42 = sbr.rel (0) target = $region13
    $region12: #{tpu_custom_call.1} parent=1 // pred_region
      %s44 = ssub.s32 128, 128
      %45 = vsyncadd [#allocation6], %s44
      %s47 = sshll.u32 [#allocation7], 4
      %s48 = int_to_ptr.vmem [resolvable:$true] %s47
      %50 = dma.hbm_to_vmem [thread:$0]  %s2, 128, %s48, [#allocation6]
    $region13: #{tpu_custom_call.1} parent=1 // pred_fallthru
      _
    // Predicated region
    $region14: #{tpu_custom_call.1} parent=1 // pred_check
      _
    $region15: #{tpu_custom_call.1} parent=1 // pred_check_branch
      %52 = sbr.rel (0) target = $region17
    $region16: #{tpu_custom_call.1} parent=1 // pred_region
      %s54 = ssub.s32 32768, 32768
      %55 = vsyncadd [#allocation9], %s54
      %s56 = sshll.u32 [#allocation8], 4
      %s57 = int_to_ptr.vmem [resolvable:$true] %s56
      %62 = dma.hbm_to_vmem [thread:$0]  %s3, 32768, %s57, [#allocation9], 256, 256, 16
    $region17: #{tpu_custom_call.1} parent=1 // pred_fallthru
      _
    // Predicated region
    $region18: #{tpu_custom_call.1} parent=1 // pred_check
      _
    $region19: #{tpu_custom_call.1} parent=1 // pred_check_branch
      %64 = sbr.rel (0) target = $region21
    $region20: #{tpu_custom_call.1} parent=1 // pred_region
      _
    $region21: #{tpu_custom_call.1} parent=1 // pred_fallthru
      _
    // Predicated region
    $region22: #{tpu_custom_call.1} parent=1 // pred_check
      _
    $region23: #{tpu_custom_call.1} parent=1 // pred_check_branch
      %66 = sbr.rel (0) target = $region25
    $region24: #{tpu_custom_call.1} parent=1 // pred_region
      %s68 = ssub.s32 4096, 4096
      %69 = vsyncadd [#allocation9], %s68
      %s70 = sshll.u32 [#allocation10], 4
      %s71 = int_to_ptr.vmem [resolvable:$true] %s70
      %76 = dma.hbm_to_vmem [thread:$0]  %s5, 4096, %s71, [#allocation9], 64, 64, 4
    $region25: #{tpu_custom_call.1} parent=1 // pred_fallthru
      _
    // Predicated region
    $region26: #{tpu_custom_call.1} parent=1 // pred_check
      _
    $region27: #{tpu_custom_call.1} parent=1 // pred_check_branch
      %78 = sbr.rel (0) target = $region29
    $region28: #{tpu_custom_call.1} parent=1 // pred_region
      _
    $region29: #{tpu_custom_call.1} parent=1 // pred_fallthru
      _
    // Predicated region
    $region30: #{tpu_custom_call.1} parent=1 // pred_check
      _
    $region31: #{tpu_custom_call.1} parent=1 // pred_check_branch
      %80 = sbr.rel (0) target = $region33
    $region32: #{tpu_custom_call.1} parent=1 // pred_region
      %s82 = ssub.s32 1024, 1024
      %83 = vsyncadd [#allocation12], %s82
      %s84 = sshll.u32 [#allocation11], 4
      %s85 = int_to_ptr.vmem [resolvable:$true] %s84
      %90 = dma.hbm_to_vmem [thread:$0]  %s7, 1024, %s85, [#allocation12], 64, 64, 4
    $region33: #{tpu_custom_call.1} parent=1 // pred_fallthru
      _
    // Predicated region
    $region34: #{tpu_custom_call.1} parent=1 // pred_check
      _
    $region35: #{tpu_custom_call.1} parent=1 // pred_check_branch
      %92 = sbr.rel (0) target = $region37
    $region36: #{tpu_custom_call.1} parent=1 // pred_region
      _
    $region37: #{tpu_custom_call.1} parent=1 // pred_fallthru
      _
    // Predicated region
    $region38: #{tpu_custom_call.1} parent=1 // pred_check
      _
    $region39: #{tpu_custom_call.1} parent=1 // pred_check_branch
      %94 = sbr.rel (0) target = $region41
    $region40: #{tpu_custom_call.1} parent=1 // pred_region
      %95 = dma.done [#allocation3], 128
    $region41: #{tpu_custom_call.1} parent=1 // pred_fallthru
      _
    // Predicated region
    $region42: #{tpu_custom_call.1} parent=1 // pred_check
      _
    $region43: #{tpu_custom_call.1} parent=1 // pred_check_branch
      %97 = sbr.rel (0) target = $region45
    $region44: #{tpu_custom_call.1} parent=1 // pred_region
      %98 = dma.done [#allocation6], 1024
    $region45: #{tpu_custom_call.1} parent=1 // pred_fallthru
      _
    // Predicated region
    $region46: #{tpu_custom_call.1} parent=1 // pred_check
      _
    $region47: #{tpu_custom_call.1} parent=1 // pred_check_branch
      %100 = sbr.rel (0) target = $region49
    $region48: #{tpu_custom_call.1} parent=1 // pred_region
      %101 = dma.done [#allocation6], 128
    $region49: #{tpu_custom_call.1} parent=1 // pred_fallthru
      _
    // Predicated region
    $region50: #{tpu_custom_call.1} parent=1 // pred_check
      _
    $region51: #{tpu_custom_call.1} parent=1 // pred_check_branch
      %103 = sbr.rel (0) target = $region53
    $region52: #{tpu_custom_call.1} parent=1 // pred_region
      %104 = dma.done [#allocation9], 32768
    $region53: #{tpu_custom_call.1} parent=1 // pred_fallthru
      _
    // Predicated region
    $region54: #{tpu_custom_call.1} parent=1 // pred_check
      _
    $region55: #{tpu_custom_call.1} parent=1 // pred_check_branch
      %106 = sbr.rel (0) target = $region57
    $region56: #{tpu_custom_call.1} parent=1 // pred_region
      %107 = dma.done [#allocation9], 4096
    $region57: #{tpu_custom_call.1} parent=1 // pred_fallthru
      _
    // Predicated region
    $region58: #{tpu_custom_call.1} parent=1 // pred_check
      _
    $region59: #{tpu_custom_call.1} parent=1 // pred_check_branch
      %109 = sbr.rel (0) target = $region61
    $region60: #{tpu_custom_call.1} parent=1 // pred_region
      %110 = dma.done [#allocation12], 1024
    $region61: #{tpu_custom_call.1} parent=1 // pred_fallthru
      _
    %v112 = vld [vmem:[#allocation2] sm:$0xff]
    %v113 = vpack.c.bf16 %v112, %v112
    %v114 = vld [vmem:[#allocation5] sm:$0xff]
    %v115 = vld [vmem:[#allocation5 + $0x8] sm:$0xff]
    %v116 = vld [vmem:[#allocation5 + $0x10] sm:$0xff]
    %v117 = vld [vmem:[#allocation5 + $0x18] sm:$0xff]
    %v118 = vld [vmem:[#allocation5 + $0x20] sm:$0x33]
    %v119 = vld [vmem:[#allocation5 + $0x28] sm:$0x33]
    %v120 = vld [vmem:[#allocation5 + $0x30] sm:$0x33]
    %v121 = vld [vmem:[#allocation5 + $0x38] sm:$0x33]
    %v122 = vld [vmem:[#allocation7] sm:$0xff]
    %v124 = vlaneseq
    %v125 = vshrl.u32 %v124, 7
    %v126 = vsub.s32 0, %v125
    %v127 = vrot.slane %v122, %v126
    %v128 = vlaneseq
    %v129 = vshrl.u32 %v128, 7
    %v130 = vsub.s32 1, %v129
    %v131 = vrot.slane %v122, %v130
    %v132 = vlaneseq
    %v133 = vshrl.u32 %v132, 7
    %v134 = vsub.s32 2, %v133
    %v135 = vrot.slane %v122, %v134
    %v136 = vlaneseq
    %v137 = vshrl.u32 %v136, 7
    %v138 = vsub.s32 3, %v137
    %v139 = vrot.slane %v122, %v138
    %v140 = vlaneseq
    %v141 = vshrl.u32 %v140, 7
    %v142 = vsub.s32 4, %v141
    %v143 = vrot.slane %v122, %v142
    %v144 = vlaneseq
    %v145 = vshrl.u32 %v144, 7
    %v146 = vsub.s32 5, %v145
    %v147 = vrot.slane %v122, %v146
    %v148 = vlaneseq
    %v149 = vshrl.u32 %v148, 7
    %v150 = vsub.s32 6, %v149
    %v151 = vrot.slane %v122, %v150
    %v152 = vlaneseq
    %v153 = vshrl.u32 %v152, 7
    %v154 = vsub.s32 7, %v153
    %v155 = vrot.slane %v122, %v154
    %v172 = vunpack.c.l.b16 %v114
    %v173 = vunpack.c.h.b16 %v114
    %v174 = vunpack.c.l.b16 %v115
    %v175 = vunpack.c.h.b16 %v115
    %v176 = vunpack.c.l.b16 %v116
    %v177 = vunpack.c.h.b16 %v116
    %v178 = vunpack.c.l.b16 %v117
    %v179 = vunpack.c.h.b16 %v117
    %v180 = vunpack.c.l.b16 %v118
    %v181 = vunpack.c.h.b16 %v118
    %v182 = vunpack.c.l.b16 %v119
    %v183 = vunpack.c.h.b16 %v119
    %v184 = vunpack.c.l.b16 %v120
    %v185 = vunpack.c.h.b16 %v120
    %v186 = vunpack.c.l.b16 %v121
    %v187 = vunpack.c.h.b16 %v121
    %v188 = vpack.c.b16 %v180, %v172
    %v189 = vpack.c.b16 %v181, %v173
    %v190 = vpack.c.b16 %v182, %v174
    %v191 = vpack.c.b16 %v183, %v175
    %v192 = vpack.c.b16 %v184, %v176
    %v193 = vpack.c.b16 %v185, %v177
    %v194 = vpack.c.b16 %v186, %v178
    %v195 = vpack.c.b16 %v187, %v179
    %vm196 = vcmask 97280
    %v198 = vsel %vm196, %v113, 0
    %vm200 = vcmask 1045504
    %v202 = vsel %vm200, %v188, 0
    %v205 = vsel %vm200, %v189, 0
    %v208 = vsel %vm200, %v190, 0
    %v211 = vsel %vm200, %v191, 0
    %v214 = vsel %vm200, %v192, 0
    %v217 = vsel %vm200, %v193, 0
    %v220 = vsel %vm200, %v194, 0
    %v223 = vsel %vm200, %v195, 0
    %225 = vmatprep.subr.bf16.mxu0 0
    %226 = vmatpush1.bf16.msra.mxu0 0
    %227 = vmatprep.subr.bf16.mxu0 0
    %228 = vmatpush1.bf16.msra.mxu0 0
    %229 = vmatprep.subr.bf16.mxu0 0
    %230 = vmatpush1.bf16.msra.mxu0 0
    %231 = vmatprep.subr.bf16.mxu0 0
    %232 = vmatpush1.bf16.msra.mxu0 0
    %233 = vmatprep.subr.bf16.mxu0 0
    %234 = vmatpush1.bf16.msra.mxu0 0
    %235 = vmatprep.subr.bf16.mxu0 0
    %236 = vmatpush1.bf16.msra.mxu0 0
    %237 = vmatprep.subr.bf16.mxu0 0
    %238 = vmatpush1.bf16.msra.mxu0 0
    %239 = vmatprep.subr.bf16.mxu0 %v205
    %240 = vmatpush1.bf16.msra.mxu0 %v202
    %241 = vmatprep.subr.bf16.mxu0 0
    %242 = vmatpush2.bf16.msra.mxu0 0
    %243 = vmatprep.subr.bf16.mxu0 0
    %244 = vmatpush2.bf16.msra.mxu0 0
    %245 = vmatprep.subr.bf16.mxu0 0
    %246 = vmatpush2.bf16.msra.mxu0 0
    %247 = vmatprep.subr.bf16.mxu0 0
    %248 = vmatpush2.bf16.msra.mxu0 0
    %249 = vmatprep.subr.bf16.mxu0 0
    %250 = vmatpush2.bf16.msra.mxu0 0
    %251 = vmatprep.subr.bf16.mxu0 0
    %252 = vmatpush2.bf16.msra.mxu0 0
    %253 = vmatprep.subr.bf16.mxu0 0
    %254 = vmatpush2.bf16.msra.mxu0 0
    %255 = vmatprep.subr.bf16.mxu0 0
    %256 = vmatpush2.bf16.msra.mxu0 0
    %257 = vmatprep.mubr.bf16.mxu0 0
    %258 = vmatmul.mubr.bf16.gmra.mxu0 %v198
    %v259 = vpop.f32.mrf.mxu0
    %v260 = vadd.f32 %v127, %v259
    %v261 = vpop.f32.mrf.mxu0
    %v262 = vadd.f32 %v131, %v261
    %v263 = vpop.f32.mrf.mxu0
    %v264 = vpop.f32.mrf.mxu0
    %265 = vdwg.mxu0
    %266 = vmatprep.subr.bf16.mxu0 0
    %267 = vmatpush1.bf16.msra.mxu0 0
    %268 = vmatprep.subr.bf16.mxu0 0
    %269 = vmatpush1.bf16.msra.mxu0 0
    %270 = vmatprep.subr.bf16.mxu0 0
    %271 = vmatpush1.bf16.msra.mxu0 0
    %272 = vmatprep.subr.bf16.mxu0 0
    %273 = vmatpush1.bf16.msra.mxu0 0
    %274 = vmatprep.subr.bf16.mxu0 0
    %275 = vmatpush1.bf16.msra.mxu0 0
    %276 = vmatprep.subr.bf16.mxu0 0
    %277 = vmatpush1.bf16.msra.mxu0 0
    %278 = vmatprep.subr.bf16.mxu0 0
    %279 = vmatpush1.bf16.msra.mxu0 0
    %280 = vmatprep.subr.bf16.mxu0 %v211
    %281 = vmatpush1.bf16.msra.mxu0 %v208
    %282 = vmatprep.subr.bf16.mxu0 0
    %283 = vmatpush2.bf16.msra.mxu0 0
    %284 = vmatprep.subr.bf16.mxu0 0
    %285 = vmatpush2.bf16.msra.mxu0 0
    %286 = vmatprep.subr.bf16.mxu0 0
    %287 = vmatpush2.bf16.msra.mxu0 0
    %288 = vmatprep.subr.bf16.mxu0 0
    %289 = vmatpush2.bf16.msra.mxu0 0
    %290 = vmatprep.subr.bf16.mxu0 0
    %291 = vmatpush2.bf16.msra.mxu0 0
    %292 = vmatprep.subr.bf16.mxu0 0
    %293 = vmatpush2.bf16.msra.mxu0 0
    %294 = vmatprep.subr.bf16.mxu0 0
    %295 = vmatpush2.bf16.msra.mxu0 0
    %296 = vmatprep.subr.bf16.mxu0 0
    %297 = vmatpush2.bf16.msra.mxu0 0
    %298 = vmatprep.mubr.bf16.mxu0 0
    %299 = vmatmul.mubr.bf16.gmra.mxu0 %v198
    %v300 = vpop.f32.mrf.mxu0
    %v301 = vadd.f32 %v135, %v300
    %v302 = vpop.f32.mrf.mxu0
    %v303 = vadd.f32 %v139, %v302
    %v304 = vpop.f32.mrf.mxu0
    %v305 = vpop.f32.mrf.mxu0
    %306 = vdwg.mxu0
    %307 = vmatprep.subr.bf16.mxu0 0
    %308 = vmatpush1.bf16.msra.mxu0 0
    %309 = vmatprep.subr.bf16.mxu0 0
    %310 = vmatpush1.bf16.msra.mxu0 0
    %311 = vmatprep.subr.bf16.mxu0 0
    %312 = vmatpush1.bf16.msra.mxu0 0
    %313 = vmatprep.subr.bf16.mxu0 0
    %314 = vmatpush1.bf16.msra.mxu0 0
    %315 = vmatprep.subr.bf16.mxu0 0
    %316 = vmatpush1.bf16.msra.mxu0 0
    %317 = vmatprep.subr.bf16.mxu0 0
    %318 = vmatpush1.bf16.msra.mxu0 0
    %319 = vmatprep.subr.bf16.mxu0 0
    %320 = vmatpush1.bf16.msra.mxu0 0
    %321 = vmatprep.subr.bf16.mxu0 %v217
    %322 = vmatpush1.bf16.msra.mxu0 %v214
    %323 = vmatprep.subr.bf16.mxu0 0
    %324 = vmatpush2.bf16.msra.mxu0 0
    %325 = vmatprep.subr.bf16.mxu0 0
    %326 = vmatpush2.bf16.msra.mxu0 0
    %327 = vmatprep.subr.bf16.mxu0 0
    %328 = vmatpush2.bf16.msra.mxu0 0
    %329 = vmatprep.subr.bf16.mxu0 0
    %330 = vmatpush2.bf16.msra.mxu0 0
    %331 = vmatprep.subr.bf16.mxu0 0
    %332 = vmatpush2.bf16.msra.mxu0 0
    %333 = vmatprep.subr.bf16.mxu0 0
    %334 = vmatpush2.bf16.msra.mxu0 0
    %335 = vmatprep.subr.bf16.mxu0 0
    %336 = vmatpush2.bf16.msra.mxu0 0
    %337 = vmatprep.subr.bf16.mxu0 0
    %338 = vmatpush2.bf16.msra.mxu0 0
    %339 = vmatprep.mubr.bf16.mxu0 0
    %340 = vmatmul.mubr.bf16.gmra.mxu0 %v198
    %v341 = vpop.f32.mrf.mxu0
    %v342 = vadd.f32 %v143, %v341
    %v343 = vpop.f32.mrf.mxu0
    %v344 = vadd.f32 %v147, %v343
    %v345 = vpop.f32.mrf.mxu0
    %v346 = vpop.f32.mrf.mxu0
    %347 = vdwg.mxu0
    %348 = vmatprep.subr.bf16.mxu0 0
    %349 = vmatpush1.bf16.msra.mxu0 0
    %350 = vmatprep.subr.bf16.mxu0 0
    %351 = vmatpush1.bf16.msra.mxu0 0
    %352 = vmatprep.subr.bf16.mxu0 0
    %353 = vmatpush1.bf16.msra.mxu0 0
    %354 = vmatprep.subr.bf16.mxu0 0
    %355 = vmatpush1.bf16.msra.mxu0 0
    %356 = vmatprep.subr.bf16.mxu0 0
    %357 = vmatpush1.bf16.msra.mxu0 0
    %358 = vmatprep.subr.bf16.mxu0 0
    %359 = vmatpush1.bf16.msra.mxu0 0
    %360 = vmatprep.subr.bf16.mxu0 0
    %361 = vmatpush1.bf16.msra.mxu0 0
    %362 = vmatprep.subr.bf16.mxu0 %v223
    %363 = vmatpush1.bf16.msra.mxu0 %v220
    %364 = vmatprep.subr.bf16.mxu0 0
    %365 = vmatpush2.bf16.msra.mxu0 0
    %366 = vmatprep.subr.bf16.mxu0 0
    %367 = vmatpush2.bf16.msra.mxu0 0
    %368 = vmatprep.subr.bf16.mxu0 0
    %369 = vmatpush2.bf16.msra.mxu0 0
    %370 = vmatprep.subr.bf16.mxu0 0
    %371 = vmatpush2.bf16.msra.mxu0 0
    %372 = vmatprep.subr.bf16.mxu0 0
    %373 = vmatpush2.bf16.msra.mxu0 0
    %374 = vmatprep.subr.bf16.mxu0 0
    %375 = vmatpush2.bf16.msra.mxu0 0
    %376 = vmatprep.subr.bf16.mxu0 0
    %377 = vmatpush2.bf16.msra.mxu0 0
    %378 = vmatprep.subr.bf16.mxu0 0
    %379 = vmatpush2.bf16.msra.mxu0 0
    %380 = vmatprep.mubr.bf16.mxu0 0
    %381 = vmatmul.mubr.bf16.gmra.mxu0 %v198
    %v382 = vpop.f32.mrf.mxu0
    %v383 = vadd.f32 %v151, %v382
    %v384 = vpop.f32.mrf.mxu0
    %v385 = vadd.f32 %v155, %v384
    %v386 = vpop.f32.mrf.mxu0
    %v387 = vpop.f32.mrf.mxu0
    %388 = vdwg.mxu0
    %v389 = vpack.c.bf16 %v260, %v260
    %v390 = vpack.c.bf16 %v262, %v262
    %v391 = vpack.c.bf16 %v301, %v301
    %v392 = vpack.c.bf16 %v303, %v303
    %v393 = vpack.c.bf16 %v342, %v342
    %v394 = vpack.c.bf16 %v344, %v344
    %v395 = vpack.c.bf16 %v383, %v383
    %v396 = vpack.c.bf16 %v385, %v385
    %v397 = vld [vmem:[#allocation8] sm:$0xff]
    %v398 = vld [vmem:[#allocation8 + $0x8] sm:$0xff]
    %v399 = vld [vmem:[#allocation8 + $0x10] sm:$0xff]
    %v400 = vld [vmem:[#allocation8 + $0x18] sm:$0xff]
    %v401 = vld [vmem:[#allocation8 + $0x20] sm:$0xff]
    %v402 = vld [vmem:[#allocation8 + $0x28] sm:$0xff]
    %v403 = vld [vmem:[#allocation8 + $0x30] sm:$0xff]
    %v404 = vld [vmem:[#allocation8 + $0x38] sm:$0xff]
    %v405 = vld [vmem:[#allocation8 + $0x40] sm:$0xff]
    %v406 = vld [vmem:[#allocation8 + $0x48] sm:$0xff]
    %v407 = vld [vmem:[#allocation8 + $0x50] sm:$0xff]
    %v408 = vld [vmem:[#allocation8 + $0x58] sm:$0xff]
    %v409 = vld [vmem:[#allocation8 + $0x60] sm:$0xff]
    %v410 = vld [vmem:[#allocation8 + $0x68] sm:$0xff]
    %v411 = vld [vmem:[#allocation8 + $0x70] sm:$0xff]
    %v412 = vld [vmem:[#allocation8 + $0x78] sm:$0xff]
    %v413 = vld [vmem:[#allocation8 + $0x80] sm:$0xff]
    %v414 = vld [vmem:[#allocation8 + $0x88] sm:$0xff]
    %v415 = vld [vmem:[#allocation8 + $0x90] sm:$0xff]
    %v416 = vld [vmem:[#allocation8 + $0x98] sm:$0xff]
    %v417 = vld [vmem:[#allocation8 + $0xa0] sm:$0xff]
    %v418 = vld [vmem:[#allocation8 + $0xa8] sm:$0xff]
    %v419 = vld [vmem:[#allocation8 + $0xb0] sm:$0xff]
    %v420 = vld [vmem:[#allocation8 + $0xb8] sm:$0xff]
    %v421 = vld [vmem:[#allocation8 + $0xc0] sm:$0xff]
    %v422 = vld [vmem:[#allocation8 + $0xc8] sm:$0xff]
    %v423 = vld [vmem:[#allocation8 + $0xd0] sm:$0xff]
    %v424 = vld [vmem:[#allocation8 + $0xd8] sm:$0xff]
    %v425 = vld [vmem:[#allocation8 + $0xe0] sm:$0xff]
    %v426 = vld [vmem:[#allocation8 + $0xe8] sm:$0xff]
    %v427 = vld [vmem:[#allocation8 + $0xf0] sm:$0xff]
    %v428 = vld [vmem:[#allocation8 + $0xf8] sm:$0xff]
    %v429 = vld [vmem:[#allocation8 + $0x100] sm:$0xff]
    %v430 = vld [vmem:[#allocation8 + $0x108] sm:$0xff]
    %v431 = vld [vmem:[#allocation8 + $0x110] sm:$0xff]
    %v432 = vld [vmem:[#allocation8 + $0x118] sm:$0xff]
    %v433 = vld [vmem:[#allocation8 + $0x120] sm:$0xff]
    %v434 = vld [vmem:[#allocation8 + $0x128] sm:$0xff]
    %v435 = vld [vmem:[#allocation8 + $0x130] sm:$0xff]
    %v436 = vld [vmem:[#allocation8 + $0x138] sm:$0xff]
    %v437 = vld [vmem:[#allocation8 + $0x140] sm:$0xff]
    %v438 = vld [vmem:[#allocation8 + $0x148] sm:$0xff]
    %v439 = vld [vmem:[#allocation8 + $0x150] sm:$0xff]
    %v440 = vld [vmem:[#allocation8 + $0x158] sm:$0xff]
    %v441 = vld [vmem:[#allocation8 + $0x160] sm:$0xff]
    %v442 = vld [vmem:[#allocation8 + $0x168] sm:$0xff]
    %v443 = vld [vmem:[#allocation8 + $0x170] sm:$0xff]
    %v444 = vld [vmem:[#allocation8 + $0x178] sm:$0xff]
    %v445 = vld [vmem:[#allocation8 + $0x180] sm:$0xff]
    %v446 = vld [vmem:[#allocation8 + $0x188] sm:$0xff]
    %v447 = vld [vmem:[#allocation8 + $0x190] sm:$0xff]
    %v448 = vld [vmem:[#allocation8 + $0x198] sm:$0xff]
    %v449 = vld [vmem:[#allocation8 + $0x1a0] sm:$0xff]
    %v450 = vld [vmem:[#allocation8 + $0x1a8] sm:$0xff]
    %v451 = vld [vmem:[#allocation8 + $0x1b0] sm:$0xff]
    %v452 = vld [vmem:[#allocation8 + $0x1b8] sm:$0xff]
    %v453 = vld [vmem:[#allocation8 + $0x1c0] sm:$0xff]
    %v454 = vld [vmem:[#allocation8 + $0x1c8] sm:$0xff]
    %v455 = vld [vmem:[#allocation8 + $0x1d0] sm:$0xff]
    %v456 = vld [vmem:[#allocation8 + $0x1d8] sm:$0xff]
    %v457 = vld [vmem:[#allocation8 + $0x1e0] sm:$0xff]
    %v458 = vld [vmem:[#allocation8 + $0x1e8] sm:$0xff]
    %v459 = vld [vmem:[#allocation8 + $0x1f0] sm:$0xff]
    %v460 = vld [vmem:[#allocation8 + $0x1f8] sm:$0xff]
    %v461 = vld [vmem:[#allocation8 + $0x200] sm:$0xff]
    %v462 = vld [vmem:[#allocation8 + $0x208] sm:$0xff]
    %v463 = vld [vmem:[#allocation8 + $0x210] sm:$0xff]
    %v464 = vld [vmem:[#allocation8 + $0x218] sm:$0xff]
    %v465 = vld [vmem:[#allocation8 + $0x220] sm:$0xff]
    %v466 = vld [vmem:[#allocation8 + $0x228] sm:$0xff]
    %v467 = vld [vmem:[#allocation8 + $0x230] sm:$0xff]
    %v468 = vld [vmem:[#allocation8 + $0x238] sm:$0xff]
    %v469 = vld [vmem:[#allocation8 + $0x240] sm:$0xff]
    %v470 = vld [vmem:[#allocation8 + $0x248] sm:$0xff]
    %v471 = vld [vmem:[#allocation8 + $0x250] sm:$0xff]
    %v472 = vld [vmem:[#allocation8 + $0x258] sm:$0xff]
    %v473 = vld [vmem:[#allocation8 + $0x260] sm:$0xff]
    %v474 = vld [vmem:[#allocation8 + $0x268] sm:$0xff]
    %v475 = vld [vmem:[#allocation8 + $0x270] sm:$0xff]
    %v476 = vld [vmem:[#allocation8 + $0x278] sm:$0xff]
    %v477 = vld [vmem:[#allocation8 + $0x280] sm:$0xff]
    %v478 = vld [vmem:[#allocation8 + $0x288] sm:$0xff]
    %v479 = vld [vmem:[#allocation8 + $0x290] sm:$0xff]
    %v480 = vld [vmem:[#allocation8 + $0x298] sm:$0xff]
    %v481 = vld [vmem:[#allocation8 + $0x2a0] sm:$0xff]
    %v482 = vld [vmem:[#allocation8 + $0x2a8] sm:$0xff]
    %v483 = vld [vmem:[#allocation8 + $0x2b0] sm:$0xff]
    %v484 = vld [vmem:[#allocation8 + $0x2b8] sm:$0xff]
    %v485 = vld [vmem:[#allocation8 + $0x2c0] sm:$0xff]
    %v486 = vld [vmem:[#allocation8 + $0x2c8] sm:$0xff]
    %v487 = vld [vmem:[#allocation8 + $0x2d0] sm:$0xff]
    %v488 = vld [vmem:[#allocation8 + $0x2d8] sm:$0xff]
    %v489 = vld [vmem:[#allocation8 + $0x2e0] sm:$0xff]
    %v490 = vld [vmem:[#allocation8 + $0x2e8] sm:$0xff]
    %v491 = vld [vmem:[#allocation8 + $0x2f0] sm:$0xff]
    %v492 = vld [vmem:[#allocation8 + $0x2f8] sm:$0xff]
    %v493 = vld [vmem:[#allocation8 + $0x300] sm:$0xff]
    %v494 = vld [vmem:[#allocation8 + $0x308] sm:$0xff]
    %v495 = vld [vmem:[#allocation8 + $0x310] sm:$0xff]
    %v496 = vld [vmem:[#allocation8 + $0x318] sm:$0xff]
    %v497 = vld [vmem:[#allocation8 + $0x320] sm:$0xff]
    %v498 = vld [vmem:[#allocation8 + $0x328] sm:$0xff]
    %v499 = vld [vmem:[#allocation8 + $0x330] sm:$0xff]
    %v500 = vld [vmem:[#allocation8 + $0x338] sm:$0xff]
    %v501 = vld [vmem:[#allocation8 + $0x340] sm:$0xff]
    %v502 = vld [vmem:[#allocation8 + $0x348] sm:$0xff]
    %v503 = vld [vmem:[#allocation8 + $0x350] sm:$0xff]
    %v504 = vld [vmem:[#allocation8 + $0x358] sm:$0xff]
    %v505 = vld [vmem:[#allocation8 + $0x360] sm:$0xff]
    %v506 = vld [vmem:[#allocation8 + $0x368] sm:$0xff]
    %v507 = vld [vmem:[#allocation8 + $0x370] sm:$0xff]
    %v508 = vld [vmem:[#allocation8 + $0x378] sm:$0xff]
    %v509 = vld [vmem:[#allocation8 + $0x380] sm:$0xff]
    %v510 = vld [vmem:[#allocation8 + $0x388] sm:$0xff]
    %v511 = vld [vmem:[#allocation8 + $0x390] sm:$0xff]
    %v512 = vld [vmem:[#allocation8 + $0x398] sm:$0xff]
    %v513 = vld [vmem:[#allocation8 + $0x3a0] sm:$0xff]
    %v514 = vld [vmem:[#allocation8 + $0x3a8] sm:$0xff]
    %v515 = vld [vmem:[#allocation8 + $0x3b0] sm:$0xff]
    %v516 = vld [vmem:[#allocation8 + $0x3b8] sm:$0xff]
    %v517 = vld [vmem:[#allocation8 + $0x3c0] sm:$0xff]
    %v518 = vld [vmem:[#allocation8 + $0x3c8] sm:$0xff]
    %v519 = vld [vmem:[#allocation8 + $0x3d0] sm:$0xff]
    %v520 = vld [vmem:[#allocation8 + $0x3d8] sm:$0xff]
    %v521 = vld [vmem:[#allocation8 + $0x3e0] sm:$0xff]
    %v522 = vld [vmem:[#allocation8 + $0x3e8] sm:$0xff]
    %v523 = vld [vmem:[#allocation8 + $0x3f0] sm:$0xff]
    %v524 = vld [vmem:[#allocation8 + $0x3f8] sm:$0xff]
    %v525 = vld [vmem:[#allocation8 + $0x400] sm:$0xff]
    %v526 = vld [vmem:[#allocation8 + $0x408] sm:$0xff]
    %v527 = vld [vmem:[#allocation8 + $0x410] sm:$0xff]
    %v528 = vld [vmem:[#allocation8 + $0x418] sm:$0xff]
    %v529 = vld [vmem:[#allocation8 + $0x420] sm:$0xff]
    %v530 = vld [vmem:[#allocation8 + $0x428] sm:$0xff]
    %v531 = vld [vmem:[#allocation8 + $0x430] sm:$0xff]
    %v532 = vld [vmem:[#allocation8 + $0x438] sm:$0xff]
    %v533 = vld [vmem:[#allocation8 + $0x440] sm:$0xff]
    %v534 = vld [vmem:[#allocation8 + $0x448] sm:$0xff]
    %v535 = vld [vmem:[#allocation8 + $0x450] sm:$0xff]
    %v536 = vld [vmem:[#allocation8 + $0x458] sm:$0xff]
    %v537 = vld [vmem:[#allocation8 + $0x460] sm:$0xff]
    %v538 = vld [vmem:[#allocation8 + $0x468] sm:$0xff]
    %v539 = vld [vmem:[#allocation8 + $0x470] sm:$0xff]
    %v540 = vld [vmem:[#allocation8 + $0x478] sm:$0xff]
    %v541 = vld [vmem:[#allocation8 + $0x480] sm:$0xff]
    %v542 = vld [vmem:[#allocation8 + $0x488] sm:$0xff]
    %v543 = vld [vmem:[#allocation8 + $0x490] sm:$0xff]
    %v544 = vld [vmem:[#allocation8 + $0x498] sm:$0xff]
    %v545 = vld [vmem:[#allocation8 + $0x4a0] sm:$0xff]
    %v546 = vld [vmem:[#allocation8 + $0x4a8] sm:$0xff]
    %v547 = vld [vmem:[#allocation8 + $0x4b0] sm:$0xff]
    %v548 = vld [vmem:[#allocation8 + $0x4b8] sm:$0xff]
    %v549 = vld [vmem:[#allocation8 + $0x4c0] sm:$0xff]
    %v550 = vld [vmem:[#allocation8 + $0x4c8] sm:$0xff]
    %v551 = vld [vmem:[#allocation8 + $0x4d0] sm:$0xff]
    %v552 = vld [vmem:[#allocation8 + $0x4d8] sm:$0xff]
    %v553 = vld [vmem:[#allocation8 + $0x4e0] sm:$0xff]
    %v554 = vld [vmem:[#allocation8 + $0x4e8] sm:$0xff]
    %v555 = vld [vmem:[#allocation8 + $0x4f0] sm:$0xff]
    %v556 = vld [vmem:[#allocation8 + $0x4f8] sm:$0xff]
    %v557 = vld [vmem:[#allocation8 + $0x500] sm:$0xff]
    %v558 = vld [vmem:[#allocation8 + $0x508] sm:$0xff]
    %v559 = vld [vmem:[#allocation8 + $0x510] sm:$0xff]
    %v560 = vld [vmem:[#allocation8 + $0x518] sm:$0xff]
    %v561 = vld [vmem:[#allocation8 + $0x520] sm:$0xff]
    %v562 = vld [vmem:[#allocation8 + $0x528] sm:$0xff]
    %v563 = vld [vmem:[#allocation8 + $0x530] sm:$0xff]
    %v564 = vld [vmem:[#allocation8 + $0x538] sm:$0xff]
    %v565 = vld [vmem:[#allocation8 + $0x540] sm:$0xff]
    %v566 = vld [vmem:[#allocation8 + $0x548] sm:$0xff]
    %v567 = vld [vmem:[#allocation8 + $0x550] sm:$0xff]
    %v568 = vld [vmem:[#allocation8 + $0x558] sm:$0xff]
    %v569 = vld [vmem:[#allocation8 + $0x560] sm:$0xff]
    %v570 = vld [vmem:[#allocation8 + $0x568] sm:$0xff]
    %v571 = vld [vmem:[#allocation8 + $0x570] sm:$0xff]
    %v572 = vld [vmem:[#allocation8 + $0x578] sm:$0xff]
    %v573 = vld [vmem:[#allocation8 + $0x580] sm:$0xff]
    %v574 = vld [vmem:[#allocation8 + $0x588] sm:$0xff]
    %v575 = vld [vmem:[#allocation8 + $0x590] sm:$0xff]
    %v576 = vld [vmem:[#allocation8 + $0x598] sm:$0xff]
    %v577 = vld [vmem:[#allocation8 + $0x5a0] sm:$0xff]
    %v578 = vld [vmem:[#allocation8 + $0x5a8] sm:$0xff]
    %v579 = vld [vmem:[#allocation8 + $0x5b0] sm:$0xff]
    %v580 = vld [vmem:[#allocation8 + $0x5b8] sm:$0xff]
    %v581 = vld [vmem:[#allocation8 + $0x5c0] sm:$0xff]
    %v582 = vld [vmem:[#allocation8 + $0x5c8] sm:$0xff]
    %v583 = vld [vmem:[#allocation8 + $0x5d0] sm:$0xff]
    %v584 = vld [vmem:[#allocation8 + $0x5d8] sm:$0xff]
    %v585 = vld [vmem:[#allocation8 + $0x5e0] sm:$0xff]
    %v586 = vld [vmem:[#allocation8 + $0x5e8] sm:$0xff]
    %v587 = vld [vmem:[#allocation8 + $0x5f0] sm:$0xff]
    %v588 = vld [vmem:[#allocation8 + $0x5f8] sm:$0xff]
    %v589 = vld [vmem:[#allocation8 + $0x600] sm:$0xff]
    %v590 = vld [vmem:[#allocation8 + $0x608] sm:$0xff]
    %v591 = vld [vmem:[#allocation8 + $0x610] sm:$0xff]
    %v592 = vld [vmem:[#allocation8 + $0x618] sm:$0xff]
    %v593 = vld [vmem:[#allocation8 + $0x620] sm:$0xff]
    %v594 = vld [vmem:[#allocation8 + $0x628] sm:$0xff]
    %v595 = vld [vmem:[#allocation8 + $0x630] sm:$0xff]
    %v596 = vld [vmem:[#allocation8 + $0x638] sm:$0xff]
    %v597 = vld [vmem:[#allocation8 + $0x640] sm:$0xff]
    %v598 = vld [vmem:[#allocation8 + $0x648] sm:$0xff]
    %v599 = vld [vmem:[#allocation8 + $0x650] sm:$0xff]
    %v600 = vld [vmem:[#allocation8 + $0x658] sm:$0xff]
    %v601 = vld [vmem:[#allocation8 + $0x660] sm:$0xff]
    %v602 = vld [vmem:[#allocation8 + $0x668] sm:$0xff]
    %v603 = vld [vmem:[#allocation8 + $0x670] sm:$0xff]
    %v604 = vld [vmem:[#allocation8 + $0x678] sm:$0xff]
    %v605 = vld [vmem:[#allocation8 + $0x680] sm:$0xff]
    %v606 = vld [vmem:[#allocation8 + $0x688] sm:$0xff]
    %v607 = vld [vmem:[#allocation8 + $0x690] sm:$0xff]
    %v608 = vld [vmem:[#allocation8 + $0x698] sm:$0xff]
    %v609 = vld [vmem:[#allocation8 + $0x6a0] sm:$0xff]
    %v610 = vld [vmem:[#allocation8 + $0x6a8] sm:$0xff]
    %v611 = vld [vmem:[#allocation8 + $0x6b0] sm:$0xff]
    %v612 = vld [vmem:[#allocation8 + $0x6b8] sm:$0xff]
    %v613 = vld [vmem:[#allocation8 + $0x6c0] sm:$0xff]
    %v614 = vld [vmem:[#allocation8 + $0x6c8] sm:$0xff]
    %v615 = vld [vmem:[#allocation8 + $0x6d0] sm:$0xff]
    %v616 = vld [vmem:[#allocation8 + $0x6d8] sm:$0xff]
    %v617 = vld [vmem:[#allocation8 + $0x6e0] sm:$0xff]
    %v618 = vld [vmem:[#allocation8 + $0x6e8] sm:$0xff]
    %v619 = vld [vmem:[#allocation8 + $0x6f0] sm:$0xff]
    %v620 = vld [vmem:[#allocation8 + $0x6f8] sm:$0xff]
    %v621 = vld [vmem:[#allocation8 + $0x700] sm:$0xff]
    %v622 = vld [vmem:[#allocation8 + $0x708] sm:$0xff]
    %v623 = vld [vmem:[#allocation8 + $0x710] sm:$0xff]
    %v624 = vld [vmem:[#allocation8 + $0x718] sm:$0xff]
    %v625 = vld [vmem:[#allocation8 + $0x720] sm:$0xff]
    %v626 = vld [vmem:[#allocation8 + $0x728] sm:$0xff]
    %v627 = vld [vmem:[#allocation8 + $0x730] sm:$0xff]
    %v628 = vld [vmem:[#allocation8 + $0x738] sm:$0xff]
    %v629 = vld [vmem:[#allocation8 + $0x740] sm:$0xff]
    %v630 = vld [vmem:[#allocation8 + $0x748] sm:$0xff]
    %v631 = vld [vmem:[#allocation8 + $0x750] sm:$0xff]
    %v632 = vld [vmem:[#allocation8 + $0x758] sm:$0xff]
    %v633 = vld [vmem:[#allocation8 + $0x760] sm:$0xff]
    %v634 = vld [vmem:[#allocation8 + $0x768] sm:$0xff]
    %v635 = vld [vmem:[#allocation8 + $0x770] sm:$0xff]
    %v636 = vld [vmem:[#allocation8 + $0x778] sm:$0xff]
    %v637 = vld [vmem:[#allocation8 + $0x780] sm:$0xff]
    %v638 = vld [vmem:[#allocation8 + $0x788] sm:$0xff]
    %v639 = vld [vmem:[#allocation8 + $0x790] sm:$0xff]
    %v640 = vld [vmem:[#allocation8 + $0x798] sm:$0xff]
    %v641 = vld [vmem:[#allocation8 + $0x7a0] sm:$0xff]
    %v642 = vld [vmem:[#allocation8 + $0x7a8] sm:$0xff]
    %v643 = vld [vmem:[#allocation8 + $0x7b0] sm:$0xff]
    %v644 = vld [vmem:[#allocation8 + $0x7b8] sm:$0xff]
    %v645 = vld [vmem:[#allocation8 + $0x7c0] sm:$0xff]
    %v646 = vld [vmem:[#allocation8 + $0x7c8] sm:$0xff]
    %v647 = vld [vmem:[#allocation8 + $0x7d0] sm:$0xff]
    %v648 = vld [vmem:[#allocation8 + $0x7d8] sm:$0xff]
    %v649 = vld [vmem:[#allocation8 + $0x7e0] sm:$0xff]
    %v650 = vld [vmem:[#allocation8 + $0x7e8] sm:$0xff]
    %v651 = vld [vmem:[#allocation8 + $0x7f0] sm:$0xff]
    %v652 = vld [vmem:[#allocation8 + $0x7f8] sm:$0xff]
    %v653 = vld [vmem:[%s4] sm:$0xf]
    %v655 = vlaneseq
    %v656 = vshrl.u32 %v655, 7
    %v657 = vsub.s32 0, %v656
    %v658 = vrot.slane %v653, %v657
    %v659 = vlaneseq
    %v660 = vshrl.u32 %v659, 7
    %v661 = vsub.s32 1, %v660
    %v662 = vrot.slane %v653, %v661
    %v663 = vlaneseq
    %v664 = vshrl.u32 %v663, 7
    %v665 = vsub.s32 2, %v664
    %v666 = vrot.slane %v653, %v665
    %v667 = vlaneseq
    %v668 = vshrl.u32 %v667, 7
    %v669 = vsub.s32 3, %v668
    %v670 = vrot.slane %v653, %v669
    %v931 = vunpack.c.l.b16 %v397
    %v932 = vunpack.c.h.b16 %v397
    %v933 = vunpack.c.l.b16 %v398
    %v934 = vunpack.c.h.b16 %v398
    %v935 = vunpack.c.l.b16 %v399
    %v936 = vunpack.c.h.b16 %v399
    %v937 = vunpack.c.l.b16 %v400
    %v938 = vunpack.c.h.b16 %v400
    %v939 = vunpack.c.l.b16 %v401
    %v940 = vunpack.c.h.b16 %v401
    %v941 = vunpack.c.l.b16 %v402
    %v942 = vunpack.c.h.b16 %v402
    %v943 = vunpack.c.l.b16 %v403
    %v944 = vunpack.c.h.b16 %v403
    %v945 = vunpack.c.l.b16 %v404
    %v946 = vunpack.c.h.b16 %v404
    %v947 = vunpack.c.l.b16 %v405
    %v948 = vunpack.c.h.b16 %v405
    %v949 = vunpack.c.l.b16 %v406
    %v950 = vunpack.c.h.b16 %v406
    %v951 = vunpack.c.l.b16 %v407
    %v952 = vunpack.c.h.b16 %v407
    %v953 = vunpack.c.l.b16 %v408
    %v954 = vunpack.c.h.b16 %v408
    %v955 = vunpack.c.l.b16 %v409
    %v956 = vunpack.c.h.b16 %v409
    %v957 = vunpack.c.l.b16 %v410
    %v958 = vunpack.c.h.b16 %v410
    %v959 = vunpack.c.l.b16 %v411
    %v960 = vunpack.c.h.b16 %v411
    %v961 = vunpack.c.l.b16 %v412
    %v962 = vunpack.c.h.b16 %v412
    %v963 = vunpack.c.l.b16 %v413
    %v964 = vunpack.c.h.b16 %v413
    %v965 = vunpack.c.l.b16 %v414
    %v966 = vunpack.c.h.b16 %v414
    %v967 = vunpack.c.l.b16 %v415
    %v968 = vunpack.c.h.b16 %v415
    %v969 = vunpack.c.l.b16 %v416
    %v970 = vunpack.c.h.b16 %v416
    %v971 = vunpack.c.l.b16 %v417
    %v972 = vunpack.c.h.b16 %v417
    %v973 = vunpack.c.l.b16 %v418
    %v974 = vunpack.c.h.b16 %v418
    %v975 = vunpack.c.l.b16 %v419
    %v976 = vunpack.c.h.b16 %v419
    %v977 = vunpack.c.l.b16 %v420
    %v978 = vunpack.c.h.b16 %v420
    %v979 = vunpack.c.l.b16 %v421
    %v980 = vunpack.c.h.b16 %v421
    %v981 = vunpack.c.l.b16 %v422
    %v982 = vunpack.c.h.b16 %v422
    %v983 = vunpack.c.l.b16 %v423
    %v984 = vunpack.c.h.b16 %v423
    %v985 = vunpack.c.l.b16 %v424
    %v986 = vunpack.c.h.b16 %v424
    %v987 = vunpack.c.l.b16 %v425
    %v988 = vunpack.c.h.b16 %v425
    %v989 = vunpack.c.l.b16 %v426
    %v990 = vunpack.c.h.b16 %v426
    %v991 = vunpack.c.l.b16 %v427
    %v992 = vunpack.c.h.b16 %v427
    %v993 = vunpack.c.l.b16 %v428
    %v994 = vunpack.c.h.b16 %v428
    %v995 = vunpack.c.l.b16 %v429
    %v996 = vunpack.c.h.b16 %v429
    %v997 = vunpack.c.l.b16 %v430
    %v998 = vunpack.c.h.b16 %v430
    %v999 = vunpack.c.l.b16 %v431
    %v1000 = vunpack.c.h.b16 %v431
    %v1001 = vunpack.c.l.b16 %v432
    %v1002 = vunpack.c.h.b16 %v432
    %v1003 = vunpack.c.l.b16 %v433
    %v1004 = vunpack.c.h.b16 %v433
    %v1005 = vunpack.c.l.b16 %v434
    %v1006 = vunpack.c.h.b16 %v434
    %v1007 = vunpack.c.l.b16 %v435
    %v1008 = vunpack.c.h.b16 %v435
    %v1009 = vunpack.c.l.b16 %v436
    %v1010 = vunpack.c.h.b16 %v436
    %v1011 = vunpack.c.l.b16 %v437
    %v1012 = vunpack.c.h.b16 %v437
    %v1013 = vunpack.c.l.b16 %v438
    %v1014 = vunpack.c.h.b16 %v438
    %v1015 = vunpack.c.l.b16 %v439
    %v1016 = vunpack.c.h.b16 %v439
    %v1017 = vunpack.c.l.b16 %v440
    %v1018 = vunpack.c.h.b16 %v440
    %v1019 = vunpack.c.l.b16 %v441
    %v1020 = vunpack.c.h.b16 %v441
    %v1021 = vunpack.c.l.b16 %v442
    %v1022 = vunpack.c.h.b16 %v442
    %v1023 = vunpack.c.l.b16 %v443
    %v1024 = vunpack.c.h.b16 %v443
    %v1025 = vunpack.c.l.b16 %v444
    %v1026 = vunpack.c.h.b16 %v444
    %v1027 = vunpack.c.l.b16 %v445
    %v1028 = vunpack.c.h.b16 %v445
    %v1029 = vunpack.c.l.b16 %v446
    %v1030 = vunpack.c.h.b16 %v446
    %v1031 = vunpack.c.l.b16 %v447
    %v1032 = vunpack.c.h.b16 %v447
    %v1033 = vunpack.c.l.b16 %v448
    %v1034 = vunpack.c.h.b16 %v448
    %v1035 = vunpack.c.l.b16 %v449
    %v1036 = vunpack.c.h.b16 %v449
    %v1037 = vunpack.c.l.b16 %v450
    %v1038 = vunpack.c.h.b16 %v450
    %v1039 = vunpack.c.l.b16 %v451
    %v1040 = vunpack.c.h.b16 %v451
    %v1041 = vunpack.c.l.b16 %v452
    %v1042 = vunpack.c.h.b16 %v452
    %v1043 = vunpack.c.l.b16 %v453
    %v1044 = vunpack.c.h.b16 %v453
    %v1045 = vunpack.c.l.b16 %v454
    %v1046 = vunpack.c.h.b16 %v454
    %v1047 = vunpack.c.l.b16 %v455
    %v1048 = vunpack.c.h.b16 %v455
    %v1049 = vunpack.c.l.b16 %v456
    %v1050 = vunpack.c.h.b16 %v456
    %v1051 = vunpack.c.l.b16 %v457
    %v1052 = vunpack.c.h.b16 %v457
    %v1053 = vunpack.c.l.b16 %v458
    %v1054 = vunpack.c.h.b16 %v458
    %v1055 = vunpack.c.l.b16 %v459
    %v1056 = vunpack.c.h.b16 %v459
    %v1057 = vunpack.c.l.b16 %v460
    %v1058 = vunpack.c.h.b16 %v460
    %v1059 = vunpack.c.l.b16 %v461
    %v1060 = vunpack.c.h.b16 %v461
    %v1061 = vunpack.c.l.b16 %v462
    %v1062 = vunpack.c.h.b16 %v462
    %v1063 = vunpack.c.l.b16 %v463
    %v1064 = vunpack.c.h.b16 %v463
    %v1065 = vunpack.c.l.b16 %v464
    %v1066 = vunpack.c.h.b16 %v464
    %v1067 = vunpack.c.l.b16 %v465
    %v1068 = vunpack.c.h.b16 %v465
    %v1069 = vunpack.c.l.b16 %v466
    %v1070 = vunpack.c.h.b16 %v466
    %v1071 = vunpack.c.l.b16 %v467
    %v1072 = vunpack.c.h.b16 %v467
    %v1073 = vunpack.c.l.b16 %v468
    %v1074 = vunpack.c.h.b16 %v468
    %v1075 = vunpack.c.l.b16 %v469
    %v1076 = vunpack.c.h.b16 %v469
    %v1077 = vunpack.c.l.b16 %v470
    %v1078 = vunpack.c.h.b16 %v470
    %v1079 = vunpack.c.l.b16 %v471
    %v1080 = vunpack.c.h.b16 %v471
    %v1081 = vunpack.c.l.b16 %v472
    %v1082 = vunpack.c.h.b16 %v472
    %v1083 = vunpack.c.l.b16 %v473
    %v1084 = vunpack.c.h.b16 %v473
    %v1085 = vunpack.c.l.b16 %v474
    %v1086 = vunpack.c.h.b16 %v474
    %v1087 = vunpack.c.l.b16 %v475
    %v1088 = vunpack.c.h.b16 %v475
    %v1089 = vunpack.c.l.b16 %v476
    %v1090 = vunpack.c.h.b16 %v476
    %v1091 = vunpack.c.l.b16 %v477
    %v1092 = vunpack.c.h.b16 %v477
    %v1093 = vunpack.c.l.b16 %v478
    %v1094 = vunpack.c.h.b16 %v478
    %v1095 = vunpack.c.l.b16 %v479
    %v1096 = vunpack.c.h.b16 %v479
    %v1097 = vunpack.c.l.b16 %v480
    %v1098 = vunpack.c.h.b16 %v480
    %v1099 = vunpack.c.l.b16 %v481
    %v1100 = vunpack.c.h.b16 %v481
    %v1101 = vunpack.c.l.b16 %v482
    %v1102 = vunpack.c.h.b16 %v482
    %v1103 = vunpack.c.l.b16 %v483
    %v1104 = vunpack.c.h.b16 %v483
    %v1105 = vunpack.c.l.b16 %v484
    %v1106 = vunpack.c.h.b16 %v484
    %v1107 = vunpack.c.l.b16 %v485
    %v1108 = vunpack.c.h.b16 %v485
    %v1109 = vunpack.c.l.b16 %v486
    %v1110 = vunpack.c.h.b16 %v486
    %v1111 = vunpack.c.l.b16 %v487
    %v1112 = vunpack.c.h.b16 %v487
    %v1113 = vunpack.c.l.b16 %v488
    %v1114 = vunpack.c.h.b16 %v488
    %v1115 = vunpack.c.l.b16 %v489
    %v1116 = vunpack.c.h.b16 %v489
    %v1117 = vunpack.c.l.b16 %v490
    %v1118 = vunpack.c.h.b16 %v490
    %v1119 = vunpack.c.l.b16 %v491
    %v1120 = vunpack.c.h.b16 %v491
    %v1121 = vunpack.c.l.b16 %v492
    %v1122 = vunpack.c.h.b16 %v492
    %v1123 = vunpack.c.l.b16 %v493
    %v1124 = vunpack.c.h.b16 %v493
    %v1125 = vunpack.c.l.b16 %v494
    %v1126 = vunpack.c.h.b16 %v494
    %v1127 = vunpack.c.l.b16 %v495
    %v1128 = vunpack.c.h.b16 %v495
    %v1129 = vunpack.c.l.b16 %v496
    %v1130 = vunpack.c.h.b16 %v496
    %v1131 = vunpack.c.l.b16 %v497
    %v1132 = vunpack.c.h.b16 %v497
    %v1133 = vunpack.c.l.b16 %v498
    %v1134 = vunpack.c.h.b16 %v498
    %v1135 = vunpack.c.l.b16 %v499
    %v1136 = vunpack.c.h.b16 %v499
    %v1137 = vunpack.c.l.b16 %v500
    %v1138 = vunpack.c.h.b16 %v500
    %v1139 = vunpack.c.l.b16 %v501
    %v1140 = vunpack.c.h.b16 %v501
    %v1141 = vunpack.c.l.b16 %v502
    %v1142 = vunpack.c.h.b16 %v502
    %v1143 = vunpack.c.l.b16 %v503
    %v1144 = vunpack.c.h.b16 %v503
    %v1145 = vunpack.c.l.b16 %v504
    %v1146 = vunpack.c.h.b16 %v504
    %v1147 = vunpack.c.l.b16 %v505
    %v1148 = vunpack.c.h.b16 %v505
    %v1149 = vunpack.c.l.b16 %v506
    %v1150 = vunpack.c.h.b16 %v506
    %v1151 = vunpack.c.l.b16 %v507
    %v1152 = vunpack.c.h.b16 %v507
    %v1153 = vunpack.c.l.b16 %v508
    %v1154 = vunpack.c.h.b16 %v508
    %v1155 = vunpack.c.l.b16 %v509
    %v1156 = vunpack.c.h.b16 %v509
    %v1157 = vunpack.c.l.b16 %v510
    %v1158 = vunpack.c.h.b16 %v510
    %v1159 = vunpack.c.l.b16 %v511
    %v1160 = vunpack.c.h.b16 %v511
    %v1161 = vunpack.c.l.b16 %v512
    %v1162 = vunpack.c.h.b16 %v512
    %v1163 = vunpack.c.l.b16 %v513
    %v1164 = vunpack.c.h.b16 %v513
    %v1165 = vunpack.c.l.b16 %v514
    %v1166 = vunpack.c.h.b16 %v514
    %v1167 = vunpack.c.l.b16 %v515
    %v1168 = vunpack.c.h.b16 %v515
    %v1169 = vunpack.c.l.b16 %v516
    %v1170 = vunpack.c.h.b16 %v516
    %v1171 = vunpack.c.l.b16 %v517
    %v1172 = vunpack.c.h.b16 %v517
    %v1173 = vunpack.c.l.b16 %v518
    %v1174 = vunpack.c.h.b16 %v518
    %v1175 = vunpack.c.l.b16 %v519
    %v1176 = vunpack.c.h.b16 %v519
    %v1177 = vunpack.c.l.b16 %v520
    %v1178 = vunpack.c.h.b16 %v520
    %v1179 = vunpack.c.l.b16 %v521
    %v1180 = vunpack.c.h.b16 %v521
    %v1181 = vunpack.c.l.b16 %v522
    %v1182 = vunpack.c.h.b16 %v522
    %v1183 = vunpack.c.l.b16 %v523
    %v1184 = vunpack.c.h.b16 %v523
    %v1185 = vunpack.c.l.b16 %v524
    %v1186 = vunpack.c.h.b16 %v524
    %v1187 = vunpack.c.l.b16 %v525
    %v1188 = vunpack.c.h.b16 %v525
    %v1189 = vunpack.c.l.b16 %v526
    %v1190 = vunpack.c.h.b16 %v526
    %v1191 = vunpack.c.l.b16 %v527
    %v1192 = vunpack.c.h.b16 %v527
    %v1193 = vunpack.c.l.b16 %v528
    %v1194 = vunpack.c.h.b16 %v528
    %v1195 = vunpack.c.l.b16 %v529
    %v1196 = vunpack.c.h.b16 %v529
    %v1197 = vunpack.c.l.b16 %v530
    %v1198 = vunpack.c.h.b16 %v530
    %v1199 = vunpack.c.l.b16 %v531
    %v1200 = vunpack.c.h.b16 %v531
    %v1201 = vunpack.c.l.b16 %v532
    %v1202 = vunpack.c.h.b16 %v532
    %v1203 = vunpack.c.l.b16 %v533
    %v1204 = vunpack.c.h.b16 %v533
    %v1205 = vunpack.c.l.b16 %v534
    %v1206 = vunpack.c.h.b16 %v534
    %v1207 = vunpack.c.l.b16 %v535
    %v1208 = vunpack.c.h.b16 %v535
    %v1209 = vunpack.c.l.b16 %v536
    %v1210 = vunpack.c.h.b16 %v536
    %v1211 = vunpack.c.l.b16 %v537
    %v1212 = vunpack.c.h.b16 %v537
    %v1213 = vunpack.c.l.b16 %v538
    %v1214 = vunpack.c.h.b16 %v538
    %v1215 = vunpack.c.l.b16 %v539
    %v1216 = vunpack.c.h.b16 %v539
    %v1217 = vunpack.c.l.b16 %v540
    %v1218 = vunpack.c.h.b16 %v540
    %v1219 = vunpack.c.l.b16 %v541
    %v1220 = vunpack.c.h.b16 %v541
    %v1221 = vunpack.c.l.b16 %v542
    %v1222 = vunpack.c.h.b16 %v542
    %v1223 = vunpack.c.l.b16 %v543
    %v1224 = vunpack.c.h.b16 %v543
    %v1225 = vunpack.c.l.b16 %v544
    %v1226 = vunpack.c.h.b16 %v544
    %v1227 = vunpack.c.l.b16 %v545
    %v1228 = vunpack.c.h.b16 %v545
    %v1229 = vunpack.c.l.b16 %v546
    %v1230 = vunpack.c.h.b16 %v546
    %v1231 = vunpack.c.l.b16 %v547
    %v1232 = vunpack.c.h.b16 %v547
    %v1233 = vunpack.c.l.b16 %v548
    %v1234 = vunpack.c.h.b16 %v548
    %v1235 = vunpack.c.l.b16 %v549
    %v1236 = vunpack.c.h.b16 %v549
    %v1237 = vunpack.c.l.b16 %v550
    %v1238 = vunpack.c.h.b16 %v550
    %v1239 = vunpack.c.l.b16 %v551
    %v1240 = vunpack.c.h.b16 %v551
    %v1241 = vunpack.c.l.b16 %v552
    %v1242 = vunpack.c.h.b16 %v552
    %v1243 = vunpack.c.l.b16 %v553
    %v1244 = vunpack.c.h.b16 %v553
    %v1245 = vunpack.c.l.b16 %v554
    %v1246 = vunpack.c.h.b16 %v554
    %v1247 = vunpack.c.l.b16 %v555
    %v1248 = vunpack.c.h.b16 %v555
    %v1249 = vunpack.c.l.b16 %v556
    %v1250 = vunpack.c.h.b16 %v556
    %v1251 = vunpack.c.l.b16 %v557
    %v1252 = vunpack.c.h.b16 %v557
    %v1253 = vunpack.c.l.b16 %v558
    %v1254 = vunpack.c.h.b16 %v558
    %v1255 = vunpack.c.l.b16 %v559
    %v1256 = vunpack.c.h.b16 %v559
    %v1257 = vunpack.c.l.b16 %v560
    %v1258 = vunpack.c.h.b16 %v560
    %v1259 = vunpack.c.l.b16 %v561
    %v1260 = vunpack.c.h.b16 %v561
    %v1261 = vunpack.c.l.b16 %v562
    %v1262 = vunpack.c.h.b16 %v562
    %v1263 = vunpack.c.l.b16 %v563
    %v1264 = vunpack.c.h.b16 %v563
    %v1265 = vunpack.c.l.b16 %v564
    %v1266 = vunpack.c.h.b16 %v564
    %v1267 = vunpack.c.l.b16 %v565
    %v1268 = vunpack.c.h.b16 %v565
    %v1269 = vunpack.c.l.b16 %v566
    %v1270 = vunpack.c.h.b16 %v566
    %v1271 = vunpack.c.l.b16 %v567
    %v1272 = vunpack.c.h.b16 %v567
    %v1273 = vunpack.c.l.b16 %v568
    %v1274 = vunpack.c.h.b16 %v568
    %v1275 = vunpack.c.l.b16 %v569
    %v1276 = vunpack.c.h.b16 %v569
    %v1277 = vunpack.c.l.b16 %v570
    %v1278 = vunpack.c.h.b16 %v570
    %v1279 = vunpack.c.l.b16 %v571
    %v1280 = vunpack.c.h.b16 %v571
    %v1281 = vunpack.c.l.b16 %v572
    %v1282 = vunpack.c.h.b16 %v572
    %v1283 = vunpack.c.l.b16 %v573
    %v1284 = vunpack.c.h.b16 %v573
    %v1285 = vunpack.c.l.b16 %v574
    %v1286 = vunpack.c.h.b16 %v574
    %v1287 = vunpack.c.l.b16 %v575
    %v1288 = vunpack.c.h.b16 %v575
    %v1289 = vunpack.c.l.b16 %v576
    %v1290 = vunpack.c.h.b16 %v576
    %v1291 = vunpack.c.l.b16 %v577
    %v1292 = vunpack.c.h.b16 %v577
    %v1293 = vunpack.c.l.b16 %v578
    %v1294 = vunpack.c.h.b16 %v578
    %v1295 = vunpack.c.l.b16 %v579
    %v1296 = vunpack.c.h.b16 %v579
    %v1297 = vunpack.c.l.b16 %v580
    %v1298 = vunpack.c.h.b16 %v580
    %v1299 = vunpack.c.l.b16 %v581
    %v1300 = vunpack.c.h.b16 %v581
    %v1301 = vunpack.c.l.b16 %v582
    %v1302 = vunpack.c.h.b16 %v582
    %v1303 = vunpack.c.l.b16 %v583
    %v1304 = vunpack.c.h.b16 %v583
    %v1305 = vunpack.c.l.b16 %v584
    %v1306 = vunpack.c.h.b16 %v584
    %v1307 = vunpack.c.l.b16 %v585
    %v1308 = vunpack.c.h.b16 %v585
    %v1309 = vunpack.c.l.b16 %v586
    %v1310 = vunpack.c.h.b16 %v586
    %v1311 = vunpack.c.l.b16 %v587
    %v1312 = vunpack.c.h.b16 %v587
    %v1313 = vunpack.c.l.b16 %v588
    %v1314 = vunpack.c.h.b16 %v588
    %v1315 = vunpack.c.l.b16 %v589
    %v1316 = vunpack.c.h.b16 %v589
    %v1317 = vunpack.c.l.b16 %v590
    %v1318 = vunpack.c.h.b16 %v590
    %v1319 = vunpack.c.l.b16 %v591
    %v1320 = vunpack.c.h.b16 %v591
    %v1321 = vunpack.c.l.b16 %v592
    %v1322 = vunpack.c.h.b16 %v592
    %v1323 = vunpack.c.l.b16 %v593
    %v1324 = vunpack.c.h.b16 %v593
    %v1325 = vunpack.c.l.b16 %v594
    %v1326 = vunpack.c.h.b16 %v594
    %v1327 = vunpack.c.l.b16 %v595
    %v1328 = vunpack.c.h.b16 %v595
    %v1329 = vunpack.c.l.b16 %v596
    %v1330 = vunpack.c.h.b16 %v596
    %v1331 = vunpack.c.l.b16 %v597
    %v1332 = vunpack.c.h.b16 %v597
    %v1333 = vunpack.c.l.b16 %v598
    %v1334 = vunpack.c.h.b16 %v598
    %v1335 = vunpack.c.l.b16 %v599
    %v1336 = vunpack.c.h.b16 %v599
    %v1337 = vunpack.c.l.b16 %v600
    %v1338 = vunpack.c.h.b16 %v600
    %v1339 = vunpack.c.l.b16 %v601
    %v1340 = vunpack.c.h.b16 %v601
    %v1341 = vunpack.c.l.b16 %v602
    %v1342 = vunpack.c.h.b16 %v602
    %v1343 = vunpack.c.l.b16 %v603
    %v1344 = vunpack.c.h.b16 %v603
    %v1345 = vunpack.c.l.b16 %v604
    %v1346 = vunpack.c.h.b16 %v604
    %v1347 = vunpack.c.l.b16 %v605
    %v1348 = vunpack.c.h.b16 %v605
    %v1349 = vunpack.c.l.b16 %v606
    %v1350 = vunpack.c.h.b16 %v606
    %v1351 = vunpack.c.l.b16 %v607
    %v1352 = vunpack.c.h.b16 %v607
    %v1353 = vunpack.c.l.b16 %v608
    %v1354 = vunpack.c.h.b16 %v608
    %v1355 = vunpack.c.l.b16 %v609
    %v1356 = vunpack.c.h.b16 %v609
    %v1357 = vunpack.c.l.b16 %v610
    %v1358 = vunpack.c.h.b16 %v610
    %v1359 = vunpack.c.l.b16 %v611
    %v1360 = vunpack.c.h.b16 %v611
    %v1361 = vunpack.c.l.b16 %v612
    %v1362 = vunpack.c.h.b16 %v612
    %v1363 = vunpack.c.l.b16 %v613
    %v1364 = vunpack.c.h.b16 %v613
    %v1365 = vunpack.c.l.b16 %v614
    %v1366 = vunpack.c.h.b16 %v614
    %v1367 = vunpack.c.l.b16 %v615
    %v1368 = vunpack.c.h.b16 %v615
    %v1369 = vunpack.c.l.b16 %v616
    %v1370 = vunpack.c.h.b16 %v616
    %v1371 = vunpack.c.l.b16 %v617
    %v1372 = vunpack.c.h.b16 %v617
    %v1373 = vunpack.c.l.b16 %v618
    %v1374 = vunpack.c.h.b16 %v618
    %v1375 = vunpack.c.l.b16 %v619
    %v1376 = vunpack.c.h.b16 %v619
    %v1377 = vunpack.c.l.b16 %v620
    %v1378 = vunpack.c.h.b16 %v620
    %v1379 = vunpack.c.l.b16 %v621
    %v1380 = vunpack.c.h.b16 %v621
    %v1381 = vunpack.c.l.b16 %v622
    %v1382 = vunpack.c.h.b16 %v622
    %v1383 = vunpack.c.l.b16 %v623
    %v1384 = vunpack.c.h.b16 %v623
    %v1385 = vunpack.c.l.b16 %v624
    %v1386 = vunpack.c.h.b16 %v624
    %v1387 = vunpack.c.l.b16 %v625
    %v1388 = vunpack.c.h.b16 %v625
    %v1389 = vunpack.c.l.b16 %v626
    %v1390 = vunpack.c.h.b16 %v626
    %v1391 = vunpack.c.l.b16 %v627
    %v1392 = vunpack.c.h.b16 %v627
    %v1393 = vunpack.c.l.b16 %v628
    %v1394 = vunpack.c.h.b16 %v628
    %v1395 = vunpack.c.l.b16 %v629
    %v1396 = vunpack.c.h.b16 %v629
    %v1397 = vunpack.c.l.b16 %v630
    %v1398 = vunpack.c.h.b16 %v630
    %v1399 = vunpack.c.l.b16 %v631
    %v1400 = vunpack.c.h.b16 %v631
    %v1401 = vunpack.c.l.b16 %v632
    %v1402 = vunpack.c.h.b16 %v632
    %v1403 = vunpack.c.l.b16 %v633
    %v1404 = vunpack.c.h.b16 %v633
    %v1405 = vunpack.c.l.b16 %v634
    %v1406 = vunpack.c.h.b16 %v634
    %v1407 = vunpack.c.l.b16 %v635
    %v1408 = vunpack.c.h.b16 %v635
    %v1409 = vunpack.c.l.b16 %v636
    %v1410 = vunpack.c.h.b16 %v636
    %v1411 = vunpack.c.l.b16 %v637
    %v1412 = vunpack.c.h.b16 %v637
    %v1413 = vunpack.c.l.b16 %v638
    %v1414 = vunpack.c.h.b16 %v638
    %v1415 = vunpack.c.l.b16 %v639
    %v1416 = vunpack.c.h.b16 %v639
    %v1417 = vunpack.c.l.b16 %v640
    %v1418 = vunpack.c.h.b16 %v640
    %v1419 = vunpack.c.l.b16 %v641
    %v1420 = vunpack.c.h.b16 %v641
    %v1421 = vunpack.c.l.b16 %v642
    %v1422 = vunpack.c.h.b16 %v642
    %v1423 = vunpack.c.l.b16 %v643
    %v1424 = vunpack.c.h.b16 %v643
    %v1425 = vunpack.c.l.b16 %v644
    %v1426 = vunpack.c.h.b16 %v644
    %v1427 = vunpack.c.l.b16 %v645
    %v1428 = vunpack.c.h.b16 %v645
    %v1429 = vunpack.c.l.b16 %v646
    %v1430 = vunpack.c.h.b16 %v646
    %v1431 = vunpack.c.l.b16 %v647
    %v1432 = vunpack.c.h.b16 %v647
    %v1433 = vunpack.c.l.b16 %v648
    %v1434 = vunpack.c.h.b16 %v648
    %v1435 = vunpack.c.l.b16 %v649
    %v1436 = vunpack.c.h.b16 %v649
    %v1437 = vunpack.c.l.b16 %v650
    %v1438 = vunpack.c.h.b16 %v650
    %v1439 = vunpack.c.l.b16 %v651
    %v1440 = vunpack.c.h.b16 %v651
    %v1441 = vunpack.c.l.b16 %v652
    %v1442 = vunpack.c.h.b16 %v652
    %v1443 = vpack.c.b16 %v935, %v931
    %v1444 = vpack.c.b16 %v936, %v932
    %v1445 = vpack.c.b16 %v937, %v933
    %v1446 = vpack.c.b16 %v938, %v934
    %v1447 = vpack.c.b16 %v943, %v939
    %v1448 = vpack.c.b16 %v944, %v940
    %v1449 = vpack.c.b16 %v945, %v941
    %v1450 = vpack.c.b16 %v946, %v942
    %v1451 = vpack.c.b16 %v951, %v947
    %v1452 = vpack.c.b16 %v952, %v948
    %v1453 = vpack.c.b16 %v953, %v949
    %v1454 = vpack.c.b16 %v954, %v950
    %v1455 = vpack.c.b16 %v959, %v955
    %v1456 = vpack.c.b16 %v960, %v956
    %v1457 = vpack.c.b16 %v961, %v957
    %v1458 = vpack.c.b16 %v962, %v958
    %v1459 = vpack.c.b16 %v967, %v963
    %v1460 = vpack.c.b16 %v968, %v964
    %v1461 = vpack.c.b16 %v969, %v965
    %v1462 = vpack.c.b16 %v970, %v966
    %v1463 = vpack.c.b16 %v975, %v971
    %v1464 = vpack.c.b16 %v976, %v972
    %v1465 = vpack.c.b16 %v977, %v973
    %v1466 = vpack.c.b16 %v978, %v974
    %v1467 = vpack.c.b16 %v983, %v979
    %v1468 = vpack.c.b16 %v984, %v980
    %v1469 = vpack.c.b16 %v985, %v981
    %v1470 = vpack.c.b16 %v986, %v982
    %v1471 = vpack.c.b16 %v991, %v987
    %v1472 = vpack.c.b16 %v992, %v988
    %v1473 = vpack.c.b16 %v993, %v989
    %v1474 = vpack.c.b16 %v994, %v990
    %v1475 = vpack.c.b16 %v999, %v995
    %v1476 = vpack.c.b16 %v1000, %v996
    %v1477 = vpack.c.b16 %v1001, %v997
    %v1478 = vpack.c.b16 %v1002, %v998
    %v1479 = vpack.c.b16 %v1007, %v1003
    %v1480 = vpack.c.b16 %v1008, %v1004
    %v1481 = vpack.c.b16 %v1009, %v1005
    %v1482 = vpack.c.b16 %v1010, %v1006
    %v1483 = vpack.c.b16 %v1015, %v1011
    %v1484 = vpack.c.b16 %v1016, %v1012
    %v1485 = vpack.c.b16 %v1017, %v1013
    %v1486 = vpack.c.b16 %v1018, %v1014
    %v1487 = vpack.c.b16 %v1023, %v1019
    %v1488 = vpack.c.b16 %v1024, %v1020
    %v1489 = vpack.c.b16 %v1025, %v1021
    %v1490 = vpack.c.b16 %v1026, %v1022
    %v1491 = vpack.c.b16 %v1031, %v1027
    %v1492 = vpack.c.b16 %v1032, %v1028
    %v1493 = vpack.c.b16 %v1033, %v1029
    %v1494 = vpack.c.b16 %v1034, %v1030
    %v1495 = vpack.c.b16 %v1039, %v1035
    %v1496 = vpack.c.b16 %v1040, %v1036
    %v1497 = vpack.c.b16 %v1041, %v1037
    %v1498 = vpack.c.b16 %v1042, %v1038
    %v1499 = vpack.c.b16 %v1047, %v1043
    %v1500 = vpack.c.b16 %v1048, %v1044
    %v1501 = vpack.c.b16 %v1049, %v1045
    %v1502 = vpack.c.b16 %v1050, %v1046
    %v1503 = vpack.c.b16 %v1055, %v1051
    %v1504 = vpack.c.b16 %v1056, %v1052
    %v1505 = vpack.c.b16 %v1057, %v1053
    %v1506 = vpack.c.b16 %v1058, %v1054
    %v1507 = vpack.c.b16 %v1063, %v1059
    %v1508 = vpack.c.b16 %v1064, %v1060
    %v1509 = vpack.c.b16 %v1065, %v1061
    %v1510 = vpack.c.b16 %v1066, %v1062
    %v1511 = vpack.c.b16 %v1071, %v1067
    %v1512 = vpack.c.b16 %v1072, %v1068
    %v1513 = vpack.c.b16 %v1073, %v1069
    %v1514 = vpack.c.b16 %v1074, %v1070
    %v1515 = vpack.c.b16 %v1079, %v1075
    %v1516 = vpack.c.b16 %v1080, %v1076
    %v1517 = vpack.c.b16 %v1081, %v1077
    %v1518 = vpack.c.b16 %v1082, %v1078
    %v1519 = vpack.c.b16 %v1087, %v1083
    %v1520 = vpack.c.b16 %v1088, %v1084
    %v1521 = vpack.c.b16 %v1089, %v1085
    %v1522 = vpack.c.b16 %v1090, %v1086
    %v1523 = vpack.c.b16 %v1095, %v1091
    %v1524 = vpack.c.b16 %v1096, %v1092
    %v1525 = vpack.c.b16 %v1097, %v1093
    %v1526 = vpack.c.b16 %v1098, %v1094
    %v1527 = vpack.c.b16 %v1103, %v1099
    %v1528 = vpack.c.b16 %v1104, %v1100
    %v1529 = vpack.c.b16 %v1105, %v1101
    %v1530 = vpack.c.b16 %v1106, %v1102
    %v1531 = vpack.c.b16 %v1111, %v1107
    %v1532 = vpack.c.b16 %v1112, %v1108
    %v1533 = vpack.c.b16 %v1113, %v1109
    %v1534 = vpack.c.b16 %v1114, %v1110
    %v1535 = vpack.c.b16 %v1119, %v1115
    %v1536 = vpack.c.b16 %v1120, %v1116
    %v1537 = vpack.c.b16 %v1121, %v1117
    %v1538 = vpack.c.b16 %v1122, %v1118
    %v1539 = vpack.c.b16 %v1127, %v1123
    %v1540 = vpack.c.b16 %v1128, %v1124
    %v1541 = vpack.c.b16 %v1129, %v1125
    %v1542 = vpack.c.b16 %v1130, %v1126
    %v1543 = vpack.c.b16 %v1135, %v1131
    %v1544 = vpack.c.b16 %v1136, %v1132
    %v1545 = vpack.c.b16 %v1137, %v1133
    %v1546 = vpack.c.b16 %v1138, %v1134
    %v1547 = vpack.c.b16 %v1143, %v1139
    %v1548 = vpack.c.b16 %v1144, %v1140
    %v1549 = vpack.c.b16 %v1145, %v1141
    %v1550 = vpack.c.b16 %v1146, %v1142
    %v1551 = vpack.c.b16 %v1151, %v1147
    %v1552 = vpack.c.b16 %v1152, %v1148
    %v1553 = vpack.c.b16 %v1153, %v1149
    %v1554 = vpack.c.b16 %v1154, %v1150
    %v1555 = vpack.c.b16 %v1159, %v1155
    %v1556 = vpack.c.b16 %v1160, %v1156
    %v1557 = vpack.c.b16 %v1161, %v1157
    %v1558 = vpack.c.b16 %v1162, %v1158
    %v1559 = vpack.c.b16 %v1167, %v1163
    %v1560 = vpack.c.b16 %v1168, %v1164
    %v1561 = vpack.c.b16 %v1169, %v1165
    %v1562 = vpack.c.b16 %v1170, %v1166
    %v1563 = vpack.c.b16 %v1175, %v1171
    %v1564 = vpack.c.b16 %v1176, %v1172
    %v1565 = vpack.c.b16 %v1177, %v1173
    %v1566 = vpack.c.b16 %v1178, %v1174
    %v1567 = vpack.c.b16 %v1183, %v1179
    %v1568 = vpack.c.b16 %v1184, %v1180
    %v1569 = vpack.c.b16 %v1185, %v1181
    %v1570 = vpack.c.b16 %v1186, %v1182
    %v1571 = vpack.c.b16 %v1191, %v1187
    %v1572 = vpack.c.b16 %v1192, %v1188
    %v1573 = vpack.c.b16 %v1193, %v1189
    %v1574 = vpack.c.b16 %v1194, %v1190
    %v1575 = vpack.c.b16 %v1199, %v1195
    %v1576 = vpack.c.b16 %v1200, %v1196
    %v1577 = vpack.c.b16 %v1201, %v1197
    %v1578 = vpack.c.b16 %v1202, %v1198
    %v1579 = vpack.c.b16 %v1207, %v1203
    %v1580 = vpack.c.b16 %v1208, %v1204
    %v1581 = vpack.c.b16 %v1209, %v1205
    %v1582 = vpack.c.b16 %v1210, %v1206
    %v1583 = vpack.c.b16 %v1215, %v1211
    %v1584 = vpack.c.b16 %v1216, %v1212
    %v1585 = vpack.c.b16 %v1217, %v1213
    %v1586 = vpack.c.b16 %v1218, %v1214
    %v1587 = vpack.c.b16 %v1223, %v1219
    %v1588 = vpack.c.b16 %v1224, %v1220
    %v1589 = vpack.c.b16 %v1225, %v1221
    %v1590 = vpack.c.b16 %v1226, %v1222
    %v1591 = vpack.c.b16 %v1231, %v1227
    %v1592 = vpack.c.b16 %v1232, %v1228
    %v1593 = vpack.c.b16 %v1233, %v1229
    %v1594 = vpack.c.b16 %v1234, %v1230
    %v1595 = vpack.c.b16 %v1239, %v1235
    %v1596 = vpack.c.b16 %v1240, %v1236
    %v1597 = vpack.c.b16 %v1241, %v1237
    %v1598 = vpack.c.b16 %v1242, %v1238
    %v1599 = vpack.c.b16 %v1247, %v1243
    %v1600 = vpack.c.b16 %v1248, %v1244
    %v1601 = vpack.c.b16 %v1249, %v1245
    %v1602 = vpack.c.b16 %v1250, %v1246
    %v1603 = vpack.c.b16 %v1255, %v1251
    %v1604 = vpack.c.b16 %v1256, %v1252
    %v1605 = vpack.c.b16 %v1257, %v1253
    %v1606 = vpack.c.b16 %v1258, %v1254
    %v1607 = vpack.c.b16 %v1263, %v1259
    %v1608 = vpack.c.b16 %v1264, %v1260
    %v1609 = vpack.c.b16 %v1265, %v1261
    %v1610 = vpack.c.b16 %v1266, %v1262
    %v1611 = vpack.c.b16 %v1271, %v1267
    %v1612 = vpack.c.b16 %v1272, %v1268
    %v1613 = vpack.c.b16 %v1273, %v1269
    %v1614 = vpack.c.b16 %v1274, %v1270
    %v1615 = vpack.c.b16 %v1279, %v1275
    %v1616 = vpack.c.b16 %v1280, %v1276
    %v1617 = vpack.c.b16 %v1281, %v1277
    %v1618 = vpack.c.b16 %v1282, %v1278
    %v1619 = vpack.c.b16 %v1287, %v1283
    %v1620 = vpack.c.b16 %v1288, %v1284
    %v1621 = vpack.c.b16 %v1289, %v1285
    %v1622 = vpack.c.b16 %v1290, %v1286
    %v1623 = vpack.c.b16 %v1295, %v1291
    %v1624 = vpack.c.b16 %v1296, %v1292
    %v1625 = vpack.c.b16 %v1297, %v1293
    %v1626 = vpack.c.b16 %v1298, %v1294
    %v1627 = vpack.c.b16 %v1303, %v1299
    %v1628 = vpack.c.b16 %v1304, %v1300
    %v1629 = vpack.c.b16 %v1305, %v1301
    %v1630 = vpack.c.b16 %v1306, %v1302
    %v1631 = vpack.c.b16 %v1311, %v1307
    %v1632 = vpack.c.b16 %v1312, %v1308
    %v1633 = vpack.c.b16 %v1313, %v1309
    %v1634 = vpack.c.b16 %v1314, %v1310
    %v1635 = vpack.c.b16 %v1319, %v1315
    %v1636 = vpack.c.b16 %v1320, %v1316
    %v1637 = vpack.c.b16 %v1321, %v1317
    %v1638 = vpack.c.b16 %v1322, %v1318
    %v1639 = vpack.c.b16 %v1327, %v1323
    %v1640 = vpack.c.b16 %v1328, %v1324
    %v1641 = vpack.c.b16 %v1329, %v1325
    %v1642 = vpack.c.b16 %v1330, %v1326
    %v1643 = vpack.c.b16 %v1335, %v1331
    %v1644 = vpack.c.b16 %v1336, %v1332
    %v1645 = vpack.c.b16 %v1337, %v1333
    %v1646 = vpack.c.b16 %v1338, %v1334
    %v1647 = vpack.c.b16 %v1343, %v1339
    %v1648 = vpack.c.b16 %v1344, %v1340
    %v1649 = vpack.c.b16 %v1345, %v1341
    %v1650 = vpack.c.b16 %v1346, %v1342
    %v1651 = vpack.c.b16 %v1351, %v1347
    %v1652 = vpack.c.b16 %v1352, %v1348
    %v1653 = vpack.c.b16 %v1353, %v1349
    %v1654 = vpack.c.b16 %v1354, %v1350
    %v1655 = vpack.c.b16 %v1359, %v1355
    %v1656 = vpack.c.b16 %v1360, %v1356
    %v1657 = vpack.c.b16 %v1361, %v1357
    %v1658 = vpack.c.b16 %v1362, %v1358
    %v1659 = vpack.c.b16 %v1367, %v1363
    %v1660 = vpack.c.b16 %v1368, %v1364
    %v1661 = vpack.c.b16 %v1369, %v1365
    %v1662 = vpack.c.b16 %v1370, %v1366
    %v1663 = vpack.c.b16 %v1375, %v1371
    %v1664 = vpack.c.b16 %v1376, %v1372
    %v1665 = vpack.c.b16 %v1377, %v1373
    %v1666 = vpack.c.b16 %v1378, %v1374
    %v1667 = vpack.c.b16 %v1383, %v1379
    %v1668 = vpack.c.b16 %v1384, %v1380
    %v1669 = vpack.c.b16 %v1385, %v1381
    %v1670 = vpack.c.b16 %v1386, %v1382
    %v1671 = vpack.c.b16 %v1391, %v1387
    %v1672 = vpack.c.b16 %v1392, %v1388
    %v1673 = vpack.c.b16 %v1393, %v1389
    %v1674 = vpack.c.b16 %v1394, %v1390
    %v1675 = vpack.c.b16 %v1399, %v1395
    %v1676 = vpack.c.b16 %v1400, %v1396
    %v1677 = vpack.c.b16 %v1401, %v1397
    %v1678 = vpack.c.b16 %v1402, %v1398
    %v1679 = vpack.c.b16 %v1407, %v1403
    %v1680 = vpack.c.b16 %v1408, %v1404
    %v1681 = vpack.c.b16 %v1409, %v1405
    %v1682 = vpack.c.b16 %v1410, %v1406
    %v1683 = vpack.c.b16 %v1415, %v1411
    %v1684 = vpack.c.b16 %v1416, %v1412
    %v1685 = vpack.c.b16 %v1417, %v1413
    %v1686 = vpack.c.b16 %v1418, %v1414
    %v1687 = vpack.c.b16 %v1423, %v1419
    %v1688 = vpack.c.b16 %v1424, %v1420
    %v1689 = vpack.c.b16 %v1425, %v1421
    %v1690 = vpack.c.b16 %v1426, %v1422
    %v1691 = vpack.c.b16 %v1431, %v1427
    %v1692 = vpack.c.b16 %v1432, %v1428
    %v1693 = vpack.c.b16 %v1433, %v1429
    %v1694 = vpack.c.b16 %v1434, %v1430
    %v1695 = vpack.c.b16 %v1439, %v1435
    %v1696 = vpack.c.b16 %v1440, %v1436
    %v1697 = vpack.c.b16 %v1441, %v1437
    %v1698 = vpack.c.b16 %v1442, %v1438
    %1955 = vmatprep.subr.bf16.mxu0 %v1472
    %1956 = vmatpush1.bf16.msra.mxu0 %v1471
    %1957 = vmatprep.subr.bf16.mxu0 %v1468
    %1958 = vmatpush1.bf16.msra.mxu0 %v1467
    %1959 = vmatprep.subr.bf16.mxu0 %v1464
    %1960 = vmatpush1.bf16.msra.mxu0 %v1463
    %1961 = vmatprep.subr.bf16.mxu0 %v1460
    %1962 = vmatpush1.bf16.msra.mxu0 %v1459
    %1963 = vmatprep.subr.bf16.mxu0 %v1456
    %1964 = vmatpush1.bf16.msra.mxu0 %v1455
    %1965 = vmatprep.subr.bf16.mxu0 %v1452
    %1966 = vmatpush1.bf16.msra.mxu0 %v1451
    %1967 = vmatprep.subr.bf16.mxu0 %v1448
    %1968 = vmatpush1.bf16.msra.mxu0 %v1447
    %1969 = vmatprep.subr.bf16.mxu0 %v1444
    %1970 = vmatpush1.bf16.msra.mxu0 %v1443
    %1971 = vmatprep.subr.bf16.mxu0 %v1504
    %1972 = vmatpush2.bf16.msra.mxu0 %v1503
    %1973 = vmatprep.subr.bf16.mxu0 %v1500
    %1974 = vmatpush2.bf16.msra.mxu0 %v1499
    %1975 = vmatprep.subr.bf16.mxu0 %v1496
    %1976 = vmatpush2.bf16.msra.mxu0 %v1495
    %1977 = vmatprep.subr.bf16.mxu0 %v1492
    %1978 = vmatpush2.bf16.msra.mxu0 %v1491
    %1979 = vmatprep.subr.bf16.mxu0 %v1488
    %1980 = vmatpush2.bf16.msra.mxu0 %v1487
    %1981 = vmatprep.subr.bf16.mxu0 %v1484
    %1982 = vmatpush2.bf16.msra.mxu0 %v1483
    %1983 = vmatprep.subr.bf16.mxu0 %v1480
    %1984 = vmatpush2.bf16.msra.mxu0 %v1479
    %1985 = vmatprep.subr.bf16.mxu0 %v1476
    %1986 = vmatpush2.bf16.msra.mxu0 %v1475
    %1987 = vmatprep.mubr.bf16.mxu0 %v390
    %1988 = vmatmul.mubr.bf16.gmra.mxu0 %v389
    %v1989 = vpop.f32.mrf.mxu0
    %v1990 = vadd.f32 %v658, %v1989
    %v1991 = vpop.f32.mrf.mxu0
    %v1992 = vadd.f32 %v662, %v1991
    %v1993 = vpop.f32.mrf.mxu0
    %v1994 = vpop.f32.mrf.mxu0
    %1995 = vdwg.mxu0
    %1996 = vmatprep.subr.bf16.mxu0 %v1536
    %1997 = vmatpush1.bf16.msra.mxu0 %v1535
    %1998 = vmatprep.subr.bf16.mxu0 %v1532
    %1999 = vmatpush1.bf16.msra.mxu0 %v1531
    %2000 = vmatprep.subr.bf16.mxu0 %v1528
    %2001 = vmatpush1.bf16.msra.mxu0 %v1527
    %2002 = vmatprep.subr.bf16.mxu0 %v1524
    %2003 = vmatpush1.bf16.msra.mxu0 %v1523
    %2004 = vmatprep.subr.bf16.mxu0 %v1520
    %2005 = vmatpush1.bf16.msra.mxu0 %v1519
    %2006 = vmatprep.subr.bf16.mxu0 %v1516
    %2007 = vmatpush1.bf16.msra.mxu0 %v1515
    %2008 = vmatprep.subr.bf16.mxu0 %v1512
    %2009 = vmatpush1.bf16.msra.mxu0 %v1511
    %2010 = vmatprep.subr.bf16.mxu0 %v1508
    %2011 = vmatpush1.bf16.msra.mxu0 %v1507
    %2012 = vmatprep.subr.bf16.mxu0 %v1568
    %2013 = vmatpush2.bf16.msra.mxu0 %v1567
    %2014 = vmatprep.subr.bf16.mxu0 %v1564
    %2015 = vmatpush2.bf16.msra.mxu0 %v1563
    %2016 = vmatprep.subr.bf16.mxu0 %v1560
    %2017 = vmatpush2.bf16.msra.mxu0 %v1559
    %2018 = vmatprep.subr.bf16.mxu0 %v1556
    %2019 = vmatpush2.bf16.msra.mxu0 %v1555
    %2020 = vmatprep.subr.bf16.mxu0 %v1552
    %2021 = vmatpush2.bf16.msra.mxu0 %v1551
    %2022 = vmatprep.subr.bf16.mxu0 %v1548
    %2023 = vmatpush2.bf16.msra.mxu0 %v1547
    %2024 = vmatprep.subr.bf16.mxu0 %v1544
    %2025 = vmatpush2.bf16.msra.mxu0 %v1543
    %2026 = vmatprep.subr.bf16.mxu0 %v1540
    %2027 = vmatpush2.bf16.msra.mxu0 %v1539
    %2028 = vmatprep.mubr.bf16.mxu0 %v392
    %2029 = vmatmul.mubr.bf16.gmra.mxu0 %v391
    %v2030 = vpop.f32.mrf.mxu0
    %v2031 = vadd.f32 %v1990, %v2030
    %v2032 = vpop.f32.mrf.mxu0
    %v2033 = vadd.f32 %v1992, %v2032
    %v2034 = vpop.f32.mrf.mxu0
    %v2035 = vpop.f32.mrf.mxu0
    %2036 = vdwg.mxu0
    %2037 = vmatprep.subr.bf16.mxu0 %v1600
    %2038 = vmatpush1.bf16.msra.mxu0 %v1599
    %2039 = vmatprep.subr.bf16.mxu0 %v1596
    %2040 = vmatpush1.bf16.msra.mxu0 %v1595
    %2041 = vmatprep.subr.bf16.mxu0 %v1592
    %2042 = vmatpush1.bf16.msra.mxu0 %v1591
    %2043 = vmatprep.subr.bf16.mxu0 %v1588
    %2044 = vmatpush1.bf16.msra.mxu0 %v1587
    %2045 = vmatprep.subr.bf16.mxu0 %v1584
    %2046 = vmatpush1.bf16.msra.mxu0 %v1583
    %2047 = vmatprep.subr.bf16.mxu0 %v1580
    %2048 = vmatpush1.bf16.msra.mxu0 %v1579
    %2049 = vmatprep.subr.bf16.mxu0 %v1576
    %2050 = vmatpush1.bf16.msra.mxu0 %v1575
    %2051 = vmatprep.subr.bf16.mxu0 %v1572
    %2052 = vmatpush1.bf16.msra.mxu0 %v1571
    %2053 = vmatprep.subr.bf16.mxu0 %v1632
    %2054 = vmatpush2.bf16.msra.mxu0 %v1631
    %2055 = vmatprep.subr.bf16.mxu0 %v1628
    %2056 = vmatpush2.bf16.msra.mxu0 %v1627
    %2057 = vmatprep.subr.bf16.mxu0 %v1624
    %2058 = vmatpush2.bf16.msra.mxu0 %v1623
    %2059 = vmatprep.subr.bf16.mxu0 %v1620
    %2060 = vmatpush2.bf16.msra.mxu0 %v1619
    %2061 = vmatprep.subr.bf16.mxu0 %v1616
    %2062 = vmatpush2.bf16.msra.mxu0 %v1615
    %2063 = vmatprep.subr.bf16.mxu0 %v1612
    %2064 = vmatpush2.bf16.msra.mxu0 %v1611
    %2065 = vmatprep.subr.bf16.mxu0 %v1608
    %2066 = vmatpush2.bf16.msra.mxu0 %v1607
    %2067 = vmatprep.subr.bf16.mxu0 %v1604
    %2068 = vmatpush2.bf16.msra.mxu0 %v1603
    %2069 = vmatprep.mubr.bf16.mxu0 %v394
    %2070 = vmatmul.mubr.bf16.gmra.mxu0 %v393
    %v2071 = vpop.f32.mrf.mxu0
    %v2072 = vadd.f32 %v2031, %v2071
    %v2073 = vpop.f32.mrf.mxu0
    %v2074 = vadd.f32 %v2033, %v2073
    %v2075 = vpop.f32.mrf.mxu0
    %v2076 = vpop.f32.mrf.mxu0
    %2077 = vdwg.mxu0
    %2078 = vmatprep.subr.bf16.mxu0 %v1664
    %2079 = vmatpush1.bf16.msra.mxu0 %v1663
    %2080 = vmatprep.subr.bf16.mxu0 %v1660
    %2081 = vmatpush1.bf16.msra.mxu0 %v1659
    %2082 = vmatprep.subr.bf16.mxu0 %v1656
    %2083 = vmatpush1.bf16.msra.mxu0 %v1655
    %2084 = vmatprep.subr.bf16.mxu0 %v1652
    %2085 = vmatpush1.bf16.msra.mxu0 %v1651
    %2086 = vmatprep.subr.bf16.mxu0 %v1648
    %2087 = vmatpush1.bf16.msra.mxu0 %v1647
    %2088 = vmatprep.subr.bf16.mxu0 %v1644
    %2089 = vmatpush1.bf16.msra.mxu0 %v1643
    %2090 = vmatprep.subr.bf16.mxu0 %v1640
    %2091 = vmatpush1.bf16.msra.mxu0 %v1639
    %2092 = vmatprep.subr.bf16.mxu0 %v1636
    %2093 = vmatpush1.bf16.msra.mxu0 %v1635
    %2094 = vmatprep.subr.bf16.mxu0 %v1696
    %2095 = vmatpush2.bf16.msra.mxu0 %v1695
    %2096 = vmatprep.subr.bf16.mxu0 %v1692
    %2097 = vmatpush2.bf16.msra.mxu0 %v1691
    %2098 = vmatprep.subr.bf16.mxu0 %v1688
    %2099 = vmatpush2.bf16.msra.mxu0 %v1687
    %2100 = vmatprep.subr.bf16.mxu0 %v1684
    %2101 = vmatpush2.bf16.msra.mxu0 %v1683
    %2102 = vmatprep.subr.bf16.mxu0 %v1680
    %2103 = vmatpush2.bf16.msra.mxu0 %v1679
    %2104 = vmatprep.subr.bf16.mxu0 %v1676
    %2105 = vmatpush2.bf16.msra.mxu0 %v1675
    %2106 = vmatprep.subr.bf16.mxu0 %v1672
    %2107 = vmatpush2.bf16.msra.mxu0 %v1671
    %2108 = vmatprep.subr.bf16.mxu0 %v1668
    %2109 = vmatpush2.bf16.msra.mxu0 %v1667
    %2110 = vmatprep.mubr.bf16.mxu0 %v396
    %2111 = vmatmul.mubr.bf16.gmra.mxu0 %v395
    %v2112 = vpop.f32.mrf.mxu0
    %v2113 = vadd.f32 %v2072, %v2112
    %v2114 = vpop.f32.mrf.mxu0
    %v2115 = vadd.f32 %v2074, %v2114
    %v2116 = vpop.f32.mrf.mxu0
    %v2117 = vpop.f32.mrf.mxu0
    %2118 = vdwg.mxu0
    %2119 = vmatprep.subr.bf16.mxu0 %v1474
    %2120 = vmatpush1.bf16.msra.mxu0 %v1473
    %2121 = vmatprep.subr.bf16.mxu0 %v1470
    %2122 = vmatpush1.bf16.msra.mxu0 %v1469
    %2123 = vmatprep.subr.bf16.mxu0 %v1466
    %2124 = vmatpush1.bf16.msra.mxu0 %v1465
    %2125 = vmatprep.subr.bf16.mxu0 %v1462
    %2126 = vmatpush1.bf16.msra.mxu0 %v1461
    %2127 = vmatprep.subr.bf16.mxu0 %v1458
    %2128 = vmatpush1.bf16.msra.mxu0 %v1457
    %2129 = vmatprep.subr.bf16.mxu0 %v1454
    %2130 = vmatpush1.bf16.msra.mxu0 %v1453
    %2131 = vmatprep.subr.bf16.mxu0 %v1450
    %2132 = vmatpush1.bf16.msra.mxu0 %v1449
    %2133 = vmatprep.subr.bf16.mxu0 %v1446
    %2134 = vmatpush1.bf16.msra.mxu0 %v1445
    %2135 = vmatprep.subr.bf16.mxu0 %v1506
    %2136 = vmatpush2.bf16.msra.mxu0 %v1505
    %2137 = vmatprep.subr.bf16.mxu0 %v1502
    %2138 = vmatpush2.bf16.msra.mxu0 %v1501
    %2139 = vmatprep.subr.bf16.mxu0 %v1498
    %2140 = vmatpush2.bf16.msra.mxu0 %v1497
    %2141 = vmatprep.subr.bf16.mxu0 %v1494
    %2142 = vmatpush2.bf16.msra.mxu0 %v1493
    %2143 = vmatprep.subr.bf16.mxu0 %v1490
    %2144 = vmatpush2.bf16.msra.mxu0 %v1489
    %2145 = vmatprep.subr.bf16.mxu0 %v1486
    %2146 = vmatpush2.bf16.msra.mxu0 %v1485
    %2147 = vmatprep.subr.bf16.mxu0 %v1482
    %2148 = vmatpush2.bf16.msra.mxu0 %v1481
    %2149 = vmatprep.subr.bf16.mxu0 %v1478
    %2150 = vmatpush2.bf16.msra.mxu0 %v1477
    %2151 = vmatprep.mubr.bf16.mxu0 %v390
    %2152 = vmatmul.mubr.bf16.gmra.mxu0 %v389
    %v2153 = vpop.f32.mrf.mxu0
    %v2154 = vadd.f32 %v666, %v2153
    %v2155 = vpop.f32.mrf.mxu0
    %v2156 = vadd.f32 %v670, %v2155
    %v2157 = vpop.f32.mrf.mxu0
    %v2158 = vpop.f32.mrf.mxu0
    %2159 = vdwg.mxu0
    %2160 = vmatprep.subr.bf16.mxu0 %v1538
    %2161 = vmatpush1.bf16.msra.mxu0 %v1537
    %2162 = vmatprep.subr.bf16.mxu0 %v1534
    %2163 = vmatpush1.bf16.msra.mxu0 %v1533
    %2164 = vmatprep.subr.bf16.mxu0 %v1530
    %2165 = vmatpush1.bf16.msra.mxu0 %v1529
    %2166 = vmatprep.subr.bf16.mxu0 %v1526
    %2167 = vmatpush1.bf16.msra.mxu0 %v1525
    %2168 = vmatprep.subr.bf16.mxu0 %v1522
    %2169 = vmatpush1.bf16.msra.mxu0 %v1521
    %2170 = vmatprep.subr.bf16.mxu0 %v1518
    %2171 = vmatpush1.bf16.msra.mxu0 %v1517
    %2172 = vmatprep.subr.bf16.mxu0 %v1514
    %2173 = vmatpush1.bf16.msra.mxu0 %v1513
    %2174 = vmatprep.subr.bf16.mxu0 %v1510
    %2175 = vmatpush1.bf16.msra.mxu0 %v1509
    %2176 = vmatprep.subr.bf16.mxu0 %v1570
    %2177 = vmatpush2.bf16.msra.mxu0 %v1569
    %2178 = vmatprep.subr.bf16.mxu0 %v1566
    %2179 = vmatpush2.bf16.msra.mxu0 %v1565
    %2180 = vmatprep.subr.bf16.mxu0 %v1562
    %2181 = vmatpush2.bf16.msra.mxu0 %v1561
    %2182 = vmatprep.subr.bf16.mxu0 %v1558
    %2183 = vmatpush2.bf16.msra.mxu0 %v1557
    %2184 = vmatprep.subr.bf16.mxu0 %v1554
    %2185 = vmatpush2.bf16.msra.mxu0 %v1553
    %2186 = vmatprep.subr.bf16.mxu0 %v1550
    %2187 = vmatpush2.bf16.msra.mxu0 %v1549
    %2188 = vmatprep.subr.bf16.mxu0 %v1546
    %2189 = vmatpush2.bf16.msra.mxu0 %v1545
    %2190 = vmatprep.subr.bf16.mxu0 %v1542
    %2191 = vmatpush2.bf16.msra.mxu0 %v1541
    %2192 = vmatprep.mubr.bf16.mxu0 %v392
    %2193 = vmatmul.mubr.bf16.gmra.mxu0 %v391
    %v2194 = vpop.f32.mrf.mxu0
    %v2195 = vadd.f32 %v2154, %v2194
    %v2196 = vpop.f32.mrf.mxu0
    %v2197 = vadd.f32 %v2156, %v2196
    %v2198 = vpop.f32.mrf.mxu0
    %v2199 = vpop.f32.mrf.mxu0
    %2200 = vdwg.mxu0
    %2201 = vmatprep.subr.bf16.mxu0 %v1602
    %2202 = vmatpush1.bf16.msra.mxu0 %v1601
    %2203 = vmatprep.subr.bf16.mxu0 %v1598
    %2204 = vmatpush1.bf16.msra.mxu0 %v1597
    %2205 = vmatprep.subr.bf16.mxu0 %v1594
    %2206 = vmatpush1.bf16.msra.mxu0 %v1593
    %2207 = vmatprep.subr.bf16.mxu0 %v1590
    %2208 = vmatpush1.bf16.msra.mxu0 %v1589
    %2209 = vmatprep.subr.bf16.mxu0 %v1586
    %2210 = vmatpush1.bf16.msra.mxu0 %v1585
    %2211 = vmatprep.subr.bf16.mxu0 %v1582
    %2212 = vmatpush1.bf16.msra.mxu0 %v1581
    %2213 = vmatprep.subr.bf16.mxu0 %v1578
    %2214 = vmatpush1.bf16.msra.mxu0 %v1577
    %2215 = vmatprep.subr.bf16.mxu0 %v1574
    %2216 = vmatpush1.bf16.msra.mxu0 %v1573
    %2217 = vmatprep.subr.bf16.mxu0 %v1634
    %2218 = vmatpush2.bf16.msra.mxu0 %v1633
    %2219 = vmatprep.subr.bf16.mxu0 %v1630
    %2220 = vmatpush2.bf16.msra.mxu0 %v1629
    %2221 = vmatprep.subr.bf16.mxu0 %v1626
    %2222 = vmatpush2.bf16.msra.mxu0 %v1625
    %2223 = vmatprep.subr.bf16.mxu0 %v1622
    %2224 = vmatpush2.bf16.msra.mxu0 %v1621
    %2225 = vmatprep.subr.bf16.mxu0 %v1618
    %2226 = vmatpush2.bf16.msra.mxu0 %v1617
    %2227 = vmatprep.subr.bf16.mxu0 %v1614
    %2228 = vmatpush2.bf16.msra.mxu0 %v1613
    %2229 = vmatprep.subr.bf16.mxu0 %v1610
    %2230 = vmatpush2.bf16.msra.mxu0 %v1609
    %2231 = vmatprep.subr.bf16.mxu0 %v1606
    %2232 = vmatpush2.bf16.msra.mxu0 %v1605
    %2233 = vmatprep.mubr.bf16.mxu0 %v394
    %2234 = vmatmul.mubr.bf16.gmra.mxu0 %v393
    %v2235 = vpop.f32.mrf.mxu0
    %v2236 = vadd.f32 %v2195, %v2235
    %v2237 = vpop.f32.mrf.mxu0
    %v2238 = vadd.f32 %v2197, %v2237
    %v2239 = vpop.f32.mrf.mxu0
    %v2240 = vpop.f32.mrf.mxu0
    %2241 = vdwg.mxu0
    %2242 = vmatprep.subr.bf16.mxu0 %v1666
    %2243 = vmatpush1.bf16.msra.mxu0 %v1665
    %2244 = vmatprep.subr.bf16.mxu0 %v1662
    %2245 = vmatpush1.bf16.msra.mxu0 %v1661
    %2246 = vmatprep.subr.bf16.mxu0 %v1658
    %2247 = vmatpush1.bf16.msra.mxu0 %v1657
    %2248 = vmatprep.subr.bf16.mxu0 %v1654
    %2249 = vmatpush1.bf16.msra.mxu0 %v1653
    %2250 = vmatprep.subr.bf16.mxu0 %v1650
    %2251 = vmatpush1.bf16.msra.mxu0 %v1649
    %2252 = vmatprep.subr.bf16.mxu0 %v1646
    %2253 = vmatpush1.bf16.msra.mxu0 %v1645
    %2254 = vmatprep.subr.bf16.mxu0 %v1642
    %2255 = vmatpush1.bf16.msra.mxu0 %v1641
    %2256 = vmatprep.subr.bf16.mxu0 %v1638
    %2257 = vmatpush1.bf16.msra.mxu0 %v1637
    %2258 = vmatprep.subr.bf16.mxu0 %v1698
    %2259 = vmatpush2.bf16.msra.mxu0 %v1697
    %2260 = vmatprep.subr.bf16.mxu0 %v1694
    %2261 = vmatpush2.bf16.msra.mxu0 %v1693
    %2262 = vmatprep.subr.bf16.mxu0 %v1690
    %2263 = vmatpush2.bf16.msra.mxu0 %v1689
    %2264 = vmatprep.subr.bf16.mxu0 %v1686
    %2265 = vmatpush2.bf16.msra.mxu0 %v1685
    %2266 = vmatprep.subr.bf16.mxu0 %v1682
    %2267 = vmatpush2.bf16.msra.mxu0 %v1681
    %2268 = vmatprep.subr.bf16.mxu0 %v1678
    %2269 = vmatpush2.bf16.msra.mxu0 %v1677
    %2270 = vmatprep.subr.bf16.mxu0 %v1674
    %2271 = vmatpush2.bf16.msra.mxu0 %v1673
    %2272 = vmatprep.subr.bf16.mxu0 %v1670
    %2273 = vmatpush2.bf16.msra.mxu0 %v1669
    %2274 = vmatprep.mubr.bf16.mxu0 %v396
    %2275 = vmatmul.mubr.bf16.gmra.mxu0 %v395
    %v2276 = vpop.f32.mrf.mxu0
    %v2277 = vadd.f32 %v2236, %v2276
    %v2278 = vpop.f32.mrf.mxu0
    %v2279 = vadd.f32 %v2238, %v2278
    %v2280 = vpop.f32.mrf.mxu0
    %v2281 = vpop.f32.mrf.mxu0
    %2282 = vdwg.mxu0
    %v2283 = vpack.c.bf16 %v2113, %v2113
    %v2284 = vpack.c.bf16 %v2115, %v2115
    %v2285 = vpack.c.bf16 %v2277, %v2277
    %v2286 = vpack.c.bf16 %v2279, %v2279
    %v2287 = vld [vmem:[#allocation10] sm:$0xf]
    %v2288 = vld [vmem:[#allocation10 + $0x4] sm:$0xf]
    %v2289 = vld [vmem:[#allocation10 + $0x8] sm:$0xf]
    %v2290 = vld [vmem:[#allocation10 + $0xc] sm:$0xf]
    %v2291 = vld [vmem:[#allocation10 + $0x10] sm:$0xf]
    %v2292 = vld [vmem:[#allocation10 + $0x14] sm:$0xf]
    %v2293 = vld [vmem:[#allocation10 + $0x18] sm:$0xf]
    %v2294 = vld [vmem:[#allocation10 + $0x1c] sm:$0xf]
    %v2295 = vld [vmem:[#allocation10 + $0x20] sm:$0xf]
    %v2296 = vld [vmem:[#allocation10 + $0x24] sm:$0xf]
    %v2297 = vld [vmem:[#allocation10 + $0x28] sm:$0xf]
    %v2298 = vld [vmem:[#allocation10 + $0x2c] sm:$0xf]
    %v2299 = vld [vmem:[#allocation10 + $0x30] sm:$0xf]
    %v2300 = vld [vmem:[#allocation10 + $0x34] sm:$0xf]
    %v2301 = vld [vmem:[#allocation10 + $0x38] sm:$0xf]
    %v2302 = vld [vmem:[#allocation10 + $0x3c] sm:$0xf]
    %v2303 = vld [vmem:[#allocation10 + $0x40] sm:$0xf]
    %v2304 = vld [vmem:[#allocation10 + $0x44] sm:$0xf]
    %v2305 = vld [vmem:[#allocation10 + $0x48] sm:$0xf]
    %v2306 = vld [vmem:[#allocation10 + $0x4c] sm:$0xf]
    %v2307 = vld [vmem:[#allocation10 + $0x50] sm:$0xf]
    %v2308 = vld [vmem:[#allocation10 + $0x54] sm:$0xf]
    %v2309 = vld [vmem:[#allocation10 + $0x58] sm:$0xf]
    %v2310 = vld [vmem:[#allocation10 + $0x5c] sm:$0xf]
    %v2311 = vld [vmem:[#allocation10 + $0x60] sm:$0xf]
    %v2312 = vld [vmem:[#allocation10 + $0x64] sm:$0xf]
    %v2313 = vld [vmem:[#allocation10 + $0x68] sm:$0xf]
    %v2314 = vld [vmem:[#allocation10 + $0x6c] sm:$0xf]
    %v2315 = vld [vmem:[#allocation10 + $0x70] sm:$0xf]
    %v2316 = vld [vmem:[#allocation10 + $0x74] sm:$0xf]
    %v2317 = vld [vmem:[#allocation10 + $0x78] sm:$0xf]
    %v2318 = vld [vmem:[#allocation10 + $0x7c] sm:$0xf]
    %v2319 = vld [vmem:[#allocation10 + $0x80] sm:$0xf]
    %v2320 = vld [vmem:[#allocation10 + $0x84] sm:$0xf]
    %v2321 = vld [vmem:[#allocation10 + $0x88] sm:$0xf]
    %v2322 = vld [vmem:[#allocation10 + $0x8c] sm:$0xf]
    %v2323 = vld [vmem:[#allocation10 + $0x90] sm:$0xf]
    %v2324 = vld [vmem:[#allocation10 + $0x94] sm:$0xf]
    %v2325 = vld [vmem:[#allocation10 + $0x98] sm:$0xf]
    %v2326 = vld [vmem:[#allocation10 + $0x9c] sm:$0xf]
    %v2327 = vld [vmem:[#allocation10 + $0xa0] sm:$0xf]
    %v2328 = vld [vmem:[#allocation10 + $0xa4] sm:$0xf]
    %v2329 = vld [vmem:[#allocation10 + $0xa8] sm:$0xf]
    %v2330 = vld [vmem:[#allocation10 + $0xac] sm:$0xf]
    %v2331 = vld [vmem:[#allocation10 + $0xb0] sm:$0xf]
    %v2332 = vld [vmem:[#allocation10 + $0xb4] sm:$0xf]
    %v2333 = vld [vmem:[#allocation10 + $0xb8] sm:$0xf]
    %v2334 = vld [vmem:[#allocation10 + $0xbc] sm:$0xf]
    %v2335 = vld [vmem:[#allocation10 + $0xc0] sm:$0xf]
    %v2336 = vld [vmem:[#allocation10 + $0xc4] sm:$0xf]
    %v2337 = vld [vmem:[#allocation10 + $0xc8] sm:$0xf]
    %v2338 = vld [vmem:[#allocation10 + $0xcc] sm:$0xf]
    %v2339 = vld [vmem:[#allocation10 + $0xd0] sm:$0xf]
    %v2340 = vld [vmem:[#allocation10 + $0xd4] sm:$0xf]
    %v2341 = vld [vmem:[#allocation10 + $0xd8] sm:$0xf]
    %v2342 = vld [vmem:[#allocation10 + $0xdc] sm:$0xf]
    %v2343 = vld [vmem:[#allocation10 + $0xe0] sm:$0xf]
    %v2344 = vld [vmem:[#allocation10 + $0xe4] sm:$0xf]
    %v2345 = vld [vmem:[#allocation10 + $0xe8] sm:$0xf]
    %v2346 = vld [vmem:[#allocation10 + $0xec] sm:$0xf]
    %v2347 = vld [vmem:[#allocation10 + $0xf0] sm:$0xf]
    %v2348 = vld [vmem:[#allocation10 + $0xf4] sm:$0xf]
    %v2349 = vld [vmem:[#allocation10 + $0xf8] sm:$0xf]
    %v2350 = vld [vmem:[#allocation10 + $0xfc] sm:$0xf]
    %v2351 = vld [vmem:[%s6] sm:$0x1]
    %v2353 = vlaneseq
    %v2354 = vshrl.u32 %v2353, 7
    %v2355 = vsub.s32 0, %v2354
    %v2356 = vrot.slane %v2351, %v2355
    %v2422 = vunpack.c.l.b16 %v2287
    %v2423 = vunpack.c.l.b16 %v2288
    %v2424 = vunpack.c.l.b16 %v2289
    %v2425 = vunpack.c.l.b16 %v2290
    %v2426 = vunpack.c.l.b16 %v2291
    %v2427 = vunpack.c.l.b16 %v2292
    %v2428 = vunpack.c.l.b16 %v2293
    %v2429 = vunpack.c.l.b16 %v2294
    %v2430 = vunpack.c.l.b16 %v2295
    %v2431 = vunpack.c.l.b16 %v2296
    %v2432 = vunpack.c.l.b16 %v2297
    %v2433 = vunpack.c.l.b16 %v2298
    %v2434 = vunpack.c.l.b16 %v2299
    %v2435 = vunpack.c.l.b16 %v2300
    %v2436 = vunpack.c.l.b16 %v2301
    %v2437 = vunpack.c.l.b16 %v2302
    %v2438 = vunpack.c.l.b16 %v2303
    %v2439 = vunpack.c.l.b16 %v2304
    %v2440 = vunpack.c.l.b16 %v2305
    %v2441 = vunpack.c.l.b16 %v2306
    %v2442 = vunpack.c.l.b16 %v2307
    %v2443 = vunpack.c.l.b16 %v2308
    %v2444 = vunpack.c.l.b16 %v2309
    %v2445 = vunpack.c.l.b16 %v2310
    %v2446 = vunpack.c.l.b16 %v2311
    %v2447 = vunpack.c.l.b16 %v2312
    %v2448 = vunpack.c.l.b16 %v2313
    %v2449 = vunpack.c.l.b16 %v2314
    %v2450 = vunpack.c.l.b16 %v2315
    %v2451 = vunpack.c.l.b16 %v2316
    %v2452 = vunpack.c.l.b16 %v2317
    %v2453 = vunpack.c.l.b16 %v2318
    %v2454 = vunpack.c.l.b16 %v2319
    %v2455 = vunpack.c.l.b16 %v2320
    %v2456 = vunpack.c.l.b16 %v2321
    %v2457 = vunpack.c.l.b16 %v2322
    %v2458 = vunpack.c.l.b16 %v2323
    %v2459 = vunpack.c.l.b16 %v2324
    %v2460 = vunpack.c.l.b16 %v2325
    %v2461 = vunpack.c.l.b16 %v2326
    %v2462 = vunpack.c.l.b16 %v2327
    %v2463 = vunpack.c.l.b16 %v2328
    %v2464 = vunpack.c.l.b16 %v2329
    %v2465 = vunpack.c.l.b16 %v2330
    %v2466 = vunpack.c.l.b16 %v2331
    %v2467 = vunpack.c.l.b16 %v2332
    %v2468 = vunpack.c.l.b16 %v2333
    %v2469 = vunpack.c.l.b16 %v2334
    %v2470 = vunpack.c.l.b16 %v2335
    %v2471 = vunpack.c.l.b16 %v2336
    %v2472 = vunpack.c.l.b16 %v2337
    %v2473 = vunpack.c.l.b16 %v2338
    %v2474 = vunpack.c.l.b16 %v2339
    %v2475 = vunpack.c.l.b16 %v2340
    %v2476 = vunpack.c.l.b16 %v2341
    %v2477 = vunpack.c.l.b16 %v2342
    %v2478 = vunpack.c.l.b16 %v2343
    %v2479 = vunpack.c.l.b16 %v2344
    %v2480 = vunpack.c.l.b16 %v2345
    %v2481 = vunpack.c.l.b16 %v2346
    %v2482 = vunpack.c.l.b16 %v2347
    %v2483 = vunpack.c.l.b16 %v2348
    %v2484 = vunpack.c.l.b16 %v2349
    %v2485 = vunpack.c.l.b16 %v2350
    %v2486 = vpack.c.b16 %v2423, %v2422
    %v2487 = vpack.c.b16 %v2425, %v2424
    %v2488 = vpack.c.b16 %v2427, %v2426
    %v2489 = vpack.c.b16 %v2429, %v2428
    %v2490 = vpack.c.b16 %v2431, %v2430
    %v2491 = vpack.c.b16 %v2433, %v2432
    %v2492 = vpack.c.b16 %v2435, %v2434
    %v2493 = vpack.c.b16 %v2437, %v2436
    %v2494 = vpack.c.b16 %v2439, %v2438
    %v2495 = vpack.c.b16 %v2441, %v2440
    %v2496 = vpack.c.b16 %v2443, %v2442
    %v2497 = vpack.c.b16 %v2445, %v2444
    %v2498 = vpack.c.b16 %v2447, %v2446
    %v2499 = vpack.c.b16 %v2449, %v2448
    %v2500 = vpack.c.b16 %v2451, %v2450
    %v2501 = vpack.c.b16 %v2453, %v2452
    %v2502 = vpack.c.b16 %v2455, %v2454
    %v2503 = vpack.c.b16 %v2457, %v2456
    %v2504 = vpack.c.b16 %v2459, %v2458
    %v2505 = vpack.c.b16 %v2461, %v2460
    %v2506 = vpack.c.b16 %v2463, %v2462
    %v2507 = vpack.c.b16 %v2465, %v2464
    %v2508 = vpack.c.b16 %v2467, %v2466
    %v2509 = vpack.c.b16 %v2469, %v2468
    %v2510 = vpack.c.b16 %v2471, %v2470
    %v2511 = vpack.c.b16 %v2473, %v2472
    %v2512 = vpack.c.b16 %v2475, %v2474
    %v2513 = vpack.c.b16 %v2477, %v2476
    %v2514 = vpack.c.b16 %v2479, %v2478
    %v2515 = vpack.c.b16 %v2481, %v2480
    %v2516 = vpack.c.b16 %v2483, %v2482
    %v2517 = vpack.c.b16 %v2485, %v2484
    %2550 = vmatprep.subr.bf16.mxu0 0
    %2551 = vmatpush1.bf16.msra.mxu0 %v2493
    %2552 = vmatprep.subr.bf16.mxu0 0
    %2553 = vmatpush1.bf16.msra.mxu0 %v2492
    %2554 = vmatprep.subr.bf16.mxu0 0
    %2555 = vmatpush1.bf16.msra.mxu0 %v2491
    %2556 = vmatprep.subr.bf16.mxu0 0
    %2557 = vmatpush1.bf16.msra.mxu0 %v2490
    %2558 = vmatprep.subr.bf16.mxu0 0
    %2559 = vmatpush1.bf16.msra.mxu0 %v2489
    %2560 = vmatprep.subr.bf16.mxu0 0
    %2561 = vmatpush1.bf16.msra.mxu0 %v2488
    %2562 = vmatprep.subr.bf16.mxu0 0
    %2563 = vmatpush1.bf16.msra.mxu0 %v2487
    %2564 = vmatprep.subr.bf16.mxu0 0
    %2565 = vmatpush1.bf16.msra.mxu0 %v2486
    %2566 = vmatprep.subr.bf16.mxu0 0
    %2567 = vmatpush2.bf16.msra.mxu0 %v2501
    %2568 = vmatprep.subr.bf16.mxu0 0
    %2569 = vmatpush2.bf16.msra.mxu0 %v2500
    %2570 = vmatprep.subr.bf16.mxu0 0
    %2571 = vmatpush2.bf16.msra.mxu0 %v2499
    %2572 = vmatprep.subr.bf16.mxu0 0
    %2573 = vmatpush2.bf16.msra.mxu0 %v2498
    %2574 = vmatprep.subr.bf16.mxu0 0
    %2575 = vmatpush2.bf16.msra.mxu0 %v2497
    %2576 = vmatprep.subr.bf16.mxu0 0
    %2577 = vmatpush2.bf16.msra.mxu0 %v2496
    %2578 = vmatprep.subr.bf16.mxu0 0
    %2579 = vmatpush2.bf16.msra.mxu0 %v2495
    %2580 = vmatprep.subr.bf16.mxu0 0
    %2581 = vmatpush2.bf16.msra.mxu0 %v2494
    %2582 = vmatprep.mubr.bf16.mxu0 %v2284
    %2583 = vmatmul.mubr.bf16.gmra.mxu0 %v2283
    %v2584 = vpop.f32.mrf.mxu0
    %v2585 = vadd.f32 %v2356, %v2584
    %v2586 = vpop.f32.mrf.mxu0
    %v2587 = vpop.f32.mrf.mxu0
    %v2588 = vpop.f32.mrf.mxu0
    %2589 = vdwg.mxu0
    %2590 = vmatprep.subr.bf16.mxu0 0
    %2591 = vmatpush1.bf16.msra.mxu0 %v2509
    %2592 = vmatprep.subr.bf16.mxu0 0
    %2593 = vmatpush1.bf16.msra.mxu0 %v2508
    %2594 = vmatprep.subr.bf16.mxu0 0
    %2595 = vmatpush1.bf16.msra.mxu0 %v2507
    %2596 = vmatprep.subr.bf16.mxu0 0
    %2597 = vmatpush1.bf16.msra.mxu0 %v2506
    %2598 = vmatprep.subr.bf16.mxu0 0
    %2599 = vmatpush1.bf16.msra.mxu0 %v2505
    %2600 = vmatprep.subr.bf16.mxu0 0
    %2601 = vmatpush1.bf16.msra.mxu0 %v2504
    %2602 = vmatprep.subr.bf16.mxu0 0
    %2603 = vmatpush1.bf16.msra.mxu0 %v2503
    %2604 = vmatprep.subr.bf16.mxu0 0
    %2605 = vmatpush1.bf16.msra.mxu0 %v2502
    %2606 = vmatprep.subr.bf16.mxu0 0
    %2607 = vmatpush2.bf16.msra.mxu0 %v2517
    %2608 = vmatprep.subr.bf16.mxu0 0
    %2609 = vmatpush2.bf16.msra.mxu0 %v2516
    %2610 = vmatprep.subr.bf16.mxu0 0
    %2611 = vmatpush2.bf16.msra.mxu0 %v2515
    %2612 = vmatprep.subr.bf16.mxu0 0
    %2613 = vmatpush2.bf16.msra.mxu0 %v2514
    %2614 = vmatprep.subr.bf16.mxu0 0
    %2615 = vmatpush2.bf16.msra.mxu0 %v2513
    %2616 = vmatprep.subr.bf16.mxu0 0
    %2617 = vmatpush2.bf16.msra.mxu0 %v2512
    %2618 = vmatprep.subr.bf16.mxu0 0
    %2619 = vmatpush2.bf16.msra.mxu0 %v2511
    %2620 = vmatprep.subr.bf16.mxu0 0
    %2621 = vmatpush2.bf16.msra.mxu0 %v2510
    %2622 = vmatprep.mubr.bf16.mxu0 %v2286
    %2623 = vmatmul.mubr.bf16.gmra.mxu0 %v2285
    %v2624 = vpop.f32.mrf.mxu0
    %v2625 = vadd.f32 %v2585, %v2624
    %v2626 = vpop.f32.mrf.mxu0
    %v2627 = vpop.f32.mrf.mxu0
    %v2628 = vpop.f32.mrf.mxu0
    %2629 = vdwg.mxu0
    %v2630 = vmax.f32 %v2625, 0.0
    %v2631 = vpack.c.bf16 %v2630, %v2630
    %v2632 = vld [vmem:[#allocation11] sm:$0xf]
    %v2633 = vld [vmem:[#allocation11 + $0x4] sm:$0xf]
    %v2634 = vld [vmem:[#allocation11 + $0x8] sm:$0xf]
    %v2635 = vld [vmem:[#allocation11 + $0xc] sm:$0xf]
    %v2636 = vld [vmem:[#allocation11 + $0x10] sm:$0xf]
    %v2637 = vld [vmem:[#allocation11 + $0x14] sm:$0xf]
    %v2638 = vld [vmem:[#allocation11 + $0x18] sm:$0xf]
    %v2639 = vld [vmem:[#allocation11 + $0x1c] sm:$0xf]
    %v2640 = vld [vmem:[#allocation11 + $0x20] sm:$0xf]
    %v2641 = vld [vmem:[#allocation11 + $0x24] sm:$0xf]
    %v2642 = vld [vmem:[#allocation11 + $0x28] sm:$0xf]
    %v2643 = vld [vmem:[#allocation11 + $0x2c] sm:$0xf]
    %v2644 = vld [vmem:[#allocation11 + $0x30] sm:$0xf]
    %v2645 = vld [vmem:[#allocation11 + $0x34] sm:$0xf]
    %v2646 = vld [vmem:[#allocation11 + $0x38] sm:$0xf]
    %v2647 = vld [vmem:[#allocation11 + $0x3c] sm:$0xf]
    %v2648 = vld [vmem:[%s8] sm:$0x1]
    %v2650 = vlaneseq
    %v2651 = vshrl.u32 %v2650, 7
    %v2652 = vsub.s32 0, %v2651
    %v2653 = vrot.slane %v2648, %v2652
    %v2671 = vunpack.c.l.b16 %v2632
    %v2672 = vunpack.c.l.b16 %v2633
    %v2673 = vunpack.c.l.b16 %v2634
    %v2674 = vunpack.c.l.b16 %v2635
    %v2675 = vunpack.c.l.b16 %v2636
    %v2676 = vunpack.c.l.b16 %v2637
    %v2677 = vunpack.c.l.b16 %v2638
    %v2678 = vunpack.c.l.b16 %v2639
    %v2679 = vunpack.c.l.b16 %v2640
    %v2680 = vunpack.c.l.b16 %v2641
    %v2681 = vunpack.c.l.b16 %v2642
    %v2682 = vunpack.c.l.b16 %v2643
    %v2683 = vunpack.c.l.b16 %v2644
    %v2684 = vunpack.c.l.b16 %v2645
    %v2685 = vunpack.c.l.b16 %v2646
    %v2686 = vunpack.c.l.b16 %v2647
    %v2687 = vpack.c.b16 %v2672, %v2671
    %v2688 = vpack.c.b16 %v2674, %v2673
    %v2689 = vpack.c.b16 %v2676, %v2675
    %v2690 = vpack.c.b16 %v2678, %v2677
    %v2691 = vpack.c.b16 %v2680, %v2679
    %v2692 = vpack.c.b16 %v2682, %v2681
    %v2693 = vpack.c.b16 %v2684, %v2683
    %v2694 = vpack.c.b16 %v2686, %v2685
    %2703 = vmatprep.subr.bf16.mxu0 0
    %2704 = vmatpush1.bf16.msra.mxu0 %v2694
    %2705 = vmatprep.subr.bf16.mxu0 0
    %2706 = vmatpush1.bf16.msra.mxu0 %v2693
    %2707 = vmatprep.subr.bf16.mxu0 0
    %2708 = vmatpush1.bf16.msra.mxu0 %v2692
    %2709 = vmatprep.subr.bf16.mxu0 0
    %2710 = vmatpush1.bf16.msra.mxu0 %v2691
    %2711 = vmatprep.subr.bf16.mxu0 0
    %2712 = vmatpush1.bf16.msra.mxu0 %v2690
    %2713 = vmatprep.subr.bf16.mxu0 0
    %2714 = vmatpush1.bf16.msra.mxu0 %v2689
    %2715 = vmatprep.subr.bf16.mxu0 0
    %2716 = vmatpush1.bf16.msra.mxu0 %v2688
    %2717 = vmatprep.subr.bf16.mxu0 0
    %2718 = vmatpush1.bf16.msra.mxu0 %v2687
    %2719 = vmatprep.subr.bf16.mxu0 0
    %2720 = vmatpush2.bf16.msra.mxu0 0
    %2721 = vmatprep.subr.bf16.mxu0 0
    %2722 = vmatpush2.bf16.msra.mxu0 0
    %2723 = vmatprep.subr.bf16.mxu0 0
    %2724 = vmatpush2.bf16.msra.mxu0 0
    %2725 = vmatprep.subr.bf16.mxu0 0
    %2726 = vmatpush2.bf16.msra.mxu0 0
    %2727 = vmatprep.subr.bf16.mxu0 0
    %2728 = vmatpush2.bf16.msra.mxu0 0
    %2729 = vmatprep.subr.bf16.mxu0 0
    %2730 = vmatpush2.bf16.msra.mxu0 0
    %2731 = vmatprep.subr.bf16.mxu0 0
    %2732 = vmatpush2.bf16.msra.mxu0 0
    %2733 = vmatprep.subr.bf16.mxu0 0
    %2734 = vmatpush2.bf16.msra.mxu0 0
    %2735 = vmatprep.mubr.bf16.mxu0 0
    %2736 = vmatmul.mubr.bf16.gmra.mxu0 %v2631
    %v2737 = vpop.f32.mrf.mxu0
    %v2738 = vadd.f32 %v2653, %v2737
    %v2739 = vpop.f32.mrf.mxu0
    %v2740 = vpop.f32.mrf.mxu0
    %v2741 = vpop.f32.mrf.mxu0
    %2742 = vdwg.mxu0
    %2743 = vst [vmem:[#allocation13] sm:$0xff] %v2738
    // Predicated region
    $region62: #{tpu_custom_call.1} parent=1 // pred_check
      _
    $region63: #{tpu_custom_call.1} parent=1 // pred_check_branch
      %2745 = sbr.rel (0) target = $region65
    $region64: #{tpu_custom_call.1} parent=1 // pred_region
      %s2747 = ssub.s32 128, 128
      %2748 = vsyncadd [#allocation4], %s2747
      %s2750 = sshll.u32 [#allocation13], 4
      %s2751 = int_to_ptr.vmem [resolvable:$true] %s2750
      %2753 = dma.vmem_to_hbm [thread:$0]  %s2751, 128, %s9, [#allocation4]
    $region65: #{tpu_custom_call.1} parent=1 // pred_fallthru
      _
    // Predicated region
    $region66: #{tpu_custom_call.1} parent=1 // pred_check
      _
    $region67: #{tpu_custom_call.1} parent=1 // pred_check_branch
      %2755 = sbr.rel (0) target = $region69
    $region68: #{tpu_custom_call.1} parent=1 // pred_region
      %2756 = dma.done [#allocation4], 128
    $region69: #{tpu_custom_call.1} parent=1 // pred_fallthru
      _
    %2757 = vsyncpa [#allocation3], 1
    %2758 = vsyncpa [#allocation6], 1
    %2759 = vsyncpa [#allocation9], 1
    %2760 = vsyncpa [#allocation12], 1
    %2761 = vsyncpa [#allocation4], 1

// kernel: tpu_custom_call.1
$region0: #{tpu_custom_call.1}
  #allocation0 [shape = 'u32[]', space=smem, size = 0x4, offset = 0x4, fixed_abs, tag = 'smem constant byte address 0x4 - core index']
  #allocation1 [shape = 'u32[144,128]{1,0:T(1,128)}', space=vmem, size = 0x12000, scoped, tag = 'internal scratch']
  %s0 = inlined_call_operand.hbm [shape: f32[8,12], index: 0, kind: input, shape index: {}]
  %s1 = inlined_call_operand.hbm [shape: bf16[12,1024], index: 1, kind: input, shape index: {}]
  %s2 = inlined_call_operand.hbm [shape: f32[1,1024], index: 2, kind: input, shape index: {}]
  %s3 = inlined_call_operand.hbm [shape: bf16[1024,512], index: 3, kind: input, shape index: {}]
  %s4 = inlined_call_operand.vmem [shape: f32[1,512], index: 4, kind: input, shape index: {}]
  %s5 = inlined_call_operand.hbm [shape: bf16[512,128], index: 5, kind: input, shape index: {}]
  %s6 = inlined_call_operand.vmem [shape: f32[1,128], index: 6, kind: input, shape index: {}]
  %s7 = inlined_call_operand.hbm [shape: bf16[128,128], index: 7, kind: input, shape index: {}]
  %s8 = inlined_call_operand.vmem [shape: f32[1,128], index: 8, kind: input, shape index: {}]
  %s9 = inlined_call_operand.hbm [shape: f32[8,128], index: 9, kind: output, shape index: {}]
  %s10 = sld [smem:[#allocation0]]
  $region70: #{tpu_custom_call.1} parent=0
    _
  %s12 = ssub.s32 1, %s10
  %s13 = scalar_select 0, %s12, %s10
  $region1: #{tpu_custom_call.1} parent=0
    #allocation2 [shape = 'u8[4096]{0}', space=vmem, size = 0x1000, scoped, tag = 'input window, operand 0, single buffered']
    #allocation3 [shape = 's32[1]{0}', space=sflag, size = 0x4, scoped, tag = 'scoped memory for tpu_custom_call.1']
    #allocation4 [shape = 's32[1]{0}', space=sflag, size = 0x4, scoped, tag = 'scoped memory for tpu_custom_call.1']
    #allocation5 [shape = 'u8[32768]{0}', space=vmem, size = 0x8000, scoped, tag = 'input window, operand 1, single buffered']
    #allocation6 [shape = 's32[1]{0}', space=sflag, size = 0x4, scoped, tag = 'scoped memory for tpu_custom_call.1']
    #allocation7 [shape = 'u8[4096]{0}', space=vmem, size = 0x1000, scoped, tag = 'input window, operand 2, single buffered']
    #allocation8 [shape = 'u8[1048576]{0}', space=vmem, size = 0x100000, scoped, tag = 'input window, operand 3, single buffered']
    #allocation9 [shape = 's32[1]{0}', space=sflag, size = 0x4, scoped, tag = 'scoped memory for tpu_custom_call.1']
    #allocation10 [shape = 'u8[131072]{0}', space=vmem, size = 0x20000, scoped, tag = 'input window, operand 5, single buffered']
    #allocation11 [shape = 'u8[32768]{0}', space=vmem, size = 0x8000, scoped, tag = 'input window, operand 7, single buffered']
    #allocation12 [shape = 's32[1]{0}', space=sflag, size = 0x4, scoped, tag = 'scoped memory for tpu_custom_call.1']
    #allocation13 [shape = 'u8[4096]{0}', space=vmem, size = 0x1000, scoped, tag = 'output window, operand 0, single buffered']
    %14 = vsyncpa [#allocation3], 0
    %15 = vsyncpa [#allocation6], 0
    %16 = vsyncpa [#allocation9], 0
    %17 = vsyncpa [#allocation12], 0
    %18 = vsyncpa [#allocation4], 0
    // Predicated region
    $region2: #{tpu_custom_call.1} parent=1 // pred_check
      _
    $region3: #{tpu_custom_call.1} parent=1 // pred_check_branch
      %20 = sbr.rel (0) target = $region5
    $region4: #{tpu_custom_call.1} parent=1 // pred_region
      %s22 = ssub.s32 128, 128
      %23 = vsyncadd [#allocation3], %s22
      %s25 = sshll.u32 [#allocation2], 4
      %s26 = int_to_ptr.vmem [resolvable:$true] %s25
      %28 = dma.hbm_to_vmem [thread:$0]  %s0, 128, %s26, [#allocation3]
    $region5: #{tpu_custom_call.1} parent=1 // pred_fallthru
      _
    // Predicated region
    $region6: #{tpu_custom_call.1} parent=1 // pred_check
      _
    $region7: #{tpu_custom_call.1} parent=1 // pred_check_branch
      %30 = sbr.rel (0) target = $region9
    $region8: #{tpu_custom_call.1} parent=1 // pred_region
      %s32 = ssub.s32 1024, 1024
      %33 = vsyncadd [#allocation6], %s32
      %s34 = sshll.u32 [#allocation5], 4
      %s35 = int_to_ptr.vmem [resolvable:$true] %s34
      %40 = dma.hbm_to_vmem [thread:$0]  %s1, 1024, %s35, [#allocation6], 512, 512, 32
    $region9: #{tpu_custom_call.1} parent=1 // pred_fallthru
      _
    // Predicated region
    $region10: #{tpu_custom_call.1} parent=1 // pred_check
      _
    $region11: #{tpu_custom_call.1} parent=1 // pred_check_branch
      %42 = sbr.rel (0) target = $region13
    $region12: #{tpu_custom_call.1} parent=1 // pred_region
      %s44 = ssub.s32 128, 128
      %45 = vsyncadd [#allocation6], %s44
      %s47 = sshll.u32 [#allocation7], 4
      %s48 = int_to_ptr.vmem [resolvable:$true] %s47
      %50 = dma.hbm_to_vmem [thread:$0]  %s2, 128, %s48, [#allocation6]
    $region13: #{tpu_custom_call.1} parent=1 // pred_fallthru
      _
    // Predicated region
    $region14: #{tpu_custom_call.1} parent=1 // pred_check
      _
    $region15: #{tpu_custom_call.1} parent=1 // pred_check_branch
      %52 = sbr.rel (0) target = $region17
    $region16: #{tpu_custom_call.1} parent=1 // pred_region
      %s54 = ssub.s32 32768, 32768
      %55 = vsyncadd [#allocation9], %s54
      %s56 = sshll.u32 [#allocation8], 4
      %s57 = int_to_ptr.vmem [resolvable:$true] %s56
      %62 = dma.hbm_to_vmem [thread:$0]  %s3, 32768, %s57, [#allocation9], 256, 256, 16
    $region17: #{tpu_custom_call.1} parent=1 // pred_fallthru
      _
    // Predicated region
    $region18: #{tpu_custom_call.1} parent=1 // pred_check
      _
    $region19: #{tpu_custom_call.1} parent=1 // pred_check_branch
      %64 = sbr.rel (0) target = $region21
    $region20: #{tpu_custom_call.1} parent=1 // pred_region
      _
    $region21: #{tpu_custom_call.1} parent=1 // pred_fallthru
      _
    // Predicated region
    $region22: #{tpu_custom_call.1} parent=1 // pred_check
      _
    $region23: #{tpu_custom_call.1} parent=1 // pred_check_branch
      %66 = sbr.rel (0) target = $region25
    $region24: #{tpu_custom_call.1} parent=1 // pred_region
      %s68 = ssub.s32 4096, 4096
      %69 = vsyncadd [#allocation9], %s68
      %s70 = sshll.u32 [#allocation10], 4
      %s71 = int_to_ptr.vmem [resolvable:$true] %s70
      %76 = dma.hbm_to_vmem [thread:$0]  %s5, 4096, %s71, [#allocation9], 64, 64, 4
    $region25: #{tpu_custom_call.1} parent=1 // pred_fallthru
      _
    // Predicated region
    $region26: #{tpu_custom_call.1} parent=1 // pred_check
      _
    $region27: #{tpu_custom_call.1} parent=1 // pred_check_branch
      %78 = sbr.rel (0) target = $region29
    $region28: #{tpu_custom_call.1} parent=1 // pred_region
      _
    $region29: #{tpu_custom_call.1} parent=1 // pred_fallthru
      _
    // Predicated region
    $region30: #{tpu_custom_call.1} parent=1 // pred_check
      _
    $region31: #{tpu_custom_call.1} parent=1 // pred_check_branch
      %80 = sbr.rel (0) target = $region33
    $region32: #{tpu_custom_call.1} parent=1 // pred_region
      %s82 = ssub.s32 1024, 1024
      %83 = vsyncadd [#allocation12], %s82
      %s84 = sshll.u32 [#allocation11], 4
      %s85 = int_to_ptr.vmem [resolvable:$true] %s84
      %90 = dma.hbm_to_vmem [thread:$0]  %s7, 1024, %s85, [#allocation12], 64, 64, 4
    $region33: #{tpu_custom_call.1} parent=1 // pred_fallthru
      _
    // Predicated region
    $region34: #{tpu_custom_call.1} parent=1 // pred_check
      _
    $region35: #{tpu_custom_call.1} parent=1 // pred_check_branch
      %92 = sbr.rel (0) target = $region37
    $region36: #{tpu_custom_call.1} parent=1 // pred_region
      _
    $region37: #{tpu_custom_call.1} parent=1 // pred_fallthru
      _
    // Predicated region
    $region38: #{tpu_custom_call.1} parent=1 // pred_check
      _
    $region39: #{tpu_custom_call.1} parent=1 // pred_check_branch
      %94 = sbr.rel (0) target = $region41
    $region40: #{tpu_custom_call.1} parent=1 // pred_region
      %95 = dma.done [#allocation3], 128
    $region41: #{tpu_custom_call.1} parent=1 // pred_fallthru
      _
    // Predicated region
    $region42: #{tpu_custom_call.1} parent=1 // pred_check
      _
    $region43: #{tpu_custom_call.1} parent=1 // pred_check_branch
      %97 = sbr.rel (0) target = $region45
    $region44: #{tpu_custom_call.1} parent=1 // pred_region
      %98 = dma.done [#allocation6], 1024
    $region45: #{tpu_custom_call.1} parent=1 // pred_fallthru
      _
    // Predicated region
    $region46: #{tpu_custom_call.1} parent=1 // pred_check
      _
    $region47: #{tpu_custom_call.1} parent=1 // pred_check_branch
      %100 = sbr.rel (0) target = $region49
    $region48: #{tpu_custom_call.1} parent=1 // pred_region
      %101 = dma.done [#allocation6], 128
    $region49: #{tpu_custom_call.1} parent=1 // pred_fallthru
      _
    // Predicated region
    $region50: #{tpu_custom_call.1} parent=1 // pred_check
      _
    $region51: #{tpu_custom_call.1} parent=1 // pred_check_branch
      %103 = sbr.rel (0) target = $region53
    $region52: #{tpu_custom_call.1} parent=1 // pred_region
      %104 = dma.done [#allocation9], 32768
    $region53: #{tpu_custom_call.1} parent=1 // pred_fallthru
      _
    // Predicated region
    $region54: #{tpu_custom_call.1} parent=1 // pred_check
      _
    $region55: #{tpu_custom_call.1} parent=1 // pred_check_branch
      %106 = sbr.rel (0) target = $region57
    $region56: #{tpu_custom_call.1} parent=1 // pred_region
      %107 = dma.done [#allocation9], 4096
    $region57: #{tpu_custom_call.1} parent=1 // pred_fallthru
      _
    // Predicated region
    $region58: #{tpu_custom_call.1} parent=1 // pred_check
      _
    $region59: #{tpu_custom_call.1} parent=1 // pred_check_branch
      %109 = sbr.rel (0) target = $region61
    $region60: #{tpu_custom_call.1} parent=1 // pred_region
      %110 = dma.done [#allocation12], 1024
    $region61: #{tpu_custom_call.1} parent=1 // pred_fallthru
      _
    %v112 = vld [vmem:[#allocation2] sm:$0xff]
    %v113 = vpack.c.bf16 %v112, %v112
    %v114 = vld [vmem:[#allocation5] sm:$0xff]
    %v115 = vld [vmem:[#allocation5 + $0x8] sm:$0xff]
    %v116 = vld [vmem:[#allocation5 + $0x10] sm:$0xff]
    %v117 = vld [vmem:[#allocation5 + $0x18] sm:$0xff]
    %v118 = vld [vmem:[#allocation5 + $0x20] sm:$0x33]
    %v119 = vld [vmem:[#allocation5 + $0x28] sm:$0x33]
    %v120 = vld [vmem:[#allocation5 + $0x30] sm:$0x33]
    %v121 = vld [vmem:[#allocation5 + $0x38] sm:$0x33]
    %v122 = vld [vmem:[#allocation7] sm:$0xff]
    %v124 = vlaneseq
    %v125 = vshrl.u32 %v124, 7
    %v126 = vsub.s32 0, %v125
    %v127 = vrot.slane %v122, %v126
    %v128 = vlaneseq
    %v129 = vshrl.u32 %v128, 7
    %v130 = vsub.s32 1, %v129
    %v131 = vrot.slane %v122, %v130
    %v132 = vlaneseq
    %v133 = vshrl.u32 %v132, 7
    %v134 = vsub.s32 2, %v133
    %v135 = vrot.slane %v122, %v134
    %v136 = vlaneseq
    %v137 = vshrl.u32 %v136, 7
    %v138 = vsub.s32 3, %v137
    %v139 = vrot.slane %v122, %v138
    %v140 = vlaneseq
    %v141 = vshrl.u32 %v140, 7
    %v142 = vsub.s32 4, %v141
    %v143 = vrot.slane %v122, %v142
    %v144 = vlaneseq
    %v145 = vshrl.u32 %v144, 7
    %v146 = vsub.s32 5, %v145
    %v147 = vrot.slane %v122, %v146
    %v148 = vlaneseq
    %v149 = vshrl.u32 %v148, 7
    %v150 = vsub.s32 6, %v149
    %v151 = vrot.slane %v122, %v150
    %v152 = vlaneseq
    %v153 = vshrl.u32 %v152, 7
    %v154 = vsub.s32 7, %v153
    %v155 = vrot.slane %v122, %v154
    %v172 = vunpack.c.l.b16 %v114
    %v173 = vunpack.c.h.b16 %v114
    %v174 = vunpack.c.l.b16 %v115
    %v175 = vunpack.c.h.b16 %v115
    %v176 = vunpack.c.l.b16 %v116
    %v177 = vunpack.c.h.b16 %v116
    %v178 = vunpack.c.l.b16 %v117
    %v179 = vunpack.c.h.b16 %v117
    %v180 = vunpack.c.l.b16 %v118
    %v181 = vunpack.c.h.b16 %v118
    %v182 = vunpack.c.l.b16 %v119
    %v183 = vunpack.c.h.b16 %v119
    %v184 = vunpack.c.l.b16 %v120
    %v185 = vunpack.c.h.b16 %v120
    %v186 = vunpack.c.l.b16 %v121
    %v187 = vunpack.c.h.b16 %v121
    %v188 = vpack.c.b16 %v180, %v172
    %v189 = vpack.c.b16 %v181, %v173
    %v190 = vpack.c.b16 %v182, %v174
    %v191 = vpack.c.b16 %v183, %v175
    %v192 = vpack.c.b16 %v184, %v176
    %v193 = vpack.c.b16 %v185, %v177
    %v194 = vpack.c.b16 %v186, %v178
    %v195 = vpack.c.b16 %v187, %v179
    %vm196 = vcmask 97280
    %v198 = vsel %vm196, %v113, 0
    %vm200 = vcmask 1045504
    %v202 = vsel %vm200, %v188, 0
    %v205 = vsel %vm200, %v189, 0
    %v208 = vsel %vm200, %v190, 0
    %v211 = vsel %vm200, %v191, 0
    %v214 = vsel %vm200, %v192, 0
    %v217 = vsel %vm200, %v193, 0
    %v220 = vsel %vm200, %v194, 0
    %v223 = vsel %vm200, %v195, 0
    %225 = vmatprep.subr.bf16.mxu0 0
    %226 = vmatpush1.bf16.msra.mxu0 0
    %227 = vmatprep.subr.bf16.mxu0 0
    %228 = vmatpush1.bf16.msra.mxu0 0
    %229 = vmatprep.subr.bf16.mxu0 0
    %230 = vmatpush1.bf16.msra.mxu0 0
    %231 = vmatprep.subr.bf16.mxu0 0
    %232 = vmatpush1.bf16.msra.mxu0 0
    %233 = vmatprep.subr.bf16.mxu0 0
    %234 = vmatpush1.bf16.msra.mxu0 0
    %235 = vmatprep.subr.bf16.mxu0 0
    %236 = vmatpush1.bf16.msra.mxu0 0
    %237 = vmatprep.subr.bf16.mxu0 0
    %238 = vmatpush1.bf16.msra.mxu0 0
    %239 = vmatprep.subr.bf16.mxu0 %v205
    %240 = vmatpush1.bf16.msra.mxu0 %v202
    %241 = vmatprep.subr.bf16.mxu0 0
    %242 = vmatpush2.bf16.msra.mxu0 0
    %243 = vmatprep.subr.bf16.mxu0 0
    %244 = vmatpush2.bf16.msra.mxu0 0
    %245 = vmatprep.subr.bf16.mxu0 0
    %246 = vmatpush2.bf16.msra.mxu0 0
    %247 = vmatprep.subr.bf16.mxu0 0
    %248 = vmatpush2.bf16.msra.mxu0 0
    %249 = vmatprep.subr.bf16.mxu0 0
    %250 = vmatpush2.bf16.msra.mxu0 0
    %251 = vmatprep.subr.bf16.mxu0 0
    %252 = vmatpush2.bf16.msra.mxu0 0
    %253 = vmatprep.subr.bf16.mxu0 0
    %254 = vmatpush2.bf16.msra.mxu0 0
    %255 = vmatprep.subr.bf16.mxu0 0
    %256 = vmatpush2.bf16.msra.mxu0 0
    %257 = vmatprep.mubr.bf16.mxu0 0
    %258 = vmatmul.mubr.bf16.gmra.mxu0 %v198
    %v259 = vpop.f32.mrf.mxu0
    %v260 = vadd.f32 %v127, %v259
    %v261 = vpop.f32.mrf.mxu0
    %v262 = vadd.f32 %v131, %v261
    %v263 = vpop.f32.mrf.mxu0
    %v264 = vpop.f32.mrf.mxu0
    %265 = vdwg.mxu0
    %266 = vmatprep.subr.bf16.mxu0 0
    %267 = vmatpush1.bf16.msra.mxu0 0
    %268 = vmatprep.subr.bf16.mxu0 0
    %269 = vmatpush1.bf16.msra.mxu0 0
    %270 = vmatprep.subr.bf16.mxu0 0
    %271 = vmatpush1.bf16.msra.mxu0 0
    %272 = vmatprep.subr.bf16.mxu0 0
    %273 = vmatpush1.bf16.msra.mxu0 0
    %274 = vmatprep.subr.bf16.mxu0 0
    %275 = vmatpush1.bf16.msra.mxu0 0
    %276 = vmatprep.subr.bf16.mxu0 0
    %277 = vmatpush1.bf16.msra.mxu0 0
    %278 = vmatprep.subr.bf16.mxu0 0
    %279 = vmatpush1.bf16.msra.mxu0 0
    %280 = vmatprep.subr.bf16.mxu0 %v211
    %281 = vmatpush1.bf16.msra.mxu0 %v208
    %282 = vmatprep.subr.bf16.mxu0 0
    %283 = vmatpush2.bf16.msra.mxu0 0
    %284 = vmatprep.subr.bf16.mxu0 0
    %285 = vmatpush2.bf16.msra.mxu0 0
    %286 = vmatprep.subr.bf16.mxu0 0
    %287 = vmatpush2.bf16.msra.mxu0 0
    %288 = vmatprep.subr.bf16.mxu0 0
    %289 = vmatpush2.bf16.msra.mxu0 0
    %290 = vmatprep.subr.bf16.mxu0 0
    %291 = vmatpush2.bf16.msra.mxu0 0
    %292 = vmatprep.subr.bf16.mxu0 0
    %293 = vmatpush2.bf16.msra.mxu0 0
    %294 = vmatprep.subr.bf16.mxu0 0
    %295 = vmatpush2.bf16.msra.mxu0 0
    %296 = vmatprep.subr.bf16.mxu0 0
    %297 = vmatpush2.bf16.msra.mxu0 0
    %298 = vmatprep.mubr.bf16.mxu0 0
    %299 = vmatmul.mubr.bf16.gmra.mxu0 %v198
    %v300 = vpop.f32.mrf.mxu0
    %v301 = vadd.f32 %v135, %v300
    %v302 = vpop.f32.mrf.mxu0
    %v303 = vadd.f32 %v139, %v302
    %v304 = vpop.f32.mrf.mxu0
    %v305 = vpop.f32.mrf.mxu0
    %306 = vdwg.mxu0
    %307 = vmatprep.subr.bf16.mxu0 0
    %308 = vmatpush1.bf16.msra.mxu0 0
    %309 = vmatprep.subr.bf16.mxu0 0
    %310 = vmatpush1.bf16.msra.mxu0 0
    %311 = vmatprep.subr.bf16.mxu0 0
    %312 = vmatpush1.bf16.msra.mxu0 0
    %313 = vmatprep.subr.bf16.mxu0 0
    %314 = vmatpush1.bf16.msra.mxu0 0
    %315 = vmatprep.subr.bf16.mxu0 0
    %316 = vmatpush1.bf16.msra.mxu0 0
    %317 = vmatprep.subr.bf16.mxu0 0
    %318 = vmatpush1.bf16.msra.mxu0 0
    %319 = vmatprep.subr.bf16.mxu0 0
    %320 = vmatpush1.bf16.msra.mxu0 0
    %321 = vmatprep.subr.bf16.mxu0 %v217
    %322 = vmatpush1.bf16.msra.mxu0 %v214
    %323 = vmatprep.subr.bf16.mxu0 0
    %324 = vmatpush2.bf16.msra.mxu0 0
    %325 = vmatprep.subr.bf16.mxu0 0
    %326 = vmatpush2.bf16.msra.mxu0 0
    %327 = vmatprep.subr.bf16.mxu0 0
    %328 = vmatpush2.bf16.msra.mxu0 0
    %329 = vmatprep.subr.bf16.mxu0 0
    %330 = vmatpush2.bf16.msra.mxu0 0
    %331 = vmatprep.subr.bf16.mxu0 0
    %332 = vmatpush2.bf16.msra.mxu0 0
    %333 = vmatprep.subr.bf16.mxu0 0
    %334 = vmatpush2.bf16.msra.mxu0 0
    %335 = vmatprep.subr.bf16.mxu0 0
    %336 = vmatpush2.bf16.msra.mxu0 0
    %337 = vmatprep.subr.bf16.mxu0 0
    %338 = vmatpush2.bf16.msra.mxu0 0
    %339 = vmatprep.mubr.bf16.mxu0 0
    %340 = vmatmul.mubr.bf16.gmra.mxu0 %v198
    %v341 = vpop.f32.mrf.mxu0
    %v342 = vadd.f32 %v143, %v341
    %v343 = vpop.f32.mrf.mxu0
    %v344 = vadd.f32 %v147, %v343
    %v345 = vpop.f32.mrf.mxu0
    %v346 = vpop.f32.mrf.mxu0
    %347 = vdwg.mxu0
    %348 = vmatprep.subr.bf16.mxu0 0
    %349 = vmatpush1.bf16.msra.mxu0 0
    %350 = vmatprep.subr.bf16.mxu0 0
    %351 = vmatpush1.bf16.msra.mxu0 0
    %352 = vmatprep.subr.bf16.mxu0 0
    %353 = vmatpush1.bf16.msra.mxu0 0
    %354 = vmatprep.subr.bf16.mxu0 0
    %355 = vmatpush1.bf16.msra.mxu0 0
    %356 = vmatprep.subr.bf16.mxu0 0
    %357 = vmatpush1.bf16.msra.mxu0 0
    %358 = vmatprep.subr.bf16.mxu0 0
    %359 = vmatpush1.bf16.msra.mxu0 0
    %360 = vmatprep.subr.bf16.mxu0 0
    %361 = vmatpush1.bf16.msra.mxu0 0
    %362 = vmatprep.subr.bf16.mxu0 %v223
    %363 = vmatpush1.bf16.msra.mxu0 %v220
    %364 = vmatprep.subr.bf16.mxu0 0
    %365 = vmatpush2.bf16.msra.mxu0 0
    %366 = vmatprep.subr.bf16.mxu0 0
    %367 = vmatpush2.bf16.msra.mxu0 0
    %368 = vmatprep.subr.bf16.mxu0 0
    %369 = vmatpush2.bf16.msra.mxu0 0
    %370 = vmatprep.subr.bf16.mxu0 0
    %371 = vmatpush2.bf16.msra.mxu0 0
    %372 = vmatprep.subr.bf16.mxu0 0
    %373 = vmatpush2.bf16.msra.mxu0 0
    %374 = vmatprep.subr.bf16.mxu0 0
    %375 = vmatpush2.bf16.msra.mxu0 0
    %376 = vmatprep.subr.bf16.mxu0 0
    %377 = vmatpush2.bf16.msra.mxu0 0
    %378 = vmatprep.subr.bf16.mxu0 0
    %379 = vmatpush2.bf16.msra.mxu0 0
    %380 = vmatprep.mubr.bf16.mxu0 0
    %381 = vmatmul.mubr.bf16.gmra.mxu0 %v198
    %v382 = vpop.f32.mrf.mxu0
    %v383 = vadd.f32 %v151, %v382
    %v384 = vpop.f32.mrf.mxu0
    %v385 = vadd.f32 %v155, %v384
    %v386 = vpop.f32.mrf.mxu0
    %v387 = vpop.f32.mrf.mxu0
    %388 = vdwg.mxu0
    %v389 = vpack.c.bf16 %v260, %v260
    %v390 = vpack.c.bf16 %v262, %v262
    %v391 = vpack.c.bf16 %v301, %v301
    %v392 = vpack.c.bf16 %v303, %v303
    %v393 = vpack.c.bf16 %v342, %v342
    %v394 = vpack.c.bf16 %v344, %v344
    %v395 = vpack.c.bf16 %v383, %v383
    %v396 = vpack.c.bf16 %v385, %v385
    %v397 = vld [vmem:[#allocation8] sm:$0xff]
    %v398 = vld [vmem:[#allocation8 + $0x8] sm:$0xff]
    %v399 = vld [vmem:[#allocation8 + $0x10] sm:$0xff]
    %v400 = vld [vmem:[#allocation8 + $0x18] sm:$0xff]
    %v401 = vld [vmem:[#allocation8 + $0x20] sm:$0xff]
    %v402 = vld [vmem:[#allocation8 + $0x28] sm:$0xff]
    %v403 = vld [vmem:[#allocation8 + $0x30] sm:$0xff]
    %v404 = vld [vmem:[#allocation8 + $0x38] sm:$0xff]
    %v405 = vld [vmem:[#allocation8 + $0x40] sm:$0xff]
    %v406 = vld [vmem:[#allocation8 + $0x48] sm:$0xff]
    %v407 = vld [vmem:[#allocation8 + $0x50] sm:$0xff]
    %v408 = vld [vmem:[#allocation8 + $0x58] sm:$0xff]
    %v409 = vld [vmem:[#allocation8 + $0x60] sm:$0xff]
    %v410 = vld [vmem:[#allocation8 + $0x68] sm:$0xff]
    %v411 = vld [vmem:[#allocation8 + $0x70] sm:$0xff]
    %v412 = vld [vmem:[#allocation8 + $0x78] sm:$0xff]
    %v413 = vld [vmem:[#allocation8 + $0x80] sm:$0xff]
    %v414 = vld [vmem:[#allocation8 + $0x88] sm:$0xff]
    %v415 = vld [vmem:[#allocation8 + $0x90] sm:$0xff]
    %v416 = vld [vmem:[#allocation8 + $0x98] sm:$0xff]
    %v417 = vld [vmem:[#allocation8 + $0xa0] sm:$0xff]
    %v418 = vld [vmem:[#allocation8 + $0xa8] sm:$0xff]
    %v419 = vld [vmem:[#allocation8 + $0xb0] sm:$0xff]
    %v420 = vld [vmem:[#allocation8 + $0xb8] sm:$0xff]
    %v421 = vld [vmem:[#allocation8 + $0xc0] sm:$0xff]
    %v422 = vld [vmem:[#allocation8 + $0xc8] sm:$0xff]
    %v423 = vld [vmem:[#allocation8 + $0xd0] sm:$0xff]
    %v424 = vld [vmem:[#allocation8 + $0xd8] sm:$0xff]
    %v425 = vld [vmem:[#allocation8 + $0xe0] sm:$0xff]
    %v426 = vld [vmem:[#allocation8 + $0xe8] sm:$0xff]
    %v427 = vld [vmem:[#allocation8 + $0xf0] sm:$0xff]
    %v428 = vld [vmem:[#allocation8 + $0xf8] sm:$0xff]
    %v429 = vld [vmem:[#allocation8 + $0x100] sm:$0xff]
    %v430 = vld [vmem:[#allocation8 + $0x108] sm:$0xff]
    %v431 = vld [vmem:[#allocation8 + $0x110] sm:$0xff]
    %v432 = vld [vmem:[#allocation8 + $0x118] sm:$0xff]
    %v433 = vld [vmem:[#allocation8 + $0x120] sm:$0xff]
    %v434 = vld [vmem:[#allocation8 + $0x128] sm:$0xff]
    %v435 = vld [vmem:[#allocation8 + $0x130] sm:$0xff]
    %v436 = vld [vmem:[#allocation8 + $0x138] sm:$0xff]
    %v437 = vld [vmem:[#allocation8 + $0x140] sm:$0xff]
    %v438 = vld [vmem:[#allocation8 + $0x148] sm:$0xff]
    %v439 = vld [vmem:[#allocation8 + $0x150] sm:$0xff]
    %v440 = vld [vmem:[#allocation8 + $0x158] sm:$0xff]
    %v441 = vld [vmem:[#allocation8 + $0x160] sm:$0xff]
    %v442 = vld [vmem:[#allocation8 + $0x168] sm:$0xff]
    %v443 = vld [vmem:[#allocation8 + $0x170] sm:$0xff]
    %v444 = vld [vmem:[#allocation8 + $0x178] sm:$0xff]
    %v445 = vld [vmem:[#allocation8 + $0x180] sm:$0xff]
    %v446 = vld [vmem:[#allocation8 + $0x188] sm:$0xff]
    %v447 = vld [vmem:[#allocation8 + $0x190] sm:$0xff]
    %v448 = vld [vmem:[#allocation8 + $0x198] sm:$0xff]
    %v449 = vld [vmem:[#allocation8 + $0x1a0] sm:$0xff]
    %v450 = vld [vmem:[#allocation8 + $0x1a8] sm:$0xff]
    %v451 = vld [vmem:[#allocation8 + $0x1b0] sm:$0xff]
    %v452 = vld [vmem:[#allocation8 + $0x1b8] sm:$0xff]
    %v453 = vld [vmem:[#allocation8 + $0x1c0] sm:$0xff]
    %v454 = vld [vmem:[#allocation8 + $0x1c8] sm:$0xff]
    %v455 = vld [vmem:[#allocation8 + $0x1d0] sm:$0xff]
    %v456 = vld [vmem:[#allocation8 + $0x1d8] sm:$0xff]
    %v457 = vld [vmem:[#allocation8 + $0x1e0] sm:$0xff]
    %v458 = vld [vmem:[#allocation8 + $0x1e8] sm:$0xff]
    %v459 = vld [vmem:[#allocation8 + $0x1f0] sm:$0xff]
    %v460 = vld [vmem:[#allocation8 + $0x1f8] sm:$0xff]
    %v461 = vld [vmem:[#allocation8 + $0x200] sm:$0xff]
    %v462 = vld [vmem:[#allocation8 + $0x208] sm:$0xff]
    %v463 = vld [vmem:[#allocation8 + $0x210] sm:$0xff]
    %v464 = vld [vmem:[#allocation8 + $0x218] sm:$0xff]
    %v465 = vld [vmem:[#allocation8 + $0x220] sm:$0xff]
    %v466 = vld [vmem:[#allocation8 + $0x228] sm:$0xff]
    %v467 = vld [vmem:[#allocation8 + $0x230] sm:$0xff]
    %v468 = vld [vmem:[#allocation8 + $0x238] sm:$0xff]
    %v469 = vld [vmem:[#allocation8 + $0x240] sm:$0xff]
    %v470 = vld [vmem:[#allocation8 + $0x248] sm:$0xff]
    %v471 = vld [vmem:[#allocation8 + $0x250] sm:$0xff]
    %v472 = vld [vmem:[#allocation8 + $0x258] sm:$0xff]
    %v473 = vld [vmem:[#allocation8 + $0x260] sm:$0xff]
    %v474 = vld [vmem:[#allocation8 + $0x268] sm:$0xff]
    %v475 = vld [vmem:[#allocation8 + $0x270] sm:$0xff]
    %v476 = vld [vmem:[#allocation8 + $0x278] sm:$0xff]
    %v477 = vld [vmem:[#allocation8 + $0x280] sm:$0xff]
    %v478 = vld [vmem:[#allocation8 + $0x288] sm:$0xff]
    %v479 = vld [vmem:[#allocation8 + $0x290] sm:$0xff]
    %v480 = vld [vmem:[#allocation8 + $0x298] sm:$0xff]
    %v481 = vld [vmem:[#allocation8 + $0x2a0] sm:$0xff]
    %v482 = vld [vmem:[#allocation8 + $0x2a8] sm:$0xff]
    %v483 = vld [vmem:[#allocation8 + $0x2b0] sm:$0xff]
    %v484 = vld [vmem:[#allocation8 + $0x2b8] sm:$0xff]
    %v485 = vld [vmem:[#allocation8 + $0x2c0] sm:$0xff]
    %v486 = vld [vmem:[#allocation8 + $0x2c8] sm:$0xff]
    %v487 = vld [vmem:[#allocation8 + $0x2d0] sm:$0xff]
    %v488 = vld [vmem:[#allocation8 + $0x2d8] sm:$0xff]
    %v489 = vld [vmem:[#allocation8 + $0x2e0] sm:$0xff]
    %v490 = vld [vmem:[#allocation8 + $0x2e8] sm:$0xff]
    %v491 = vld [vmem:[#allocation8 + $0x2f0] sm:$0xff]
    %v492 = vld [vmem:[#allocation8 + $0x2f8] sm:$0xff]
    %v493 = vld [vmem:[#allocation8 + $0x300] sm:$0xff]
    %v494 = vld [vmem:[#allocation8 + $0x308] sm:$0xff]
    %v495 = vld [vmem:[#allocation8 + $0x310] sm:$0xff]
    %v496 = vld [vmem:[#allocation8 + $0x318] sm:$0xff]
    %v497 = vld [vmem:[#allocation8 + $0x320] sm:$0xff]
    %v498 = vld [vmem:[#allocation8 + $0x328] sm:$0xff]
    %v499 = vld [vmem:[#allocation8 + $0x330] sm:$0xff]
    %v500 = vld [vmem:[#allocation8 + $0x338] sm:$0xff]
    %v501 = vld [vmem:[#allocation8 + $0x340] sm:$0xff]
    %v502 = vld [vmem:[#allocation8 + $0x348] sm:$0xff]
    %v503 = vld [vmem:[#allocation8 + $0x350] sm:$0xff]
    %v504 = vld [vmem:[#allocation8 + $0x358] sm:$0xff]
    %v505 = vld [vmem:[#allocation8 + $0x360] sm:$0xff]
    %v506 = vld [vmem:[#allocation8 + $0x368] sm:$0xff]
    %v507 = vld [vmem:[#allocation8 + $0x370] sm:$0xff]
    %v508 = vld [vmem:[#allocation8 + $0x378] sm:$0xff]
    %v509 = vld [vmem:[#allocation8 + $0x380] sm:$0xff]
    %v510 = vld [vmem:[#allocation8 + $0x388] sm:$0xff]
    %v511 = vld [vmem:[#allocation8 + $0x390] sm:$0xff]
    %v512 = vld [vmem:[#allocation8 + $0x398] sm:$0xff]
    %v513 = vld [vmem:[#allocation8 + $0x3a0] sm:$0xff]
    %v514 = vld [vmem:[#allocation8 + $0x3a8] sm:$0xff]
    %v515 = vld [vmem:[#allocation8 + $0x3b0] sm:$0xff]
    %v516 = vld [vmem:[#allocation8 + $0x3b8] sm:$0xff]
    %v517 = vld [vmem:[#allocation8 + $0x3c0] sm:$0xff]
    %v518 = vld [vmem:[#allocation8 + $0x3c8] sm:$0xff]
    %v519 = vld [vmem:[#allocation8 + $0x3d0] sm:$0xff]
    %v520 = vld [vmem:[#allocation8 + $0x3d8] sm:$0xff]
    %v521 = vld [vmem:[#allocation8 + $0x3e0] sm:$0xff]
    %v522 = vld [vmem:[#allocation8 + $0x3e8] sm:$0xff]
    %v523 = vld [vmem:[#allocation8 + $0x3f0] sm:$0xff]
    %v524 = vld [vmem:[#allocation8 + $0x3f8] sm:$0xff]
    %v525 = vld [vmem:[#allocation8 + $0x400] sm:$0xff]
    %v526 = vld [vmem:[#allocation8 + $0x408] sm:$0xff]
    %v527 = vld [vmem:[#allocation8 + $0x410] sm:$0xff]
    %v528 = vld [vmem:[#allocation8 + $0x418] sm:$0xff]
    %v529 = vld [vmem:[#allocation8 + $0x420] sm:$0xff]
    %v530 = vld [vmem:[#allocation8 + $0x428] sm:$0xff]
    %v531 = vld [vmem:[#allocation8 + $0x430] sm:$0xff]
    %v532 = vld [vmem:[#allocation8 + $0x438] sm:$0xff]
    %v533 = vld [vmem:[#allocation8 + $0x440] sm:$0xff]
    %v534 = vld [vmem:[#allocation8 + $0x448] sm:$0xff]
    %v535 = vld [vmem:[#allocation8 + $0x450] sm:$0xff]
    %v536 = vld [vmem:[#allocation8 + $0x458] sm:$0xff]
    %v537 = vld [vmem:[#allocation8 + $0x460] sm:$0xff]
    %v538 = vld [vmem:[#allocation8 + $0x468] sm:$0xff]
    %v539 = vld [vmem:[#allocation8 + $0x470] sm:$0xff]
    %v540 = vld [vmem:[#allocation8 + $0x478] sm:$0xff]
    %v541 = vld [vmem:[#allocation8 + $0x480] sm:$0xff]
    %v542 = vld [vmem:[#allocation8 + $0x488] sm:$0xff]
    %v543 = vld [vmem:[#allocation8 + $0x490] sm:$0xff]
    %v544 = vld [vmem:[#allocation8 + $0x498] sm:$0xff]
    %v545 = vld [vmem:[#allocation8 + $0x4a0] sm:$0xff]
    %v546 = vld [vmem:[#allocation8 + $0x4a8] sm:$0xff]
    %v547 = vld [vmem:[#allocation8 + $0x4b0] sm:$0xff]
    %v548 = vld [vmem:[#allocation8 + $0x4b8] sm:$0xff]
    %v549 = vld [vmem:[#allocation8 + $0x4c0] sm:$0xff]
    %v550 = vld [vmem:[#allocation8 + $0x4c8] sm:$0xff]
    %v551 = vld [vmem:[#allocation8 + $0x4d0] sm:$0xff]
    %v552 = vld [vmem:[#allocation8 + $0x4d8] sm:$0xff]
    %v553 = vld [vmem:[#allocation8 + $0x4e0] sm:$0xff]
    %v554 = vld [vmem:[#allocation8 + $0x4e8] sm:$0xff]
    %v555 = vld [vmem:[#allocation8 + $0x4f0] sm:$0xff]
    %v556 = vld [vmem:[#allocation8 + $0x4f8] sm:$0xff]
    %v557 = vld [vmem:[#allocation8 + $0x500] sm:$0xff]
    %v558 = vld [vmem:[#allocation8 + $0x508] sm:$0xff]
    %v559 = vld [vmem:[#allocation8 + $0x510] sm:$0xff]
    %v560 = vld [vmem:[#allocation8 + $0x518] sm:$0xff]
    %v561 = vld [vmem:[#allocation8 + $0x520] sm:$0xff]
    %v562 = vld [vmem:[#allocation8 + $0x528] sm:$0xff]
    %v563 = vld [vmem:[#allocation8 + $0x530] sm:$0xff]
    %v564 = vld [vmem:[#allocation8 + $0x538] sm:$0xff]
    %v565 = vld [vmem:[#allocation8 + $0x540] sm:$0xff]
    %v566 = vld [vmem:[#allocation8 + $0x548] sm:$0xff]
    %v567 = vld [vmem:[#allocation8 + $0x550] sm:$0xff]
    %v568 = vld [vmem:[#allocation8 + $0x558] sm:$0xff]
    %v569 = vld [vmem:[#allocation8 + $0x560] sm:$0xff]
    %v570 = vld [vmem:[#allocation8 + $0x568] sm:$0xff]
    %v571 = vld [vmem:[#allocation8 + $0x570] sm:$0xff]
    %v572 = vld [vmem:[#allocation8 + $0x578] sm:$0xff]
    %v573 = vld [vmem:[#allocation8 + $0x580] sm:$0xff]
    %v574 = vld [vmem:[#allocation8 + $0x588] sm:$0xff]
    %v575 = vld [vmem:[#allocation8 + $0x590] sm:$0xff]
    %v576 = vld [vmem:[#allocation8 + $0x598] sm:$0xff]
    %v577 = vld [vmem:[#allocation8 + $0x5a0] sm:$0xff]
    %v578 = vld [vmem:[#allocation8 + $0x5a8] sm:$0xff]
    %v579 = vld [vmem:[#allocation8 + $0x5b0] sm:$0xff]
    %v580 = vld [vmem:[#allocation8 + $0x5b8] sm:$0xff]
    %v581 = vld [vmem:[#allocation8 + $0x5c0] sm:$0xff]
    %v582 = vld [vmem:[#allocation8 + $0x5c8] sm:$0xff]
    %v583 = vld [vmem:[#allocation8 + $0x5d0] sm:$0xff]
    %v584 = vld [vmem:[#allocation8 + $0x5d8] sm:$0xff]
    %v585 = vld [vmem:[#allocation8 + $0x5e0] sm:$0xff]
    %v586 = vld [vmem:[#allocation8 + $0x5e8] sm:$0xff]
    %v587 = vld [vmem:[#allocation8 + $0x5f0] sm:$0xff]
    %v588 = vld [vmem:[#allocation8 + $0x5f8] sm:$0xff]
    %v589 = vld [vmem:[#allocation8 + $0x600] sm:$0xff]
    %v590 = vld [vmem:[#allocation8 + $0x608] sm:$0xff]
    %v591 = vld [vmem:[#allocation8 + $0x610] sm:$0xff]
    %v592 = vld [vmem:[#allocation8 + $0x618] sm:$0xff]
    %v593 = vld [vmem:[#allocation8 + $0x620] sm:$0xff]
    %v594 = vld [vmem:[#allocation8 + $0x628] sm:$0xff]
    %v595 = vld [vmem:[#allocation8 + $0x630] sm:$0xff]
    %v596 = vld [vmem:[#allocation8 + $0x638] sm:$0xff]
    %v597 = vld [vmem:[#allocation8 + $0x640] sm:$0xff]
    %v598 = vld [vmem:[#allocation8 + $0x648] sm:$0xff]
    %v599 = vld [vmem:[#allocation8 + $0x650] sm:$0xff]
    %v600 = vld [vmem:[#allocation8 + $0x658] sm:$0xff]
    %v601 = vld [vmem:[#allocation8 + $0x660] sm:$0xff]
    %v602 = vld [vmem:[#allocation8 + $0x668] sm:$0xff]
    %v603 = vld [vmem:[#allocation8 + $0x670] sm:$0xff]
    %v604 = vld [vmem:[#allocation8 + $0x678] sm:$0xff]
    %v605 = vld [vmem:[#allocation8 + $0x680] sm:$0xff]
    %v606 = vld [vmem:[#allocation8 + $0x688] sm:$0xff]
    %v607 = vld [vmem:[#allocation8 + $0x690] sm:$0xff]
    %v608 = vld [vmem:[#allocation8 + $0x698] sm:$0xff]
    %v609 = vld [vmem:[#allocation8 + $0x6a0] sm:$0xff]
    %v610 = vld [vmem:[#allocation8 + $0x6a8] sm:$0xff]
    %v611 = vld [vmem:[#allocation8 + $0x6b0] sm:$0xff]
    %v612 = vld [vmem:[#allocation8 + $0x6b8] sm:$0xff]
    %v613 = vld [vmem:[#allocation8 + $0x6c0] sm:$0xff]
    %v614 = vld [vmem:[#allocation8 + $0x6c8] sm:$0xff]
    %v615 = vld [vmem:[#allocation8 + $0x6d0] sm:$0xff]
    %v616 = vld [vmem:[#allocation8 + $0x6d8] sm:$0xff]
    %v617 = vld [vmem:[#allocation8 + $0x6e0] sm:$0xff]
    %v618 = vld [vmem:[#allocation8 + $0x6e8] sm:$0xff]
    %v619 = vld [vmem:[#allocation8 + $0x6f0] sm:$0xff]
    %v620 = vld [vmem:[#allocation8 + $0x6f8] sm:$0xff]
    %v621 = vld [vmem:[#allocation8 + $0x700] sm:$0xff]
    %v622 = vld [vmem:[#allocation8 + $0x708] sm:$0xff]
    %v623 = vld [vmem:[#allocation8 + $0x710] sm:$0xff]
    %v624 = vld [vmem:[#allocation8 + $0x718] sm:$0xff]
    %v625 = vld [vmem:[#allocation8 + $0x720] sm:$0xff]
    %v626 = vld [vmem:[#allocation8 + $0x728] sm:$0xff]
    %v627 = vld [vmem:[#allocation8 + $0x730] sm:$0xff]
    %v628 = vld [vmem:[#allocation8 + $0x738] sm:$0xff]
    %v629 = vld [vmem:[#allocation8 + $0x740] sm:$0xff]
    %v630 = vld [vmem:[#allocation8 + $0x748] sm:$0xff]
    %v631 = vld [vmem:[#allocation8 + $0x750] sm:$0xff]
    %v632 = vld [vmem:[#allocation8 + $0x758] sm:$0xff]
    %v633 = vld [vmem:[#allocation8 + $0x760] sm:$0xff]
    %v634 = vld [vmem:[#allocation8 + $0x768] sm:$0xff]
    %v635 = vld [vmem:[#allocation8 + $0x770] sm:$0xff]
    %v636 = vld [vmem:[#allocation8 + $0x778] sm:$0xff]
    %v637 = vld [vmem:[#allocation8 + $0x780] sm:$0xff]
    %v638 = vld [vmem:[#allocation8 + $0x788] sm:$0xff]
    %v639 = vld [vmem:[#allocation8 + $0x790] sm:$0xff]
    %v640 = vld [vmem:[#allocation8 + $0x798] sm:$0xff]
    %v641 = vld [vmem:[#allocation8 + $0x7a0] sm:$0xff]
    %v642 = vld [vmem:[#allocation8 + $0x7a8] sm:$0xff]
    %v643 = vld [vmem:[#allocation8 + $0x7b0] sm:$0xff]
    %v644 = vld [vmem:[#allocation8 + $0x7b8] sm:$0xff]
    %v645 = vld [vmem:[#allocation8 + $0x7c0] sm:$0xff]
    %v646 = vld [vmem:[#allocation8 + $0x7c8] sm:$0xff]
    %v647 = vld [vmem:[#allocation8 + $0x7d0] sm:$0xff]
    %v648 = vld [vmem:[#allocation8 + $0x7d8] sm:$0xff]
    %v649 = vld [vmem:[#allocation8 + $0x7e0] sm:$0xff]
    %v650 = vld [vmem:[#allocation8 + $0x7e8] sm:$0xff]
    %v651 = vld [vmem:[#allocation8 + $0x7f0] sm:$0xff]
    %v652 = vld [vmem:[#allocation8 + $0x7f8] sm:$0xff]
    %v653 = vld [vmem:[%s4] sm:$0xf]
    %v655 = vlaneseq
    %v656 = vshrl.u32 %v655, 7
    %v657 = vsub.s32 0, %v656
    %v658 = vrot.slane %v653, %v657
    %v659 = vlaneseq
    %v660 = vshrl.u32 %v659, 7
    %v661 = vsub.s32 1, %v660
    %v662 = vrot.slane %v653, %v661
    %v663 = vlaneseq
    %v664 = vshrl.u32 %v663, 7
    %v665 = vsub.s32 2, %v664
    %v666 = vrot.slane %v653, %v665
    %v667 = vlaneseq
    %v668 = vshrl.u32 %v667, 7
    %v669 = vsub.s32 3, %v668
    %v670 = vrot.slane %v653, %v669
    %v931 = vunpack.c.l.b16 %v397
    %v932 = vunpack.c.h.b16 %v397
    %v933 = vunpack.c.l.b16 %v398
    %v934 = vunpack.c.h.b16 %v398
    %v935 = vunpack.c.l.b16 %v399
    %v936 = vunpack.c.h.b16 %v399
    %v937 = vunpack.c.l.b16 %v400
    %v938 = vunpack.c.h.b16 %v400
    %v939 = vunpack.c.l.b16 %v401
    %v940 = vunpack.c.h.b16 %v401
    %v941 = vunpack.c.l.b16 %v402
    %v942 = vunpack.c.h.b16 %v402
    %v943 = vunpack.c.l.b16 %v403
    %v944 = vunpack.c.h.b16 %v403
    %v945 = vunpack.c.l.b16 %v404
    %v946 = vunpack.c.h.b16 %v404
    %v947 = vunpack.c.l.b16 %v405
    %v948 = vunpack.c.h.b16 %v405
    %v949 = vunpack.c.l.b16 %v406
    %v950 = vunpack.c.h.b16 %v406
    %v951 = vunpack.c.l.b16 %v407
    %v952 = vunpack.c.h.b16 %v407
    %v953 = vunpack.c.l.b16 %v408
    %v954 = vunpack.c.h.b16 %v408
    %v955 = vunpack.c.l.b16 %v409
    %v956 = vunpack.c.h.b16 %v409
    %v957 = vunpack.c.l.b16 %v410
    %v958 = vunpack.c.h.b16 %v410
    %v959 = vunpack.c.l.b16 %v411
    %v960 = vunpack.c.h.b16 %v411
    %v961 = vunpack.c.l.b16 %v412
    %v962 = vunpack.c.h.b16 %v412
    %v963 = vunpack.c.l.b16 %v413
    %v964 = vunpack.c.h.b16 %v413
    %v965 = vunpack.c.l.b16 %v414
    %v966 = vunpack.c.h.b16 %v414
    %v967 = vunpack.c.l.b16 %v415
    %v968 = vunpack.c.h.b16 %v415
    %v969 = vunpack.c.l.b16 %v416
    %v970 = vunpack.c.h.b16 %v416
    %v971 = vunpack.c.l.b16 %v417
    %v972 = vunpack.c.h.b16 %v417
    %v973 = vunpack.c.l.b16 %v418
    %v974 = vunpack.c.h.b16 %v418
    %v975 = vunpack.c.l.b16 %v419
    %v976 = vunpack.c.h.b16 %v419
    %v977 = vunpack.c.l.b16 %v420
    %v978 = vunpack.c.h.b16 %v420
    %v979 = vunpack.c.l.b16 %v421
    %v980 = vunpack.c.h.b16 %v421
    %v981 = vunpack.c.l.b16 %v422
    %v982 = vunpack.c.h.b16 %v422
    %v983 = vunpack.c.l.b16 %v423
    %v984 = vunpack.c.h.b16 %v423
    %v985 = vunpack.c.l.b16 %v424
    %v986 = vunpack.c.h.b16 %v424
    %v987 = vunpack.c.l.b16 %v425
    %v988 = vunpack.c.h.b16 %v425
    %v989 = vunpack.c.l.b16 %v426
    %v990 = vunpack.c.h.b16 %v426
    %v991 = vunpack.c.l.b16 %v427
    %v992 = vunpack.c.h.b16 %v427
    %v993 = vunpack.c.l.b16 %v428
    %v994 = vunpack.c.h.b16 %v428
    %v995 = vunpack.c.l.b16 %v429
    %v996 = vunpack.c.h.b16 %v429
    %v997 = vunpack.c.l.b16 %v430
    %v998 = vunpack.c.h.b16 %v430
    %v999 = vunpack.c.l.b16 %v431
    %v1000 = vunpack.c.h.b16 %v431
    %v1001 = vunpack.c.l.b16 %v432
    %v1002 = vunpack.c.h.b16 %v432
    %v1003 = vunpack.c.l.b16 %v433
    %v1004 = vunpack.c.h.b16 %v433
    %v1005 = vunpack.c.l.b16 %v434
    %v1006 = vunpack.c.h.b16 %v434
    %v1007 = vunpack.c.l.b16 %v435
    %v1008 = vunpack.c.h.b16 %v435
    %v1009 = vunpack.c.l.b16 %v436
    %v1010 = vunpack.c.h.b16 %v436
    %v1011 = vunpack.c.l.b16 %v437
    %v1012 = vunpack.c.h.b16 %v437
    %v1013 = vunpack.c.l.b16 %v438
    %v1014 = vunpack.c.h.b16 %v438
    %v1015 = vunpack.c.l.b16 %v439
    %v1016 = vunpack.c.h.b16 %v439
    %v1017 = vunpack.c.l.b16 %v440
    %v1018 = vunpack.c.h.b16 %v440
    %v1019 = vunpack.c.l.b16 %v441
    %v1020 = vunpack.c.h.b16 %v441
    %v1021 = vunpack.c.l.b16 %v442
    %v1022 = vunpack.c.h.b16 %v442
    %v1023 = vunpack.c.l.b16 %v443
    %v1024 = vunpack.c.h.b16 %v443
    %v1025 = vunpack.c.l.b16 %v444
    %v1026 = vunpack.c.h.b16 %v444
    %v1027 = vunpack.c.l.b16 %v445
    %v1028 = vunpack.c.h.b16 %v445
    %v1029 = vunpack.c.l.b16 %v446
    %v1030 = vunpack.c.h.b16 %v446
    %v1031 = vunpack.c.l.b16 %v447
    %v1032 = vunpack.c.h.b16 %v447
    %v1033 = vunpack.c.l.b16 %v448
    %v1034 = vunpack.c.h.b16 %v448
    %v1035 = vunpack.c.l.b16 %v449
    %v1036 = vunpack.c.h.b16 %v449
    %v1037 = vunpack.c.l.b16 %v450
    %v1038 = vunpack.c.h.b16 %v450
    %v1039 = vunpack.c.l.b16 %v451
    %v1040 = vunpack.c.h.b16 %v451
    %v1041 = vunpack.c.l.b16 %v452
    %v1042 = vunpack.c.h.b16 %v452
    %v1043 = vunpack.c.l.b16 %v453
    %v1044 = vunpack.c.h.b16 %v453
    %v1045 = vunpack.c.l.b16 %v454
    %v1046 = vunpack.c.h.b16 %v454
    %v1047 = vunpack.c.l.b16 %v455
    %v1048 = vunpack.c.h.b16 %v455
    %v1049 = vunpack.c.l.b16 %v456
    %v1050 = vunpack.c.h.b16 %v456
    %v1051 = vunpack.c.l.b16 %v457
    %v1052 = vunpack.c.h.b16 %v457
    %v1053 = vunpack.c.l.b16 %v458
    %v1054 = vunpack.c.h.b16 %v458
    %v1055 = vunpack.c.l.b16 %v459
    %v1056 = vunpack.c.h.b16 %v459
    %v1057 = vunpack.c.l.b16 %v460
    %v1058 = vunpack.c.h.b16 %v460
    %v1059 = vunpack.c.l.b16 %v461
    %v1060 = vunpack.c.h.b16 %v461
    %v1061 = vunpack.c.l.b16 %v462
    %v1062 = vunpack.c.h.b16 %v462
    %v1063 = vunpack.c.l.b16 %v463
    %v1064 = vunpack.c.h.b16 %v463
    %v1065 = vunpack.c.l.b16 %v464
    %v1066 = vunpack.c.h.b16 %v464
    %v1067 = vunpack.c.l.b16 %v465
    %v1068 = vunpack.c.h.b16 %v465
    %v1069 = vunpack.c.l.b16 %v466
    %v1070 = vunpack.c.h.b16 %v466
    %v1071 = vunpack.c.l.b16 %v467
    %v1072 = vunpack.c.h.b16 %v467
    %v1073 = vunpack.c.l.b16 %v468
    %v1074 = vunpack.c.h.b16 %v468
    %v1075 = vunpack.c.l.b16 %v469
    %v1076 = vunpack.c.h.b16 %v469
    %v1077 = vunpack.c.l.b16 %v470
    %v1078 = vunpack.c.h.b16 %v470
    %v1079 = vunpack.c.l.b16 %v471
    %v1080 = vunpack.c.h.b16 %v471
    %v1081 = vunpack.c.l.b16 %v472
    %v1082 = vunpack.c.h.b16 %v472
    %v1083 = vunpack.c.l.b16 %v473
    %v1084 = vunpack.c.h.b16 %v473
    %v1085 = vunpack.c.l.b16 %v474
    %v1086 = vunpack.c.h.b16 %v474
    %v1087 = vunpack.c.l.b16 %v475
    %v1088 = vunpack.c.h.b16 %v475
    %v1089 = vunpack.c.l.b16 %v476
    %v1090 = vunpack.c.h.b16 %v476
    %v1091 = vunpack.c.l.b16 %v477
    %v1092 = vunpack.c.h.b16 %v477
    %v1093 = vunpack.c.l.b16 %v478
    %v1094 = vunpack.c.h.b16 %v478
    %v1095 = vunpack.c.l.b16 %v479
    %v1096 = vunpack.c.h.b16 %v479
    %v1097 = vunpack.c.l.b16 %v480
    %v1098 = vunpack.c.h.b16 %v480
    %v1099 = vunpack.c.l.b16 %v481
    %v1100 = vunpack.c.h.b16 %v481
    %v1101 = vunpack.c.l.b16 %v482
    %v1102 = vunpack.c.h.b16 %v482
    %v1103 = vunpack.c.l.b16 %v483
    %v1104 = vunpack.c.h.b16 %v483
    %v1105 = vunpack.c.l.b16 %v484
    %v1106 = vunpack.c.h.b16 %v484
    %v1107 = vunpack.c.l.b16 %v485
    %v1108 = vunpack.c.h.b16 %v485
    %v1109 = vunpack.c.l.b16 %v486
    %v1110 = vunpack.c.h.b16 %v486
    %v1111 = vunpack.c.l.b16 %v487
    %v1112 = vunpack.c.h.b16 %v487
    %v1113 = vunpack.c.l.b16 %v488
    %v1114 = vunpack.c.h.b16 %v488
    %v1115 = vunpack.c.l.b16 %v489
    %v1116 = vunpack.c.h.b16 %v489
    %v1117 = vunpack.c.l.b16 %v490
    %v1118 = vunpack.c.h.b16 %v490
    %v1119 = vunpack.c.l.b16 %v491
    %v1120 = vunpack.c.h.b16 %v491
    %v1121 = vunpack.c.l.b16 %v492
    %v1122 = vunpack.c.h.b16 %v492
    %v1123 = vunpack.c.l.b16 %v493
    %v1124 = vunpack.c.h.b16 %v493
    %v1125 = vunpack.c.l.b16 %v494
    %v1126 = vunpack.c.h.b16 %v494
    %v1127 = vunpack.c.l.b16 %v495
    %v1128 = vunpack.c.h.b16 %v495
    %v1129 = vunpack.c.l.b16 %v496
    %v1130 = vunpack.c.h.b16 %v496
    %v1131 = vunpack.c.l.b16 %v497
    %v1132 = vunpack.c.h.b16 %v497
    %v1133 = vunpack.c.l.b16 %v498
    %v1134 = vunpack.c.h.b16 %v498
    %v1135 = vunpack.c.l.b16 %v499
    %v1136 = vunpack.c.h.b16 %v499
    %v1137 = vunpack.c.l.b16 %v500
    %v1138 = vunpack.c.h.b16 %v500
    %v1139 = vunpack.c.l.b16 %v501
    %v1140 = vunpack.c.h.b16 %v501
    %v1141 = vunpack.c.l.b16 %v502
    %v1142 = vunpack.c.h.b16 %v502
    %v1143 = vunpack.c.l.b16 %v503
    %v1144 = vunpack.c.h.b16 %v503
    %v1145 = vunpack.c.l.b16 %v504
    %v1146 = vunpack.c.h.b16 %v504
    %v1147 = vunpack.c.l.b16 %v505
    %v1148 = vunpack.c.h.b16 %v505
    %v1149 = vunpack.c.l.b16 %v506
    %v1150 = vunpack.c.h.b16 %v506
    %v1151 = vunpack.c.l.b16 %v507
    %v1152 = vunpack.c.h.b16 %v507
    %v1153 = vunpack.c.l.b16 %v508
    %v1154 = vunpack.c.h.b16 %v508
    %v1155 = vunpack.c.l.b16 %v509
    %v1156 = vunpack.c.h.b16 %v509
    %v1157 = vunpack.c.l.b16 %v510
    %v1158 = vunpack.c.h.b16 %v510
    %v1159 = vunpack.c.l.b16 %v511
    %v1160 = vunpack.c.h.b16 %v511
    %v1161 = vunpack.c.l.b16 %v512
    %v1162 = vunpack.c.h.b16 %v512
    %v1163 = vunpack.c.l.b16 %v513
    %v1164 = vunpack.c.h.b16 %v513
    %v1165 = vunpack.c.l.b16 %v514
    %v1166 = vunpack.c.h.b16 %v514
    %v1167 = vunpack.c.l.b16 %v515
    %v1168 = vunpack.c.h.b16 %v515
    %v1169 = vunpack.c.l.b16 %v516
    %v1170 = vunpack.c.h.b16 %v516
    %v1171 = vunpack.c.l.b16 %v517
    %v1172 = vunpack.c.h.b16 %v517
    %v1173 = vunpack.c.l.b16 %v518
    %v1174 = vunpack.c.h.b16 %v518
    %v1175 = vunpack.c.l.b16 %v519
    %v1176 = vunpack.c.h.b16 %v519
    %v1177 = vunpack.c.l.b16 %v520
    %v1178 = vunpack.c.h.b16 %v520
    %v1179 = vunpack.c.l.b16 %v521
    %v1180 = vunpack.c.h.b16 %v521
    %v1181 = vunpack.c.l.b16 %v522
    %v1182 = vunpack.c.h.b16 %v522
    %v1183 = vunpack.c.l.b16 %v523
    %v1184 = vunpack.c.h.b16 %v523
    %v1185 = vunpack.c.l.b16 %v524
    %v1186 = vunpack.c.h.b16 %v524
    %v1187 = vunpack.c.l.b16 %v525
    %v1188 = vunpack.c.h.b16 %v525
    %v1189 = vunpack.c.l.b16 %v526
    %v1190 = vunpack.c.h.b16 %v526
    %v1191 = vunpack.c.l.b16 %v527
    %v1192 = vunpack.c.h.b16 %v527
    %v1193 = vunpack.c.l.b16 %v528
    %v1194 = vunpack.c.h.b16 %v528
    %v1195 = vunpack.c.l.b16 %v529
    %v1196 = vunpack.c.h.b16 %v529
    %v1197 = vunpack.c.l.b16 %v530
    %v1198 = vunpack.c.h.b16 %v530
    %v1199 = vunpack.c.l.b16 %v531
    %v1200 = vunpack.c.h.b16 %v531
    %v1201 = vunpack.c.l.b16 %v532
    %v1202 = vunpack.c.h.b16 %v532
    %v1203 = vunpack.c.l.b16 %v533
    %v1204 = vunpack.c.h.b16 %v533
    %v1205 = vunpack.c.l.b16 %v534
    %v1206 = vunpack.c.h.b16 %v534
    %v1207 = vunpack.c.l.b16 %v535
    %v1208 = vunpack.c.h.b16 %v535
    %v1209 = vunpack.c.l.b16 %v536
    %v1210 = vunpack.c.h.b16 %v536
    %v1211 = vunpack.c.l.b16 %v537
    %v1212 = vunpack.c.h.b16 %v537
    %v1213 = vunpack.c.l.b16 %v538
    %v1214 = vunpack.c.h.b16 %v538
    %v1215 = vunpack.c.l.b16 %v539
    %v1216 = vunpack.c.h.b16 %v539
    %v1217 = vunpack.c.l.b16 %v540
    %v1218 = vunpack.c.h.b16 %v540
    %v1219 = vunpack.c.l.b16 %v541
    %v1220 = vunpack.c.h.b16 %v541
    %v1221 = vunpack.c.l.b16 %v542
    %v1222 = vunpack.c.h.b16 %v542
    %v1223 = vunpack.c.l.b16 %v543
    %v1224 = vunpack.c.h.b16 %v543
    %v1225 = vunpack.c.l.b16 %v544
    %v1226 = vunpack.c.h.b16 %v544
    %v1227 = vunpack.c.l.b16 %v545
    %v1228 = vunpack.c.h.b16 %v545
    %v1229 = vunpack.c.l.b16 %v546
    %v1230 = vunpack.c.h.b16 %v546
    %v1231 = vunpack.c.l.b16 %v547
    %v1232 = vunpack.c.h.b16 %v547
    %v1233 = vunpack.c.l.b16 %v548
    %v1234 = vunpack.c.h.b16 %v548
    %v1235 = vunpack.c.l.b16 %v549
    %v1236 = vunpack.c.h.b16 %v549
    %v1237 = vunpack.c.l.b16 %v550
    %v1238 = vunpack.c.h.b16 %v550
    %v1239 = vunpack.c.l.b16 %v551
    %v1240 = vunpack.c.h.b16 %v551
    %v1241 = vunpack.c.l.b16 %v552
    %v1242 = vunpack.c.h.b16 %v552
    %v1243 = vunpack.c.l.b16 %v553
    %v1244 = vunpack.c.h.b16 %v553
    %v1245 = vunpack.c.l.b16 %v554
    %v1246 = vunpack.c.h.b16 %v554
    %v1247 = vunpack.c.l.b16 %v555
    %v1248 = vunpack.c.h.b16 %v555
    %v1249 = vunpack.c.l.b16 %v556
    %v1250 = vunpack.c.h.b16 %v556
    %v1251 = vunpack.c.l.b16 %v557
    %v1252 = vunpack.c.h.b16 %v557
    %v1253 = vunpack.c.l.b16 %v558
    %v1254 = vunpack.c.h.b16 %v558
    %v1255 = vunpack.c.l.b16 %v559
    %v1256 = vunpack.c.h.b16 %v559
    %v1257 = vunpack.c.l.b16 %v560
    %v1258 = vunpack.c.h.b16 %v560
    %v1259 = vunpack.c.l.b16 %v561
    %v1260 = vunpack.c.h.b16 %v561
    %v1261 = vunpack.c.l.b16 %v562
    %v1262 = vunpack.c.h.b16 %v562
    %v1263 = vunpack.c.l.b16 %v563
    %v1264 = vunpack.c.h.b16 %v563
    %v1265 = vunpack.c.l.b16 %v564
    %v1266 = vunpack.c.h.b16 %v564
    %v1267 = vunpack.c.l.b16 %v565
    %v1268 = vunpack.c.h.b16 %v565
    %v1269 = vunpack.c.l.b16 %v566
    %v1270 = vunpack.c.h.b16 %v566
    %v1271 = vunpack.c.l.b16 %v567
    %v1272 = vunpack.c.h.b16 %v567
    %v1273 = vunpack.c.l.b16 %v568
    %v1274 = vunpack.c.h.b16 %v568
    %v1275 = vunpack.c.l.b16 %v569
    %v1276 = vunpack.c.h.b16 %v569
    %v1277 = vunpack.c.l.b16 %v570
    %v1278 = vunpack.c.h.b16 %v570
    %v1279 = vunpack.c.l.b16 %v571
    %v1280 = vunpack.c.h.b16 %v571
    %v1281 = vunpack.c.l.b16 %v572
    %v1282 = vunpack.c.h.b16 %v572
    %v1283 = vunpack.c.l.b16 %v573
    %v1284 = vunpack.c.h.b16 %v573
    %v1285 = vunpack.c.l.b16 %v574
    %v1286 = vunpack.c.h.b16 %v574
    %v1287 = vunpack.c.l.b16 %v575
    %v1288 = vunpack.c.h.b16 %v575
    %v1289 = vunpack.c.l.b16 %v576
    %v1290 = vunpack.c.h.b16 %v576
    %v1291 = vunpack.c.l.b16 %v577
    %v1292 = vunpack.c.h.b16 %v577
    %v1293 = vunpack.c.l.b16 %v578
    %v1294 = vunpack.c.h.b16 %v578
    %v1295 = vunpack.c.l.b16 %v579
    %v1296 = vunpack.c.h.b16 %v579
    %v1297 = vunpack.c.l.b16 %v580
    %v1298 = vunpack.c.h.b16 %v580
    %v1299 = vunpack.c.l.b16 %v581
    %v1300 = vunpack.c.h.b16 %v581
    %v1301 = vunpack.c.l.b16 %v582
    %v1302 = vunpack.c.h.b16 %v582
    %v1303 = vunpack.c.l.b16 %v583
    %v1304 = vunpack.c.h.b16 %v583
    %v1305 = vunpack.c.l.b16 %v584
    %v1306 = vunpack.c.h.b16 %v584
    %v1307 = vunpack.c.l.b16 %v585
    %v1308 = vunpack.c.h.b16 %v585
    %v1309 = vunpack.c.l.b16 %v586
    %v1310 = vunpack.c.h.b16 %v586
    %v1311 = vunpack.c.l.b16 %v587
    %v1312 = vunpack.c.h.b16 %v587
    %v1313 = vunpack.c.l.b16 %v588
    %v1314 = vunpack.c.h.b16 %v588
    %v1315 = vunpack.c.l.b16 %v589
    %v1316 = vunpack.c.h.b16 %v589
    %v1317 = vunpack.c.l.b16 %v590
    %v1318 = vunpack.c.h.b16 %v590
    %v1319 = vunpack.c.l.b16 %v591
    %v1320 = vunpack.c.h.b16 %v591
    %v1321 = vunpack.c.l.b16 %v592
    %v1322 = vunpack.c.h.b16 %v592
    %v1323 = vunpack.c.l.b16 %v593
    %v1324 = vunpack.c.h.b16 %v593
    %v1325 = vunpack.c.l.b16 %v594
    %v1326 = vunpack.c.h.b16 %v594
    %v1327 = vunpack.c.l.b16 %v595
    %v1328 = vunpack.c.h.b16 %v595
    %v1329 = vunpack.c.l.b16 %v596
    %v1330 = vunpack.c.h.b16 %v596
    %v1331 = vunpack.c.l.b16 %v597
    %v1332 = vunpack.c.h.b16 %v597
    %v1333 = vunpack.c.l.b16 %v598
    %v1334 = vunpack.c.h.b16 %v598
    %v1335 = vunpack.c.l.b16 %v599
    %v1336 = vunpack.c.h.b16 %v599
    %v1337 = vunpack.c.l.b16 %v600
    %v1338 = vunpack.c.h.b16 %v600
    %v1339 = vunpack.c.l.b16 %v601
    %v1340 = vunpack.c.h.b16 %v601
    %v1341 = vunpack.c.l.b16 %v602
    %v1342 = vunpack.c.h.b16 %v602
    %v1343 = vunpack.c.l.b16 %v603
    %v1344 = vunpack.c.h.b16 %v603
    %v1345 = vunpack.c.l.b16 %v604
    %v1346 = vunpack.c.h.b16 %v604
    %v1347 = vunpack.c.l.b16 %v605
    %v1348 = vunpack.c.h.b16 %v605
    %v1349 = vunpack.c.l.b16 %v606
    %v1350 = vunpack.c.h.b16 %v606
    %v1351 = vunpack.c.l.b16 %v607
    %v1352 = vunpack.c.h.b16 %v607
    %v1353 = vunpack.c.l.b16 %v608
    %v1354 = vunpack.c.h.b16 %v608
    %v1355 = vunpack.c.l.b16 %v609
    %v1356 = vunpack.c.h.b16 %v609
    %v1357 = vunpack.c.l.b16 %v610
    %v1358 = vunpack.c.h.b16 %v610
    %v1359 = vunpack.c.l.b16 %v611
    %v1360 = vunpack.c.h.b16 %v611
    %v1361 = vunpack.c.l.b16 %v612
    %v1362 = vunpack.c.h.b16 %v612
    %v1363 = vunpack.c.l.b16 %v613
    %v1364 = vunpack.c.h.b16 %v613
    %v1365 = vunpack.c.l.b16 %v614
    %v1366 = vunpack.c.h.b16 %v614
    %v1367 = vunpack.c.l.b16 %v615
    %v1368 = vunpack.c.h.b16 %v615
    %v1369 = vunpack.c.l.b16 %v616
    %v1370 = vunpack.c.h.b16 %v616
    %v1371 = vunpack.c.l.b16 %v617
    %v1372 = vunpack.c.h.b16 %v617
    %v1373 = vunpack.c.l.b16 %v618
    %v1374 = vunpack.c.h.b16 %v618
    %v1375 = vunpack.c.l.b16 %v619
    %v1376 = vunpack.c.h.b16 %v619
    %v1377 = vunpack.c.l.b16 %v620
    %v1378 = vunpack.c.h.b16 %v620
    %v1379 = vunpack.c.l.b16 %v621
    %v1380 = vunpack.c.h.b16 %v621
    %v1381 = vunpack.c.l.b16 %v622
    %v1382 = vunpack.c.h.b16 %v622
    %v1383 = vunpack.c.l.b16 %v623
    %v1384 = vunpack.c.h.b16 %v623
    %v1385 = vunpack.c.l.b16 %v624
    %v1386 = vunpack.c.h.b16 %v624
    %v1387 = vunpack.c.l.b16 %v625
    %v1388 = vunpack.c.h.b16 %v625
    %v1389 = vunpack.c.l.b16 %v626
    %v1390 = vunpack.c.h.b16 %v626
    %v1391 = vunpack.c.l.b16 %v627
    %v1392 = vunpack.c.h.b16 %v627
    %v1393 = vunpack.c.l.b16 %v628
    %v1394 = vunpack.c.h.b16 %v628
    %v1395 = vunpack.c.l.b16 %v629
    %v1396 = vunpack.c.h.b16 %v629
    %v1397 = vunpack.c.l.b16 %v630
    %v1398 = vunpack.c.h.b16 %v630
    %v1399 = vunpack.c.l.b16 %v631
    %v1400 = vunpack.c.h.b16 %v631
    %v1401 = vunpack.c.l.b16 %v632
    %v1402 = vunpack.c.h.b16 %v632
    %v1403 = vunpack.c.l.b16 %v633
    %v1404 = vunpack.c.h.b16 %v633
    %v1405 = vunpack.c.l.b16 %v634
    %v1406 = vunpack.c.h.b16 %v634
    %v1407 = vunpack.c.l.b16 %v635
    %v1408 = vunpack.c.h.b16 %v635
    %v1409 = vunpack.c.l.b16 %v636
    %v1410 = vunpack.c.h.b16 %v636
    %v1411 = vunpack.c.l.b16 %v637
    %v1412 = vunpack.c.h.b16 %v637
    %v1413 = vunpack.c.l.b16 %v638
    %v1414 = vunpack.c.h.b16 %v638
    %v1415 = vunpack.c.l.b16 %v639
    %v1416 = vunpack.c.h.b16 %v639
    %v1417 = vunpack.c.l.b16 %v640
    %v1418 = vunpack.c.h.b16 %v640
    %v1419 = vunpack.c.l.b16 %v641
    %v1420 = vunpack.c.h.b16 %v641
    %v1421 = vunpack.c.l.b16 %v642
    %v1422 = vunpack.c.h.b16 %v642
    %v1423 = vunpack.c.l.b16 %v643
    %v1424 = vunpack.c.h.b16 %v643
    %v1425 = vunpack.c.l.b16 %v644
    %v1426 = vunpack.c.h.b16 %v644
    %v1427 = vunpack.c.l.b16 %v645
    %v1428 = vunpack.c.h.b16 %v645
    %v1429 = vunpack.c.l.b16 %v646
    %v1430 = vunpack.c.h.b16 %v646
    %v1431 = vunpack.c.l.b16 %v647
    %v1432 = vunpack.c.h.b16 %v647
    %v1433 = vunpack.c.l.b16 %v648
    %v1434 = vunpack.c.h.b16 %v648
    %v1435 = vunpack.c.l.b16 %v649
    %v1436 = vunpack.c.h.b16 %v649
    %v1437 = vunpack.c.l.b16 %v650
    %v1438 = vunpack.c.h.b16 %v650
    %v1439 = vunpack.c.l.b16 %v651
    %v1440 = vunpack.c.h.b16 %v651
    %v1441 = vunpack.c.l.b16 %v652
    %v1442 = vunpack.c.h.b16 %v652
    %v1443 = vpack.c.b16 %v935, %v931
    %v1444 = vpack.c.b16 %v936, %v932
    %v1445 = vpack.c.b16 %v937, %v933
    %v1446 = vpack.c.b16 %v938, %v934
    %v1447 = vpack.c.b16 %v943, %v939
    %v1448 = vpack.c.b16 %v944, %v940
    %v1449 = vpack.c.b16 %v945, %v941
    %v1450 = vpack.c.b16 %v946, %v942
    %v1451 = vpack.c.b16 %v951, %v947
    %v1452 = vpack.c.b16 %v952, %v948
    %v1453 = vpack.c.b16 %v953, %v949
    %v1454 = vpack.c.b16 %v954, %v950
    %v1455 = vpack.c.b16 %v959, %v955
    %v1456 = vpack.c.b16 %v960, %v956
    %v1457 = vpack.c.b16 %v961, %v957
    %v1458 = vpack.c.b16 %v962, %v958
    %v1459 = vpack.c.b16 %v967, %v963
    %v1460 = vpack.c.b16 %v968, %v964
    %v1461 = vpack.c.b16 %v969, %v965
    %v1462 = vpack.c.b16 %v970, %v966
    %v1463 = vpack.c.b16 %v975, %v971
    %v1464 = vpack.c.b16 %v976, %v972
    %v1465 = vpack.c.b16 %v977, %v973
    %v1466 = vpack.c.b16 %v978, %v974
    %v1467 = vpack.c.b16 %v983, %v979
    %v1468 = vpack.c.b16 %v984, %v980
    %v1469 = vpack.c.b16 %v985, %v981
    %v1470 = vpack.c.b16 %v986, %v982
    %v1471 = vpack.c.b16 %v991, %v987
    %v1472 = vpack.c.b16 %v992, %v988
    %v1473 = vpack.c.b16 %v993, %v989
    %v1474 = vpack.c.b16 %v994, %v990
    %v1475 = vpack.c.b16 %v999, %v995
    %v1476 = vpack.c.b16 %v1000, %v996
    %v1477 = vpack.c.b16 %v1001, %v997
    %v1478 = vpack.c.b16 %v1002, %v998
    %v1479 = vpack.c.b16 %v1007, %v1003
    %v1480 = vpack.c.b16 %v1008, %v1004
    %v1481 = vpack.c.b16 %v1009, %v1005
    %v1482 = vpack.c.b16 %v1010, %v1006
    %v1483 = vpack.c.b16 %v1015, %v1011
    %v1484 = vpack.c.b16 %v1016, %v1012
    %v1485 = vpack.c.b16 %v1017, %v1013
    %v1486 = vpack.c.b16 %v1018, %v1014
    %v1487 = vpack.c.b16 %v1023, %v1019
    %v1488 = vpack.c.b16 %v1024, %v1020
    %v1489 = vpack.c.b16 %v1025, %v1021
    %v1490 = vpack.c.b16 %v1026, %v1022
    %v1491 = vpack.c.b16 %v1031, %v1027
    %v1492 = vpack.c.b16 %v1032, %v1028
    %v1493 = vpack.c.b16 %v1033, %v1029
    %v1494 = vpack.c.b16 %v1034, %v1030
    %v1495 = vpack.c.b16 %v1039, %v1035
    %v1496 = vpack.c.b16 %v1040, %v1036
    %v1497 = vpack.c.b16 %v1041, %v1037
    %v1498 = vpack.c.b16 %v1042, %v1038
    %v1499 = vpack.c.b16 %v1047, %v1043
    %v1500 = vpack.c.b16 %v1048, %v1044
    %v1501 = vpack.c.b16 %v1049, %v1045
    %v1502 = vpack.c.b16 %v1050, %v1046
    %v1503 = vpack.c.b16 %v1055, %v1051
    %v1504 = vpack.c.b16 %v1056, %v1052
    %v1505 = vpack.c.b16 %v1057, %v1053
    %v1506 = vpack.c.b16 %v1058, %v1054
    %v1507 = vpack.c.b16 %v1063, %v1059
    %v1508 = vpack.c.b16 %v1064, %v1060
    %v1509 = vpack.c.b16 %v1065, %v1061
    %v1510 = vpack.c.b16 %v1066, %v1062
    %v1511 = vpack.c.b16 %v1071, %v1067
    %v1512 = vpack.c.b16 %v1072, %v1068
    %v1513 = vpack.c.b16 %v1073, %v1069
    %v1514 = vpack.c.b16 %v1074, %v1070
    %v1515 = vpack.c.b16 %v1079, %v1075
    %v1516 = vpack.c.b16 %v1080, %v1076
    %v1517 = vpack.c.b16 %v1081, %v1077
    %v1518 = vpack.c.b16 %v1082, %v1078
    %v1519 = vpack.c.b16 %v1087, %v1083
    %v1520 = vpack.c.b16 %v1088, %v1084
    %v1521 = vpack.c.b16 %v1089, %v1085
    %v1522 = vpack.c.b16 %v1090, %v1086
    %v1523 = vpack.c.b16 %v1095, %v1091
    %v1524 = vpack.c.b16 %v1096, %v1092
    %v1525 = vpack.c.b16 %v1097, %v1093
    %v1526 = vpack.c.b16 %v1098, %v1094
    %v1527 = vpack.c.b16 %v1103, %v1099
    %v1528 = vpack.c.b16 %v1104, %v1100
    %v1529 = vpack.c.b16 %v1105, %v1101
    %v1530 = vpack.c.b16 %v1106, %v1102
    %v1531 = vpack.c.b16 %v1111, %v1107
    %v1532 = vpack.c.b16 %v1112, %v1108
    %v1533 = vpack.c.b16 %v1113, %v1109
    %v1534 = vpack.c.b16 %v1114, %v1110
    %v1535 = vpack.c.b16 %v1119, %v1115
    %v1536 = vpack.c.b16 %v1120, %v1116
    %v1537 = vpack.c.b16 %v1121, %v1117
    %v1538 = vpack.c.b16 %v1122, %v1118
    %v1539 = vpack.c.b16 %v1127, %v1123
    %v1540 = vpack.c.b16 %v1128, %v1124
    %v1541 = vpack.c.b16 %v1129, %v1125
    %v1542 = vpack.c.b16 %v1130, %v1126
    %v1543 = vpack.c.b16 %v1135, %v1131
    %v1544 = vpack.c.b16 %v1136, %v1132
    %v1545 = vpack.c.b16 %v1137, %v1133
    %v1546 = vpack.c.b16 %v1138, %v1134
    %v1547 = vpack.c.b16 %v1143, %v1139
    %v1548 = vpack.c.b16 %v1144, %v1140
    %v1549 = vpack.c.b16 %v1145, %v1141
    %v1550 = vpack.c.b16 %v1146, %v1142
    %v1551 = vpack.c.b16 %v1151, %v1147
    %v1552 = vpack.c.b16 %v1152, %v1148
    %v1553 = vpack.c.b16 %v1153, %v1149
    %v1554 = vpack.c.b16 %v1154, %v1150
    %v1555 = vpack.c.b16 %v1159, %v1155
    %v1556 = vpack.c.b16 %v1160, %v1156
    %v1557 = vpack.c.b16 %v1161, %v1157
    %v1558 = vpack.c.b16 %v1162, %v1158
    %v1559 = vpack.c.b16 %v1167, %v1163
    %v1560 = vpack.c.b16 %v1168, %v1164
    %v1561 = vpack.c.b16 %v1169, %v1165
    %v1562 = vpack.c.b16 %v1170, %v1166
    %v1563 = vpack.c.b16 %v1175, %v1171
    %v1564 = vpack.c.b16 %v1176, %v1172
    %v1565 = vpack.c.b16 %v1177, %v1173
    %v1566 = vpack.c.b16 %v1178, %v1174
    %v1567 = vpack.c.b16 %v1183, %v1179
    %v1568 = vpack.c.b16 %v1184, %v1180
    %v1569 = vpack.c.b16 %v1185, %v1181
    %v1570 = vpack.c.b16 %v1186, %v1182
    %v1571 = vpack.c.b16 %v1191, %v1187
    %v1572 = vpack.c.b16 %v1192, %v1188
    %v1573 = vpack.c.b16 %v1193, %v1189
    %v1574 = vpack.c.b16 %v1194, %v1190
    %v1575 = vpack.c.b16 %v1199, %v1195
    %v1576 = vpack.c.b16 %v1200, %v1196
    %v1577 = vpack.c.b16 %v1201, %v1197
    %v1578 = vpack.c.b16 %v1202, %v1198
    %v1579 = vpack.c.b16 %v1207, %v1203
    %v1580 = vpack.c.b16 %v1208, %v1204
    %v1581 = vpack.c.b16 %v1209, %v1205
    %v1582 = vpack.c.b16 %v1210, %v1206
    %v1583 = vpack.c.b16 %v1215, %v1211
    %v1584 = vpack.c.b16 %v1216, %v1212
    %v1585 = vpack.c.b16 %v1217, %v1213
    %v1586 = vpack.c.b16 %v1218, %v1214
    %v1587 = vpack.c.b16 %v1223, %v1219
    %v1588 = vpack.c.b16 %v1224, %v1220
    %v1589 = vpack.c.b16 %v1225, %v1221
    %v1590 = vpack.c.b16 %v1226, %v1222
    %v1591 = vpack.c.b16 %v1231, %v1227
    %v1592 = vpack.c.b16 %v1232, %v1228
    %v1593 = vpack.c.b16 %v1233, %v1229
    %v1594 = vpack.c.b16 %v1234, %v1230
    %v1595 = vpack.c.b16 %v1239, %v1235
    %v1596 = vpack.c.b16 %v1240, %v1236
    %v1597 = vpack.c.b16 %v1241, %v1237
    %v1598 = vpack.c.b16 %v1242, %v1238
    %v1599 = vpack.c.b16 %v1247, %v1243
    %v1600 = vpack.c.b16 %v1248, %v1244
    %v1601 = vpack.c.b16 %v1249, %v1245
    %v1602 = vpack.c.b16 %v1250, %v1246
    %v1603 = vpack.c.b16 %v1255, %v1251
    %v1604 = vpack.c.b16 %v1256, %v1252
    %v1605 = vpack.c.b16 %v1257, %v1253
    %v1606 = vpack.c.b16 %v1258, %v1254
    %v1607 = vpack.c.b16 %v1263, %v1259
    %v1608 = vpack.c.b16 %v1264, %v1260
    %v1609 = vpack.c.b16 %v1265, %v1261
    %v1610 = vpack.c.b16 %v1266, %v1262
    %v1611 = vpack.c.b16 %v1271, %v1267
    %v1612 = vpack.c.b16 %v1272, %v1268
    %v1613 = vpack.c.b16 %v1273, %v1269
    %v1614 = vpack.c.b16 %v1274, %v1270
    %v1615 = vpack.c.b16 %v1279, %v1275
    %v1616 = vpack.c.b16 %v1280, %v1276
    %v1617 = vpack.c.b16 %v1281, %v1277
    %v1618 = vpack.c.b16 %v1282, %v1278
    %v1619 = vpack.c.b16 %v1287, %v1283
    %v1620 = vpack.c.b16 %v1288, %v1284
    %v1621 = vpack.c.b16 %v1289, %v1285
    %v1622 = vpack.c.b16 %v1290, %v1286
    %v1623 = vpack.c.b16 %v1295, %v1291
    %v1624 = vpack.c.b16 %v1296, %v1292
    %v1625 = vpack.c.b16 %v1297, %v1293
    %v1626 = vpack.c.b16 %v1298, %v1294
    %v1627 = vpack.c.b16 %v1303, %v1299
    %v1628 = vpack.c.b16 %v1304, %v1300
    %v1629 = vpack.c.b16 %v1305, %v1301
    %v1630 = vpack.c.b16 %v1306, %v1302
    %v1631 = vpack.c.b16 %v1311, %v1307
    %v1632 = vpack.c.b16 %v1312, %v1308
    %v1633 = vpack.c.b16 %v1313, %v1309
    %v1634 = vpack.c.b16 %v1314, %v1310
    %v1635 = vpack.c.b16 %v1319, %v1315
    %v1636 = vpack.c.b16 %v1320, %v1316
    %v1637 = vpack.c.b16 %v1321, %v1317
    %v1638 = vpack.c.b16 %v1322, %v1318
    %v1639 = vpack.c.b16 %v1327, %v1323
    %v1640 = vpack.c.b16 %v1328, %v1324
    %v1641 = vpack.c.b16 %v1329, %v1325
    %v1642 = vpack.c.b16 %v1330, %v1326
    %v1643 = vpack.c.b16 %v1335, %v1331
    %v1644 = vpack.c.b16 %v1336, %v1332
    %v1645 = vpack.c.b16 %v1337, %v1333
    %v1646 = vpack.c.b16 %v1338, %v1334
    %v1647 = vpack.c.b16 %v1343, %v1339
    %v1648 = vpack.c.b16 %v1344, %v1340
    %v1649 = vpack.c.b16 %v1345, %v1341
    %v1650 = vpack.c.b16 %v1346, %v1342
    %v1651 = vpack.c.b16 %v1351, %v1347
    %v1652 = vpack.c.b16 %v1352, %v1348
    %v1653 = vpack.c.b16 %v1353, %v1349
    %v1654 = vpack.c.b16 %v1354, %v1350
    %v1655 = vpack.c.b16 %v1359, %v1355
    %v1656 = vpack.c.b16 %v1360, %v1356
    %v1657 = vpack.c.b16 %v1361, %v1357
    %v1658 = vpack.c.b16 %v1362, %v1358
    %v1659 = vpack.c.b16 %v1367, %v1363
    %v1660 = vpack.c.b16 %v1368, %v1364
    %v1661 = vpack.c.b16 %v1369, %v1365
    %v1662 = vpack.c.b16 %v1370, %v1366
    %v1663 = vpack.c.b16 %v1375, %v1371
    %v1664 = vpack.c.b16 %v1376, %v1372
    %v1665 = vpack.c.b16 %v1377, %v1373
    %v1666 = vpack.c.b16 %v1378, %v1374
    %v1667 = vpack.c.b16 %v1383, %v1379
    %v1668 = vpack.c.b16 %v1384, %v1380
    %v1669 = vpack.c.b16 %v1385, %v1381
    %v1670 = vpack.c.b16 %v1386, %v1382
    %v1671 = vpack.c.b16 %v1391, %v1387
    %v1672 = vpack.c.b16 %v1392, %v1388
    %v1673 = vpack.c.b16 %v1393, %v1389
    %v1674 = vpack.c.b16 %v1394, %v1390
    %v1675 = vpack.c.b16 %v1399, %v1395
    %v1676 = vpack.c.b16 %v1400, %v1396
    %v1677 = vpack.c.b16 %v1401, %v1397
    %v1678 = vpack.c.b16 %v1402, %v1398
    %v1679 = vpack.c.b16 %v1407, %v1403
    %v1680 = vpack.c.b16 %v1408, %v1404
    %v1681 = vpack.c.b16 %v1409, %v1405
    %v1682 = vpack.c.b16 %v1410, %v1406
    %v1683 = vpack.c.b16 %v1415, %v1411
    %v1684 = vpack.c.b16 %v1416, %v1412
    %v1685 = vpack.c.b16 %v1417, %v1413
    %v1686 = vpack.c.b16 %v1418, %v1414
    %v1687 = vpack.c.b16 %v1423, %v1419
    %v1688 = vpack.c.b16 %v1424, %v1420
    %v1689 = vpack.c.b16 %v1425, %v1421
    %v1690 = vpack.c.b16 %v1426, %v1422
    %v1691 = vpack.c.b16 %v1431, %v1427
    %v1692 = vpack.c.b16 %v1432, %v1428
    %v1693 = vpack.c.b16 %v1433, %v1429
    %v1694 = vpack.c.b16 %v1434, %v1430
    %v1695 = vpack.c.b16 %v1439, %v1435
    %v1696 = vpack.c.b16 %v1440, %v1436
    %v1697 = vpack.c.b16 %v1441, %v1437
    %v1698 = vpack.c.b16 %v1442, %v1438
    %1955 = vmatprep.subr.bf16.mxu0 %v1472
    %1956 = vmatpush1.bf16.msra.mxu0 %v1471
    %1957 = vmatprep.subr.bf16.mxu0 %v1468
    %1958 = vmatpush1.bf16.msra.mxu0 %v1467
    %1959 = vmatprep.subr.bf16.mxu0 %v1464
    %1960 = vmatpush1.bf16.msra.mxu0 %v1463
    %1961 = vmatprep.subr.bf16.mxu0 %v1460
    %1962 = vmatpush1.bf16.msra.mxu0 %v1459
    %1963 = vmatprep.subr.bf16.mxu0 %v1456
    %1964 = vmatpush1.bf16.msra.mxu0 %v1455
    %1965 = vmatprep.subr.bf16.mxu0 %v1452
    %1966 = vmatpush1.bf16.msra.mxu0 %v1451
    %1967 = vmatprep.subr.bf16.mxu0 %v1448
    %1968 = vmatpush1.bf16.msra.mxu0 %v1447
    %1969 = vmatprep.subr.bf16.mxu0 %v1444
    %1970 = vmatpush1.bf16.msra.mxu0 %v1443
    %1971 = vmatprep.subr.bf16.mxu0 %v1504
    %1972 = vmatpush2.bf16.msra.mxu0 %v1503
    %1973 = vmatprep.subr.bf16.mxu0 %v1500
    %1974 = vmatpush2.bf16.msra.mxu0 %v1499
    %1975 = vmatprep.subr.bf16.mxu0 %v1496
    %1976 = vmatpush2.bf16.msra.mxu0 %v1495
    %1977 = vmatprep.subr.bf16.mxu0 %v1492
    %1978 = vmatpush2.bf16.msra.mxu0 %v1491
    %1979 = vmatprep.subr.bf16.mxu0 %v1488
    %1980 = vmatpush2.bf16.msra.mxu0 %v1487
    %1981 = vmatprep.subr.bf16.mxu0 %v1484
    %1982 = vmatpush2.bf16.msra.mxu0 %v1483
    %1983 = vmatprep.subr.bf16.mxu0 %v1480
    %1984 = vmatpush2.bf16.msra.mxu0 %v1479
    %1985 = vmatprep.subr.bf16.mxu0 %v1476
    %1986 = vmatpush2.bf16.msra.mxu0 %v1475
    %1987 = vmatprep.mubr.bf16.mxu0 %v390
    %1988 = vmatmul.mubr.bf16.gmra.mxu0 %v389
    %v1989 = vpop.f32.mrf.mxu0
    %v1990 = vadd.f32 %v658, %v1989
    %v1991 = vpop.f32.mrf.mxu0
    %v1992 = vadd.f32 %v662, %v1991
    %v1993 = vpop.f32.mrf.mxu0
    %v1994 = vpop.f32.mrf.mxu0
    %1995 = vdwg.mxu0
    %1996 = vmatprep.subr.bf16.mxu0 %v1536
    %1997 = vmatpush1.bf16.msra.mxu0 %v1535
    %1998 = vmatprep.subr.bf16.mxu0 %v1532
    %1999 = vmatpush1.bf16.msra.mxu0 %v1531
    %2000 = vmatprep.subr.bf16.mxu0 %v1528
    %2001 = vmatpush1.bf16.msra.mxu0 %v1527
    %2002 = vmatprep.subr.bf16.mxu0 %v1524
    %2003 = vmatpush1.bf16.msra.mxu0 %v1523
    %2004 = vmatprep.subr.bf16.mxu0 %v1520
    %2005 = vmatpush1.bf16.msra.mxu0 %v1519
    %2006 = vmatprep.subr.bf16.mxu0 %v1516
    %2007 = vmatpush1.bf16.msra.mxu0 %v1515
    %2008 = vmatprep.subr.bf16.mxu0 %v1512
    %2009 = vmatpush1.bf16.msra.mxu0 %v1511
    %2010 = vmatprep.subr.bf16.mxu0 %v1508
    %2011 = vmatpush1.bf16.msra.mxu0 %v1507
    %2012 = vmatprep.subr.bf16.mxu0 %v1568
    %2013 = vmatpush2.bf16.msra.mxu0 %v1567
    %2014 = vmatprep.subr.bf16.mxu0 %v1564
    %2015 = vmatpush2.bf16.msra.mxu0 %v1563
    %2016 = vmatprep.subr.bf16.mxu0 %v1560
    %2017 = vmatpush2.bf16.msra.mxu0 %v1559
    %2018 = vmatprep.subr.bf16.mxu0 %v1556
    %2019 = vmatpush2.bf16.msra.mxu0 %v1555
    %2020 = vmatprep.subr.bf16.mxu0 %v1552
    %2021 = vmatpush2.bf16.msra.mxu0 %v1551
    %2022 = vmatprep.subr.bf16.mxu0 %v1548
    %2023 = vmatpush2.bf16.msra.mxu0 %v1547
    %2024 = vmatprep.subr.bf16.mxu0 %v1544
    %2025 = vmatpush2.bf16.msra.mxu0 %v1543
    %2026 = vmatprep.subr.bf16.mxu0 %v1540
    %2027 = vmatpush2.bf16.msra.mxu0 %v1539
    %2028 = vmatprep.mubr.bf16.mxu0 %v392
    %2029 = vmatmul.mubr.bf16.gmra.mxu0 %v391
    %v2030 = vpop.f32.mrf.mxu0
    %v2031 = vadd.f32 %v1990, %v2030
    %v2032 = vpop.f32.mrf.mxu0
    %v2033 = vadd.f32 %v1992, %v2032
    %v2034 = vpop.f32.mrf.mxu0
    %v2035 = vpop.f32.mrf.mxu0
    %2036 = vdwg.mxu0
    %2037 = vmatprep.subr.bf16.mxu0 %v1600
    %2038 = vmatpush1.bf16.msra.mxu0 %v1599
    %2039 = vmatprep.subr.bf16.mxu0 %v1596
    %2040 = vmatpush1.bf16.msra.mxu0 %v1595
    %2041 = vmatprep.subr.bf16.mxu0 %v1592
    %2042 = vmatpush1.bf16.msra.mxu0 %v1591
    %2043 = vmatprep.subr.bf16.mxu0 %v1588
    %2044 = vmatpush1.bf16.msra.mxu0 %v1587
    %2045 = vmatprep.subr.bf16.mxu0 %v1584
    %2046 = vmatpush1.bf16.msra.mxu0 %v1583
    %2047 = vmatprep.subr.bf16.mxu0 %v1580
    %2048 = vmatpush1.bf16.msra.mxu0 %v1579
    %2049 = vmatprep.subr.bf16.mxu0 %v1576
    %2050 = vmatpush1.bf16.msra.mxu0 %v1575
    %2051 = vmatprep.subr.bf16.mxu0 %v1572
    %2052 = vmatpush1.bf16.msra.mxu0 %v1571
    %2053 = vmatprep.subr.bf16.mxu0 %v1632
    %2054 = vmatpush2.bf16.msra.mxu0 %v1631
    %2055 = vmatprep.subr.bf16.mxu0 %v1628
    %2056 = vmatpush2.bf16.msra.mxu0 %v1627
    %2057 = vmatprep.subr.bf16.mxu0 %v1624
    %2058 = vmatpush2.bf16.msra.mxu0 %v1623
    %2059 = vmatprep.subr.bf16.mxu0 %v1620
    %2060 = vmatpush2.bf16.msra.mxu0 %v1619
    %2061 = vmatprep.subr.bf16.mxu0 %v1616
    %2062 = vmatpush2.bf16.msra.mxu0 %v1615
    %2063 = vmatprep.subr.bf16.mxu0 %v1612
    %2064 = vmatpush2.bf16.msra.mxu0 %v1611
    %2065 = vmatprep.subr.bf16.mxu0 %v1608
    %2066 = vmatpush2.bf16.msra.mxu0 %v1607
    %2067 = vmatprep.subr.bf16.mxu0 %v1604
    %2068 = vmatpush2.bf16.msra.mxu0 %v1603
    %2069 = vmatprep.mubr.bf16.mxu0 %v394
    %2070 = vmatmul.mubr.bf16.gmra.mxu0 %v393
    %v2071 = vpop.f32.mrf.mxu0
    %v2072 = vadd.f32 %v2031, %v2071
    %v2073 = vpop.f32.mrf.mxu0
    %v2074 = vadd.f32 %v2033, %v2073
    %v2075 = vpop.f32.mrf.mxu0
    %v2076 = vpop.f32.mrf.mxu0
    %2077 = vdwg.mxu0
    %2078 = vmatprep.subr.bf16.mxu0 %v1664
    %2079 = vmatpush1.bf16.msra.mxu0 %v1663
    %2080 = vmatprep.subr.bf16.mxu0 %v1660
    %2081 = vmatpush1.bf16.msra.mxu0 %v1659
    %2082 = vmatprep.subr.bf16.mxu0 %v1656
    %2083 = vmatpush1.bf16.msra.mxu0 %v1655
    %2084 = vmatprep.subr.bf16.mxu0 %v1652
    %2085 = vmatpush1.bf16.msra.mxu0 %v1651
    %2086 = vmatprep.subr.bf16.mxu0 %v1648
    %2087 = vmatpush1.bf16.msra.mxu0 %v1647
    %2088 = vmatprep.subr.bf16.mxu0 %v1644
    %2089 = vmatpush1.bf16.msra.mxu0 %v1643
    %2090 = vmatprep.subr.bf16.mxu0 %v1640
    %2091 = vmatpush1.bf16.msra.mxu0 %v1639
    %2092 = vmatprep.subr.bf16.mxu0 %v1636
    %2093 = vmatpush1.bf16.msra.mxu0 %v1635
    %2094 = vmatprep.subr.bf16.mxu0 %v1696
    %2095 = vmatpush2.bf16.msra.mxu0 %v1695
    %2096 = vmatprep.subr.bf16.mxu0 %v1692
    %2097 = vmatpush2.bf16.msra.mxu0 %v1691
    %2098 = vmatprep.subr.bf16.mxu0 %v1688
    %2099 = vmatpush2.bf16.msra.mxu0 %v1687
    %2100 = vmatprep.subr.bf16.mxu0 %v1684
    %2101 = vmatpush2.bf16.msra.mxu0 %v1683
    %2102 = vmatprep.subr.bf16.mxu0 %v1680
    %2103 = vmatpush2.bf16.msra.mxu0 %v1679
    %2104 = vmatprep.subr.bf16.mxu0 %v1676
    %2105 = vmatpush2.bf16.msra.mxu0 %v1675
    %2106 = vmatprep.subr.bf16.mxu0 %v1672
    %2107 = vmatpush2.bf16.msra.mxu0 %v1671
    %2108 = vmatprep.subr.bf16.mxu0 %v1668
    %2109 = vmatpush2.bf16.msra.mxu0 %v1667
    %2110 = vmatprep.mubr.bf16.mxu0 %v396
    %2111 = vmatmul.mubr.bf16.gmra.mxu0 %v395
    %v2112 = vpop.f32.mrf.mxu0
    %v2113 = vadd.f32 %v2072, %v2112
    %v2114 = vpop.f32.mrf.mxu0
    %v2115 = vadd.f32 %v2074, %v2114
    %v2116 = vpop.f32.mrf.mxu0
    %v2117 = vpop.f32.mrf.mxu0
    %2118 = vdwg.mxu0
    %2119 = vmatprep.subr.bf16.mxu0 %v1474
    %2120 = vmatpush1.bf16.msra.mxu0 %v1473
    %2121 = vmatprep.subr.bf16.mxu0 %v1470
    %2122 = vmatpush1.bf16.msra.mxu0 %v1469
    %2123 = vmatprep.subr.bf16.mxu0 %v1466
    %2124 = vmatpush1.bf16.msra.mxu0 %v1465
    %2125 = vmatprep.subr.bf16.mxu0 %v1462
    %2126 = vmatpush1.bf16.msra.mxu0 %v1461
    %2127 = vmatprep.subr.bf16.mxu0 %v1458
    %2128 = vmatpush1.bf16.msra.mxu0 %v1457
    %2129 = vmatprep.subr.bf16.mxu0 %v1454
    %2130 = vmatpush1.bf16.msra.mxu0 %v1453
    %2131 = vmatprep.subr.bf16.mxu0 %v1450
    %2132 = vmatpush1.bf16.msra.mxu0 %v1449
    %2133 = vmatprep.subr.bf16.mxu0 %v1446
    %2134 = vmatpush1.bf16.msra.mxu0 %v1445
    %2135 = vmatprep.subr.bf16.mxu0 %v1506
    %2136 = vmatpush2.bf16.msra.mxu0 %v1505
    %2137 = vmatprep.subr.bf16.mxu0 %v1502
    %2138 = vmatpush2.bf16.msra.mxu0 %v1501
    %2139 = vmatprep.subr.bf16.mxu0 %v1498
    %2140 = vmatpush2.bf16.msra.mxu0 %v1497
    %2141 = vmatprep.subr.bf16.mxu0 %v1494
    %2142 = vmatpush2.bf16.msra.mxu0 %v1493
    %2143 = vmatprep.subr.bf16.mxu0 %v1490
    %2144 = vmatpush2.bf16.msra.mxu0 %v1489
    %2145 = vmatprep.subr.bf16.mxu0 %v1486
    %2146 = vmatpush2.bf16.msra.mxu0 %v1485
    %2147 = vmatprep.subr.bf16.mxu0 %v1482
    %2148 = vmatpush2.bf16.msra.mxu0 %v1481
    %2149 = vmatprep.subr.bf16.mxu0 %v1478
    %2150 = vmatpush2.bf16.msra.mxu0 %v1477
    %2151 = vmatprep.mubr.bf16.mxu0 %v390
    %2152 = vmatmul.mubr.bf16.gmra.mxu0 %v389
    %v2153 = vpop.f32.mrf.mxu0
    %v2154 = vadd.f32 %v666, %v2153
    %v2155 = vpop.f32.mrf.mxu0
    %v2156 = vadd.f32 %v670, %v2155
    %v2157 = vpop.f32.mrf.mxu0
    %v2158 = vpop.f32.mrf.mxu0
    %2159 = vdwg.mxu0
    %2160 = vmatprep.subr.bf16.mxu0 %v1538
    %2161 = vmatpush1.bf16.msra.mxu0 %v1537
    %2162 = vmatprep.subr.bf16.mxu0 %v1534
    %2163 = vmatpush1.bf16.msra.mxu0 %v1533
    %2164 = vmatprep.subr.bf16.mxu0 %v1530
    %2165 = vmatpush1.bf16.msra.mxu0 %v1529
    %2166 = vmatprep.subr.bf16.mxu0 %v1526
    %2167 = vmatpush1.bf16.msra.mxu0 %v1525
    %2168 = vmatprep.subr.bf16.mxu0 %v1522
    %2169 = vmatpush1.bf16.msra.mxu0 %v1521
    %2170 = vmatprep.subr.bf16.mxu0 %v1518
    %2171 = vmatpush1.bf16.msra.mxu0 %v1517
    %2172 = vmatprep.subr.bf16.mxu0 %v1514
    %2173 = vmatpush1.bf16.msra.mxu0 %v1513
    %2174 = vmatprep.subr.bf16.mxu0 %v1510
    %2175 = vmatpush1.bf16.msra.mxu0 %v1509
    %2176 = vmatprep.subr.bf16.mxu0 %v1570
    %2177 = vmatpush2.bf16.msra.mxu0 %v1569
    %2178 = vmatprep.subr.bf16.mxu0 %v1566
    %2179 = vmatpush2.bf16.msra.mxu0 %v1565
    %2180 = vmatprep.subr.bf16.mxu0 %v1562
    %2181 = vmatpush2.bf16.msra.mxu0 %v1561
    %2182 = vmatprep.subr.bf16.mxu0 %v1558
    %2183 = vmatpush2.bf16.msra.mxu0 %v1557
    %2184 = vmatprep.subr.bf16.mxu0 %v1554
    %2185 = vmatpush2.bf16.msra.mxu0 %v1553
    %2186 = vmatprep.subr.bf16.mxu0 %v1550
    %2187 = vmatpush2.bf16.msra.mxu0 %v1549
    %2188 = vmatprep.subr.bf16.mxu0 %v1546
    %2189 = vmatpush2.bf16.msra.mxu0 %v1545
    %2190 = vmatprep.subr.bf16.mxu0 %v1542
    %2191 = vmatpush2.bf16.msra.mxu0 %v1541
    %2192 = vmatprep.mubr.bf16.mxu0 %v392
    %2193 = vmatmul.mubr.bf16.gmra.mxu0 %v391
    %v2194 = vpop.f32.mrf.mxu0
    %v2195 = vadd.f32 %v2154, %v2194
    %v2196 = vpop.f32.mrf.mxu0
    %v2197 = vadd.f32 %v2156, %v2196
    %v2198 = vpop.f32.mrf.mxu0
    %v2199 = vpop.f32.mrf.mxu0
    %2200 = vdwg.mxu0
    %2201 = vmatprep.subr.bf16.mxu0 %v1602
    %2202 = vmatpush1.bf16.msra.mxu0 %v1601
    %2203 = vmatprep.subr.bf16.mxu0 %v1598
    %2204 = vmatpush1.bf16.msra.mxu0 %v1597
    %2205 = vmatprep.subr.bf16.mxu0 %v1594
    %2206 = vmatpush1.bf16.msra.mxu0 %v1593
    %2207 = vmatprep.subr.bf16.mxu0 %v1590
    %2208 = vmatpush1.bf16.msra.mxu0 %v1589
    %2209 = vmatprep.subr.bf16.mxu0 %v1586
    %2210 = vmatpush1.bf16.msra.mxu0 %v1585
    %2211 = vmatprep.subr.bf16.mxu0 %v1582
    %2212 = vmatpush1.bf16.msra.mxu0 %v1581
    %2213 = vmatprep.subr.bf16.mxu0 %v1578
    %2214 = vmatpush1.bf16.msra.mxu0 %v1577
    %2215 = vmatprep.subr.bf16.mxu0 %v1574
    %2216 = vmatpush1.bf16.msra.mxu0 %v1573
    %2217 = vmatprep.subr.bf16.mxu0 %v1634
    %2218 = vmatpush2.bf16.msra.mxu0 %v1633
    %2219 = vmatprep.subr.bf16.mxu0 %v1630
    %2220 = vmatpush2.bf16.msra.mxu0 %v1629
    %2221 = vmatprep.subr.bf16.mxu0 %v1626
    %2222 = vmatpush2.bf16.msra.mxu0 %v1625
    %2223 = vmatprep.subr.bf16.mxu0 %v1622
    %2224 = vmatpush2.bf16.msra.mxu0 %v1621
    %2225 = vmatprep.subr.bf16.mxu0 %v1618
    %2226 = vmatpush2.bf16.msra.mxu0 %v1617
    %2227 = vmatprep.subr.bf16.mxu0 %v1614
    %2228 = vmatpush2.bf16.msra.mxu0 %v1613
    %2229 = vmatprep.subr.bf16.mxu0 %v1610
    %2230 = vmatpush2.bf16.msra.mxu0 %v1609
    %2231 = vmatprep.subr.bf16.mxu0 %v1606
    %2232 = vmatpush2.bf16.msra.mxu0 %v1605
    %2233 = vmatprep.mubr.bf16.mxu0 %v394
    %2234 = vmatmul.mubr.bf16.gmra.mxu0 %v393
    %v2235 = vpop.f32.mrf.mxu0
    %v2236 = vadd.f32 %v2195, %v2235
    %v2237 = vpop.f32.mrf.mxu0
    %v2238 = vadd.f32 %v2197, %v2237
    %v2239 = vpop.f32.mrf.mxu0
    %v2240 = vpop.f32.mrf.mxu0
    %2241 = vdwg.mxu0
    %2242 = vmatprep.subr.bf16.mxu0 %v1666
    %2243 = vmatpush1.bf16.msra.mxu0 %v1665
    %2244 = vmatprep.subr.bf16.mxu0 %v1662
    %2245 = vmatpush1.bf16.msra.mxu0 %v1661
    %2246 = vmatprep.subr.bf16.mxu0 %v1658
    %2247 = vmatpush1.bf16.msra.mxu0 %v1657
    %2248 = vmatprep.subr.bf16.mxu0 %v1654
    %2249 = vmatpush1.bf16.msra.mxu0 %v1653
    %2250 = vmatprep.subr.bf16.mxu0 %v1650
    %2251 = vmatpush1.bf16.msra.mxu0 %v1649
    %2252 = vmatprep.subr.bf16.mxu0 %v1646
    %2253 = vmatpush1.bf16.msra.mxu0 %v1645
    %2254 = vmatprep.subr.bf16.mxu0 %v1642
    %2255 = vmatpush1.bf16.msra.mxu0 %v1641
    %2256 = vmatprep.subr.bf16.mxu0 %v1638
    %2257 = vmatpush1.bf16.msra.mxu0 %v1637
    %2258 = vmatprep.subr.bf16.mxu0 %v1698
    %2259 = vmatpush2.bf16.msra.mxu0 %v1697
    %2260 = vmatprep.subr.bf16.mxu0 %v1694
    %2261 = vmatpush2.bf16.msra.mxu0 %v1693
    %2262 = vmatprep.subr.bf16.mxu0 %v1690
    %2263 = vmatpush2.bf16.msra.mxu0 %v1689
    %2264 = vmatprep.subr.bf16.mxu0 %v1686
    %2265 = vmatpush2.bf16.msra.mxu0 %v1685
    %2266 = vmatprep.subr.bf16.mxu0 %v1682
    %2267 = vmatpush2.bf16.msra.mxu0 %v1681
    %2268 = vmatprep.subr.bf16.mxu0 %v1678
    %2269 = vmatpush2.bf16.msra.mxu0 %v1677
    %2270 = vmatprep.subr.bf16.mxu0 %v1674
    %2271 = vmatpush2.bf16.msra.mxu0 %v1673
    %2272 = vmatprep.subr.bf16.mxu0 %v1670
    %2273 = vmatpush2.bf16.msra.mxu0 %v1669
    %2274 = vmatprep.mubr.bf16.mxu0 %v396
    %2275 = vmatmul.mubr.bf16.gmra.mxu0 %v395
    %v2276 = vpop.f32.mrf.mxu0
    %v2277 = vadd.f32 %v2236, %v2276
    %v2278 = vpop.f32.mrf.mxu0
    %v2279 = vadd.f32 %v2238, %v2278
    %v2280 = vpop.f32.mrf.mxu0
    %v2281 = vpop.f32.mrf.mxu0
    %2282 = vdwg.mxu0
    %v2283 = vpack.c.bf16 %v2113, %v2113
    %v2284 = vpack.c.bf16 %v2115, %v2115
    %v2285 = vpack.c.bf16 %v2277, %v2277
    %v2286 = vpack.c.bf16 %v2279, %v2279
    %v2287 = vld [vmem:[#allocation10] sm:$0xf]
    %v2288 = vld [vmem:[#allocation10 + $0x4] sm:$0xf]
    %v2289 = vld [vmem:[#allocation10 + $0x8] sm:$0xf]
    %v2290 = vld [vmem:[#allocation10 + $0xc] sm:$0xf]
    %v2291 = vld [vmem:[#allocation10 + $0x10] sm:$0xf]
    %v2292 = vld [vmem:[#allocation10 + $0x14] sm:$0xf]
    %v2293 = vld [vmem:[#allocation10 + $0x18] sm:$0xf]
    %v2294 = vld [vmem:[#allocation10 + $0x1c] sm:$0xf]
    %v2295 = vld [vmem:[#allocation10 + $0x20] sm:$0xf]
    %v2296 = vld [vmem:[#allocation10 + $0x24] sm:$0xf]
    %v2297 = vld [vmem:[#allocation10 + $0x28] sm:$0xf]
    %v2298 = vld [vmem:[#allocation10 + $0x2c] sm:$0xf]
    %v2299 = vld [vmem:[#allocation10 + $0x30] sm:$0xf]
    %v2300 = vld [vmem:[#allocation10 + $0x34] sm:$0xf]
    %v2301 = vld [vmem:[#allocation10 + $0x38] sm:$0xf]
    %v2302 = vld [vmem:[#allocation10 + $0x3c] sm:$0xf]
    %v2303 = vld [vmem:[#allocation10 + $0x40] sm:$0xf]
    %v2304 = vld [vmem:[#allocation10 + $0x44] sm:$0xf]
    %v2305 = vld [vmem:[#allocation10 + $0x48] sm:$0xf]
    %v2306 = vld [vmem:[#allocation10 + $0x4c] sm:$0xf]
    %v2307 = vld [vmem:[#allocation10 + $0x50] sm:$0xf]
    %v2308 = vld [vmem:[#allocation10 + $0x54] sm:$0xf]
    %v2309 = vld [vmem:[#allocation10 + $0x58] sm:$0xf]
    %v2310 = vld [vmem:[#allocation10 + $0x5c] sm:$0xf]
    %v2311 = vld [vmem:[#allocation10 + $0x60] sm:$0xf]
    %v2312 = vld [vmem:[#allocation10 + $0x64] sm:$0xf]
    %v2313 = vld [vmem:[#allocation10 + $0x68] sm:$0xf]
    %v2314 = vld [vmem:[#allocation10 + $0x6c] sm:$0xf]
    %v2315 = vld [vmem:[#allocation10 + $0x70] sm:$0xf]
    %v2316 = vld [vmem:[#allocation10 + $0x74] sm:$0xf]
    %v2317 = vld [vmem:[#allocation10 + $0x78] sm:$0xf]
    %v2318 = vld [vmem:[#allocation10 + $0x7c] sm:$0xf]
    %v2319 = vld [vmem:[#allocation10 + $0x80] sm:$0xf]
    %v2320 = vld [vmem:[#allocation10 + $0x84] sm:$0xf]
    %v2321 = vld [vmem:[#allocation10 + $0x88] sm:$0xf]
    %v2322 = vld [vmem:[#allocation10 + $0x8c] sm:$0xf]
    %v2323 = vld [vmem:[#allocation10 + $0x90] sm:$0xf]
    %v2324 = vld [vmem:[#allocation10 + $0x94] sm:$0xf]
    %v2325 = vld [vmem:[#allocation10 + $0x98] sm:$0xf]
    %v2326 = vld [vmem:[#allocation10 + $0x9c] sm:$0xf]
    %v2327 = vld [vmem:[#allocation10 + $0xa0] sm:$0xf]
    %v2328 = vld [vmem:[#allocation10 + $0xa4] sm:$0xf]
    %v2329 = vld [vmem:[#allocation10 + $0xa8] sm:$0xf]
    %v2330 = vld [vmem:[#allocation10 + $0xac] sm:$0xf]
    %v2331 = vld [vmem:[#allocation10 + $0xb0] sm:$0xf]
    %v2332 = vld [vmem:[#allocation10 + $0xb4] sm:$0xf]
    %v2333 = vld [vmem:[#allocation10 + $0xb8] sm:$0xf]
    %v2334 = vld [vmem:[#allocation10 + $0xbc] sm:$0xf]
    %v2335 = vld [vmem:[#allocation10 + $0xc0] sm:$0xf]
    %v2336 = vld [vmem:[#allocation10 + $0xc4] sm:$0xf]
    %v2337 = vld [vmem:[#allocation10 + $0xc8] sm:$0xf]
    %v2338 = vld [vmem:[#allocation10 + $0xcc] sm:$0xf]
    %v2339 = vld [vmem:[#allocation10 + $0xd0] sm:$0xf]
    %v2340 = vld [vmem:[#allocation10 + $0xd4] sm:$0xf]
    %v2341 = vld [vmem:[#allocation10 + $0xd8] sm:$0xf]
    %v2342 = vld [vmem:[#allocation10 + $0xdc] sm:$0xf]
    %v2343 = vld [vmem:[#allocation10 + $0xe0] sm:$0xf]
    %v2344 = vld [vmem:[#allocation10 + $0xe4] sm:$0xf]
    %v2345 = vld [vmem:[#allocation10 + $0xe8] sm:$0xf]
    %v2346 = vld [vmem:[#allocation10 + $0xec] sm:$0xf]
    %v2347 = vld [vmem:[#allocation10 + $0xf0] sm:$0xf]
    %v2348 = vld [vmem:[#allocation10 + $0xf4] sm:$0xf]
    %v2349 = vld [vmem:[#allocation10 + $0xf8] sm:$0xf]
    %v2350 = vld [vmem:[#allocation10 + $0xfc] sm:$0xf]
    %v2351 = vld [vmem:[%s6] sm:$0x1]
    %v2353 = vlaneseq
    %v2354 = vshrl.u32 %v2353, 7
    %v2355 = vsub.s32 0, %v2354
    %v2356 = vrot.slane %v2351, %v2355
    %v2422 = vunpack.c.l.b16 %v2287
    %v2423 = vunpack.c.l.b16 %v2288
    %v2424 = vunpack.c.l.b16 %v2289
    %v2425 = vunpack.c.l.b16 %v2290
    %v2426 = vunpack.c.l.b16 %v2291
    %v2427 = vunpack.c.l.b16 %v2292
    %v2428 = vunpack.c.l.b16 %v2293
    %v2429 = vunpack.c.l.b16 %v2294
    %v2430 = vunpack.c.l.b16 %v2295
    %v2431 = vunpack.c.l.b16 %v2296
    %v2432 = vunpack.c.l.b16 %v2297
    %v2433 = vunpack.c.l.b16 %v2298
    %v2434 = vunpack.c.l.b16 %v2299
    %v2435 = vunpack.c.l.b16 %v2300
    %v2436 = vunpack.c.l.b16 %v2301
    %v2437 = vunpack.c.l.b16 %v2302
    %v2438 = vunpack.c.l.b16 %v2303
    %v2439 = vunpack.c.l.b16 %v2304
    %v2440 = vunpack.c.l.b16 %v2305
    %v2441 = vunpack.c.l.b16 %v2306
    %v2442 = vunpack.c.l.b16 %v2307
    %v2443 = vunpack.c.l.b16 %v2308
    %v2444 = vunpack.c.l.b16 %v2309
    %v2445 = vunpack.c.l.b16 %v2310
    %v2446 = vunpack.c.l.b16 %v2311
    %v2447 = vunpack.c.l.b16 %v2312
    %v2448 = vunpack.c.l.b16 %v2313
    %v2449 = vunpack.c.l.b16 %v2314
    %v2450 = vunpack.c.l.b16 %v2315
    %v2451 = vunpack.c.l.b16 %v2316
    %v2452 = vunpack.c.l.b16 %v2317
    %v2453 = vunpack.c.l.b16 %v2318
    %v2454 = vunpack.c.l.b16 %v2319
    %v2455 = vunpack.c.l.b16 %v2320
    %v2456 = vunpack.c.l.b16 %v2321
    %v2457 = vunpack.c.l.b16 %v2322
    %v2458 = vunpack.c.l.b16 %v2323
    %v2459 = vunpack.c.l.b16 %v2324
    %v2460 = vunpack.c.l.b16 %v2325
    %v2461 = vunpack.c.l.b16 %v2326
    %v2462 = vunpack.c.l.b16 %v2327
    %v2463 = vunpack.c.l.b16 %v2328
    %v2464 = vunpack.c.l.b16 %v2329
    %v2465 = vunpack.c.l.b16 %v2330
    %v2466 = vunpack.c.l.b16 %v2331
    %v2467 = vunpack.c.l.b16 %v2332
    %v2468 = vunpack.c.l.b16 %v2333
    %v2469 = vunpack.c.l.b16 %v2334
    %v2470 = vunpack.c.l.b16 %v2335
    %v2471 = vunpack.c.l.b16 %v2336
    %v2472 = vunpack.c.l.b16 %v2337
    %v2473 = vunpack.c.l.b16 %v2338
    %v2474 = vunpack.c.l.b16 %v2339
    %v2475 = vunpack.c.l.b16 %v2340
    %v2476 = vunpack.c.l.b16 %v2341
    %v2477 = vunpack.c.l.b16 %v2342
    %v2478 = vunpack.c.l.b16 %v2343
    %v2479 = vunpack.c.l.b16 %v2344
    %v2480 = vunpack.c.l.b16 %v2345
    %v2481 = vunpack.c.l.b16 %v2346
    %v2482 = vunpack.c.l.b16 %v2347
    %v2483 = vunpack.c.l.b16 %v2348
    %v2484 = vunpack.c.l.b16 %v2349
    %v2485 = vunpack.c.l.b16 %v2350
    %v2486 = vpack.c.b16 %v2423, %v2422
    %v2487 = vpack.c.b16 %v2425, %v2424
    %v2488 = vpack.c.b16 %v2427, %v2426
    %v2489 = vpack.c.b16 %v2429, %v2428
    %v2490 = vpack.c.b16 %v2431, %v2430
    %v2491 = vpack.c.b16 %v2433, %v2432
    %v2492 = vpack.c.b16 %v2435, %v2434
    %v2493 = vpack.c.b16 %v2437, %v2436
    %v2494 = vpack.c.b16 %v2439, %v2438
    %v2495 = vpack.c.b16 %v2441, %v2440
    %v2496 = vpack.c.b16 %v2443, %v2442
    %v2497 = vpack.c.b16 %v2445, %v2444
    %v2498 = vpack.c.b16 %v2447, %v2446
    %v2499 = vpack.c.b16 %v2449, %v2448
    %v2500 = vpack.c.b16 %v2451, %v2450
    %v2501 = vpack.c.b16 %v2453, %v2452
    %v2502 = vpack.c.b16 %v2455, %v2454
    %v2503 = vpack.c.b16 %v2457, %v2456
    %v2504 = vpack.c.b16 %v2459, %v2458
    %v2505 = vpack.c.b16 %v2461, %v2460
    %v2506 = vpack.c.b16 %v2463, %v2462
    %v2507 = vpack.c.b16 %v2465, %v2464
    %v2508 = vpack.c.b16 %v2467, %v2466
    %v2509 = vpack.c.b16 %v2469, %v2468
    %v2510 = vpack.c.b16 %v2471, %v2470
    %v2511 = vpack.c.b16 %v2473, %v2472
    %v2512 = vpack.c.b16 %v2475, %v2474
    %v2513 = vpack.c.b16 %v2477, %v2476
    %v2514 = vpack.c.b16 %v2479, %v2478
    %v2515 = vpack.c.b16 %v2481, %v2480
    %v2516 = vpack.c.b16 %v2483, %v2482
    %v2517 = vpack.c.b16 %v2485, %v2484
    %2550 = vmatprep.subr.bf16.mxu0 0
    %2551 = vmatpush1.bf16.msra.mxu0 %v2493
    %2552 = vmatprep.subr.bf16.mxu0 0
    %2553 = vmatpush1.bf16.msra.mxu0 %v2492
    %2554 = vmatprep.subr.bf16.mxu0 0
    %2555 = vmatpush1.bf16.msra.mxu0 %v2491
    %2556 = vmatprep.subr.bf16.mxu0 0
    %2557 = vmatpush1.bf16.msra.mxu0 %v2490
    %2558 = vmatprep.subr.bf16.mxu0 0
    %2559 = vmatpush1.bf16.msra.mxu0 %v2489
    %2560 = vmatprep.subr.bf16.mxu0 0
    %2561 = vmatpush1.bf16.msra.mxu0 %v2488
    %2562 = vmatprep.subr.bf16.mxu0 0
    %2563 = vmatpush1.bf16.msra.mxu0 %v2487
    %2564 = vmatprep.subr.bf16.mxu0 0
    %2565 = vmatpush1.bf16.msra.mxu0 %v2486
    %2566 = vmatprep.subr.bf16.mxu0 0
    %2567 = vmatpush2.bf16.msra.mxu0 %v2501
    %2568 = vmatprep.subr.bf16.mxu0 0
    %2569 = vmatpush2.bf16.msra.mxu0 %v2500
    %2570 = vmatprep.subr.bf16.mxu0 0
    %2571 = vmatpush2.bf16.msra.mxu0 %v2499
    %2572 = vmatprep.subr.bf16.mxu0 0
    %2573 = vmatpush2.bf16.msra.mxu0 %v2498
    %2574 = vmatprep.subr.bf16.mxu0 0
    %2575 = vmatpush2.bf16.msra.mxu0 %v2497
    %2576 = vmatprep.subr.bf16.mxu0 0
    %2577 = vmatpush2.bf16.msra.mxu0 %v2496
    %2578 = vmatprep.subr.bf16.mxu0 0
    %2579 = vmatpush2.bf16.msra.mxu0 %v2495
    %2580 = vmatprep.subr.bf16.mxu0 0
    %2581 = vmatpush2.bf16.msra.mxu0 %v2494
    %2582 = vmatprep.mubr.bf16.mxu0 %v2284
    %2583 = vmatmul.mubr.bf16.gmra.mxu0 %v2283
    %v2584 = vpop.f32.mrf.mxu0
    %v2585 = vadd.f32 %v2356, %v2584
    %v2586 = vpop.f32.mrf.mxu0
    %v2587 = vpop.f32.mrf.mxu0
    %v2588 = vpop.f32.mrf.mxu0
    %2589 = vdwg.mxu0
    %2590 = vmatprep.subr.bf16.mxu0 0
    %2591 = vmatpush1.bf16.msra.mxu0 %v2509
    %2592 = vmatprep.subr.bf16.mxu0 0
    %2593 = vmatpush1.bf16.msra.mxu0 %v2508
    %2594 = vmatprep.subr.bf16.mxu0 0
    %2595 = vmatpush1.bf16.msra.mxu0 %v2507
    %2596 = vmatprep.subr.bf16.mxu0 0
    %2597 = vmatpush1.bf16.msra.mxu0 %v2506
    %2598 = vmatprep.subr.bf16.mxu0 0
    %2599 = vmatpush1.bf16.msra.mxu0 %v2505
    %2600 = vmatprep.subr.bf16.mxu0 0
    %2601 = vmatpush1.bf16.msra.mxu0 %v2504
    %2602 = vmatprep.subr.bf16.mxu0 0
    %2603 = vmatpush1.bf16.msra.mxu0 %v2503
    %2604 = vmatprep.subr.bf16.mxu0 0
    %2605 = vmatpush1.bf16.msra.mxu0 %v2502
    %2606 = vmatprep.subr.bf16.mxu0 0
    %2607 = vmatpush2.bf16.msra.mxu0 %v2517
    %2608 = vmatprep.subr.bf16.mxu0 0
    %2609 = vmatpush2.bf16.msra.mxu0 %v2516
    %2610 = vmatprep.subr.bf16.mxu0 0
    %2611 = vmatpush2.bf16.msra.mxu0 %v2515
    %2612 = vmatprep.subr.bf16.mxu0 0
    %2613 = vmatpush2.bf16.msra.mxu0 %v2514
    %2614 = vmatprep.subr.bf16.mxu0 0
    %2615 = vmatpush2.bf16.msra.mxu0 %v2513
    %2616 = vmatprep.subr.bf16.mxu0 0
    %2617 = vmatpush2.bf16.msra.mxu0 %v2512
    %2618 = vmatprep.subr.bf16.mxu0 0
    %2619 = vmatpush2.bf16.msra.mxu0 %v2511
    %2620 = vmatprep.subr.bf16.mxu0 0
    %2621 = vmatpush2.bf16.msra.mxu0 %v2510
    %2622 = vmatprep.mubr.bf16.mxu0 %v2286
    %2623 = vmatmul.mubr.bf16.gmra.mxu0 %v2285
    %v2624 = vpop.f32.mrf.mxu0
    %v2625 = vadd.f32 %v2585, %v2624
    %v2626 = vpop.f32.mrf.mxu0
    %v2627 = vpop.f32.mrf.mxu0
    %v2628 = vpop.f32.mrf.mxu0
    %2629 = vdwg.mxu0
    %v2630 = vmax.f32 %v2625, 0.0
    %v2631 = vpack.c.bf16 %v2630, %v2630
    %v2632 = vld [vmem:[#allocation11] sm:$0xf]
    %v2633 = vld [vmem:[#allocation11 + $0x4] sm:$0xf]
    %v2634 = vld [vmem:[#allocation11 + $0x8] sm:$0xf]
    %v2635 = vld [vmem:[#allocation11 + $0xc] sm:$0xf]
    %v2636 = vld [vmem:[#allocation11 + $0x10] sm:$0xf]
    %v2637 = vld [vmem:[#allocation11 + $0x14] sm:$0xf]
    %v2638 = vld [vmem:[#allocation11 + $0x18] sm:$0xf]
    %v2639 = vld [vmem:[#allocation11 + $0x1c] sm:$0xf]
    %v2640 = vld [vmem:[#allocation11 + $0x20] sm:$0xf]
    %v2641 = vld [vmem:[#allocation11 + $0x24] sm:$0xf]
    %v2642 = vld [vmem:[#allocation11 + $0x28] sm:$0xf]
    %v2643 = vld [vmem:[#allocation11 + $0x2c] sm:$0xf]
    %v2644 = vld [vmem:[#allocation11 + $0x30] sm:$0xf]
    %v2645 = vld [vmem:[#allocation11 + $0x34] sm:$0xf]
    %v2646 = vld [vmem:[#allocation11 + $0x38] sm:$0xf]
    %v2647 = vld [vmem:[#allocation11 + $0x3c] sm:$0xf]
    %v2648 = vld [vmem:[%s8] sm:$0x1]
    %v2650 = vlaneseq
    %v2651 = vshrl.u32 %v2650, 7
    %v2652 = vsub.s32 0, %v2651
    %v2653 = vrot.slane %v2648, %v2652
    %v2671 = vunpack.c.l.b16 %v2632
    %v2672 = vunpack.c.l.b16 %v2633
    %v2673 = vunpack.c.l.b16 %v2634
    %v2674 = vunpack.c.l.b16 %v2635
    %v2675 = vunpack.c.l.b16 %v2636
    %v2676 = vunpack.c.l.b16 %v2637
    %v2677 = vunpack.c.l.b16 %v2638
    %v2678 = vunpack.c.l.b16 %v2639
    %v2679 = vunpack.c.l.b16 %v2640
    %v2680 = vunpack.c.l.b16 %v2641
    %v2681 = vunpack.c.l.b16 %v2642
    %v2682 = vunpack.c.l.b16 %v2643
    %v2683 = vunpack.c.l.b16 %v2644
    %v2684 = vunpack.c.l.b16 %v2645
    %v2685 = vunpack.c.l.b16 %v2646
    %v2686 = vunpack.c.l.b16 %v2647
    %v2687 = vpack.c.b16 %v2672, %v2671
    %v2688 = vpack.c.b16 %v2674, %v2673
    %v2689 = vpack.c.b16 %v2676, %v2675
    %v2690 = vpack.c.b16 %v2678, %v2677
    %v2691 = vpack.c.b16 %v2680, %v2679
    %v2692 = vpack.c.b16 %v2682, %v2681
    %v2693 = vpack.c.b16 %v2684, %v2683
    %v2694 = vpack.c.b16 %v2686, %v2685
    %2703 = vmatprep.subr.bf16.mxu0 0
    %2704 = vmatpush1.bf16.msra.mxu0 %v2694
    %2705 = vmatprep.subr.bf16.mxu0 0
    %2706 = vmatpush1.bf16.msra.mxu0 %v2693
    %2707 = vmatprep.subr.bf16.mxu0 0
    %2708 = vmatpush1.bf16.msra.mxu0 %v2692
    %2709 = vmatprep.subr.bf16.mxu0 0
    %2710 = vmatpush1.bf16.msra.mxu0 %v2691
    %2711 = vmatprep.subr.bf16.mxu0 0
    %2712 = vmatpush1.bf16.msra.mxu0 %v2690
    %2713 = vmatprep.subr.bf16.mxu0 0
    %2714 = vmatpush1.bf16.msra.mxu0 %v2689
    %2715 = vmatprep.subr.bf16.mxu0 0
    %2716 = vmatpush1.bf16.msra.mxu0 %v2688
    %2717 = vmatprep.subr.bf16.mxu0 0
    %2718 = vmatpush1.bf16.msra.mxu0 %v2687
    %2719 = vmatprep.subr.bf16.mxu0 0
    %2720 = vmatpush2.bf16.msra.mxu0 0
    %2721 = vmatprep.subr.bf16.mxu0 0
    %2722 = vmatpush2.bf16.msra.mxu0 0
    %2723 = vmatprep.subr.bf16.mxu0 0
    %2724 = vmatpush2.bf16.msra.mxu0 0
    %2725 = vmatprep.subr.bf16.mxu0 0
    %2726 = vmatpush2.bf16.msra.mxu0 0
    %2727 = vmatprep.subr.bf16.mxu0 0
    %2728 = vmatpush2.bf16.msra.mxu0 0
    %2729 = vmatprep.subr.bf16.mxu0 0
    %2730 = vmatpush2.bf16.msra.mxu0 0
    %2731 = vmatprep.subr.bf16.mxu0 0
    %2732 = vmatpush2.bf16.msra.mxu0 0
    %2733 = vmatprep.subr.bf16.mxu0 0
    %2734 = vmatpush2.bf16.msra.mxu0 0
    %2735 = vmatprep.mubr.bf16.mxu0 0
    %2736 = vmatmul.mubr.bf16.gmra.mxu0 %v2631
    %v2737 = vpop.f32.mrf.mxu0
    %v2738 = vadd.f32 %v2653, %v2737
    %v2739 = vpop.f32.mrf.mxu0
    %v2740 = vpop.f32.mrf.mxu0
    %v2741 = vpop.f32.mrf.mxu0
    %2742 = vdwg.mxu0
    %2743 = vst [vmem:[#allocation13] sm:$0xff] %v2738
    // Predicated region
    $region62: #{tpu_custom_call.1} parent=1 // pred_check
      _
    $region63: #{tpu_custom_call.1} parent=1 // pred_check_branch
      %2745 = sbr.rel (0) target = $region65
    $region64: #{tpu_custom_call.1} parent=1 // pred_region
      %s2747 = ssub.s32 128, 128
      %2748 = vsyncadd [#allocation4], %s2747
      %s2750 = sshll.u32 [#allocation13], 4
      %s2751 = int_to_ptr.vmem [resolvable:$true] %s2750
      %2753 = dma.vmem_to_hbm [thread:$0]  %s2751, 128, %s9, [#allocation4]
    $region65: #{tpu_custom_call.1} parent=1 // pred_fallthru
      _
    // Predicated region
    $region66: #{tpu_custom_call.1} parent=1 // pred_check
      _
    $region67: #{tpu_custom_call.1} parent=1 // pred_check_branch
      %2755 = sbr.rel (0) target = $region69
    $region68: #{tpu_custom_call.1} parent=1 // pred_region
      %2756 = dma.done [#allocation4], 128
    $region69: #{tpu_custom_call.1} parent=1 // pred_fallthru
      _
    %2757 = vsyncpa [#allocation3], 1
    %2758 = vsyncpa [#allocation6], 1
    %2759 = vsyncpa [#allocation9], 1
    %2760 = vsyncpa [#allocation12], 1
    %2761 = vsyncpa [#allocation4], 1

</llo_original>
